<compile_context>
chip_gen: v7x
topology: tpu7x:2x2x1
jax: 0.10.0
libtpu: 0.0.40
codegen_flags: <defaults>
</compile_context>

<pallas_src>
import math

import jax
import jax.numpy as jnp
from jax import lax
from jax.experimental import pallas as pl
from jax.experimental.pallas import tpu as pltpu

INV_SQRT2 = 1.0 / math.sqrt(2.0)


def _gelu_exact(x):
    # torch.nn.functional.gelu default: 0.5 * x * (1 + erf(x / sqrt(2)))
    return 0.5 * x * (1.0 + lax.erf(x * INV_SQRT2))


def _sigmoid(x):
    # Exact logistic (== 2-way softmax via softmax([a,b])[0] = sigmoid(a-b)).
    # Implemented with exp + exact reciprocal: both sit on the EUP slot and are
    # proven Mosaic lowerings; one exp+recip replaces max + 2*exp + add + recip.
    return pl.reciprocal(1.0 + jnp.exp(-x))


def transformer_kernel(x_ref, w1_ref, b1_ref, wqkv_ref, w5a_ref, w5b_ref,
                       b5_ref, out_ref):
    # x_ref: (tile_b, n_input) natural layout.  Contract its feature axis on
    # the MXU (rhs-transposed matmul) so no HBM-side transpose is needed and
    # everything downstream is (features, batch) with batch on the lanes.
    # TODO(synk): b1 could be folded into the matmul (K 16->17 via a ones row)
    # but that needs an in-kernel block copy; kept as a broadcast add (~3-5%).
    x1 = lax.dot_general(
        w1_ref[...], x_ref[...],
        dimension_numbers=(((1,), (1,)), ((), ())),
        preferred_element_type=jnp.float32) + b1_ref[...]            # (33, TB)
    x1 = _gelu_exact(x1)                       # dropout == identity at eval

    # ---- fused Q/K/V projection (single MXU push) ---------------------------
    qkv = jnp.dot(wqkv_ref[...], x1, preferred_element_type=jnp.float32)  # (16, TB)
    q = qkv[0:4]                    # rows: q_h0d0, q_h0d1, q_h1d0, q_h1d1
    kd = qkv[4:6] - qkv[6:8]        # k_h0 - k_h1 per dk dim            (2, TB)
    v0 = qkv[8:12]                  # head-0 values                     (4, TB)
    v1 = qkv[12:16]                 # head-1 values                     (4, TB)

    # ---- multi-head self attention (nh=2, dk=2, dv=4) ------------------------
    # 2-way softmax over keys j == sigmoid of the logit difference (exact):
    #   s_h = <q_h, k0 - k1> / sqrt(dk);  p_h0 = sigmoid(s_h);  p_h1 = 1 - p_h0
    t0 = q[0:2] * kd
    t1 = q[2:4] * kd
    p0 = _sigmoid((t0[0:1] + t0[1:2]) * INV_SQRT2)        # (1, TB)
    p1 = _sigmoid((t1[0:1] + t1[1:2]) * INV_SQRT2)        # (1, TB)

    vd = v0 - v1
    att0 = v1 + p0 * vd             # att[:, 0, :]                      (4, TB)
    att1 = v1 + p1 * vd             # att[:, 1, :]                      (4, TB)

    # ---- gelu + fc5 ----------------------------------------------------------
    # torch's att.transpose(1,2).reshape head interleave is folded into the
    # pre-sliced weights (w5a = w5[:, 0::2], w5b = w5[:, 1::2]); no concat.
    x3 = (jnp.dot(w5a_ref[...], _gelu_exact(att0), preferred_element_type=jnp.float32)
          + jnp.dot(w5b_ref[...], _gelu_exact(att1), preferred_element_type=jnp.float32)
          + b5_ref[...])                                              # (2, TB)

    # ---- final 2-class softmax via the same exact sigmoid identity -----------
    p = _sigmoid(x3[0:1] - x3[1:2])
    out_ref[0:1, :] = p
    out_ref[1:2, :] = 1.0 - p


def transformer_forward(x, params, tile_b=2048):
    """Layout plumbing in plain JAX, all compute in one Pallas kernel.

    tile_b: batch-block width on the lane axis.  Sweep 2048-8192 for large
    batches; on v7x (64 MiB physical VMEM) keep it <= ~8K.  It is auto-clamped
    to a multiple of 128, never wider than the padded batch, and small enough
    to give >= 2 grid blocks when the batch allows it (so the "parallel" axis
    can shard across v7x's two TensorCores).
    """
    w1, b1, wq, wk, wv, w5, b5 = (params["w1"], params["b1"], params["wq"],
                                  params["wk"], params["wv"], params["w5"],
                                  params["b5"])
    batch, n_input = x.shape

    # ---- one-time parameter prep --------------------------------------------
    wqkv = jnp.concatenate([wq, wk, wv], axis=0)          # (16, 33)
    w5a = w5[:, 0::2]                                     # (2, 4) -> gelu(att[:,0,:])
    w5b = w5[:, 1::2]                                     # (2, 4) -> gelu(att[:,1,:])
    b1_col = b1.reshape(-1, 1)                            # (33, 1)
    b5_col = b5.reshape(-1, 1)                            # (2, 1)

    # ---- batch tiling --------------------------------------------------------
    def _rup(v, m):
        return -(-v // m) * m

    tile_b = max(128, (int(tile_b) // 128) * 128)
    tile_b = min(tile_b, _rup(batch, 128))                # never wider than batch
    if batch > 128:
        tile_b = min(tile_b, _rup(pl.cdiv(batch, 2), 128))  # >= 2 blocks (v7x)
    n_blocks = pl.cdiv(batch, tile_b)
    b_pad = n_blocks * tile_b
    x_p = x if b_pad == batch else jnp.pad(x, ((0, b_pad - batch), (0, 0)))

    # ~2.5 KiB VMEM per batch element (double-buffered lane-padded x block,
    # (33,TB) activation + temps).  Keep >= default scoped budget, cap with
    # v5e/v6e headroom; at the default/capped tile sizes this stays well under
    # v7x's 64 MiB physical VMEM.
    vmem_limit = int(min(96 * 1024 * 1024,
                         max(32 * 1024 * 1024, 2560 * tile_b)))

    # Resident weights/biases: constant index_map -> fetched once.  They total
    # ~3 KiB, so reclaiming their second pipeline buffer (pl.Buffered(1)) is
    # not worth the knob; default double-buffering is kept.
    full = lambda a: pl.BlockSpec(a.shape, lambda i: (0, 0))

    out_t = pl.pallas_call(
        transformer_kernel,
        out_shape=jax.ShapeDtypeStruct((2, b_pad), jnp.float32),
        grid_spec=pltpu.PrefetchScalarGridSpec(
            num_scalar_prefetch=0,
            grid=(n_blocks,),
            in_specs=[
                pl.BlockSpec((tile_b, n_input), lambda i: (i, 0)),  # x, natural layout
                full(w1), full(b1_col), full(wqkv),
                full(w5a), full(w5b), full(b5_col),
            ],
            out_specs=pl.BlockSpec((2, tile_b), lambda i: (0, i)),
        ),
        compiler_params=pltpu.CompilerParams(
            dimension_semantics=("parallel",),          # shard blocks on v7x's 2 TCs
            vmem_limit_bytes=vmem_limit),
    )(x_p, w1, b1_col, wqkv, w5a, w5b, b5_col)

    return out_t[:, :batch].T                            # (B, 2)


def reference_forward(x, params):
    """Pure-JAX reference mirroring the PyTorch module literally."""
    w1, b1, wq, wk, wv, w5, b5 = (params["w1"], params["b1"], params["wq"],
                                  params["wk"], params["wv"], params["w5"],
                                  params["b5"])
    batch = x.shape[0]
    x1 = jax.nn.gelu(x @ w1.T + b1, approximate=False)
    q = (x1 @ wq.T).reshape(batch, 2, 2)
    k = (x1 @ wk.T).reshape(batch, 2, 2)
    v = (x1 @ wv.T).reshape(batch, 2, 4)
    dist = jnp.einsum("bid,bjd->bij", q, k) * INV_SQRT2
    dist = jax.nn.softmax(dist, axis=-1)
    att = jnp.einsum("bij,bjd->bid", dist, v)
    x2 = jnp.transpose(att, (0, 2, 1)).reshape(batch, 8)
    x2 = jax.nn.gelu(x2, approximate=False)
    x3 = x2 @ w5.T + b5
    return jax.nn.softmax(x3, axis=1)


def init_params(key, n_input):
    """Deterministic synthetic init (uniform, torch-Linear-like ranges)."""
    ks = jax.random.split(key, 7)
    n_hidden = 33

    def unif(k, shape, fan_in):
        bound = 1.0 / math.sqrt(fan_in)
        return jax.random.uniform(k, shape, jnp.float32, -bound, bound)

    return {
        "w1": unif(ks[0], (n_hidden, n_input), n_input),
        "b1": unif(ks[1], (n_hidden,), n_input),
        "wq": unif(ks[2], (4, n_hidden), n_hidden),
        "wk": unif(ks[3], (4, n_hidden), n_hidden),
        "wv": unif(ks[4], (8, n_hidden), n_hidden),
        "w5": unif(ks[5], (2, 8), 8),
        "b5": unif(ks[6], (2,), 8),
    }


if __name__ == "__main__":
    key = jax.random.PRNGKey(0)
    k_x, k_p = jax.random.split(key)

    # Ragged vs. the tile width: exercises padding AND >= 2 grid blocks.
    batch, n_input = 2500, 16
    x = jax.random.normal(k_x, (batch, n_input), jnp.float32)
    params = init_params(k_p, n_input)

    # jit the whole wrapper so the (rare) pad and the tiny output transpose
    # fuse with neighbouring ops instead of standalone HBM passes.
    fwd = jax.jit(transformer_forward, static_argnames=("tile_b",))
    out = jax.block_until_ready(fwd(x, params))

    ref = reference_forward(x, params)
    assert out.shape == (batch, 2)
    assert jnp.allclose(out, ref, atol=1e-5, rtol=1e-5), (
        float(jnp.max(jnp.abs(out - ref))))

    print("KERNEL_OK")
</pallas_src>

<mosaic_0001>
module attributes {stable_mosaic.version = 11 : i64} {
  func.func @transformer_kernel(%arg0: i32, %arg1: memref<1280x16xf32, #tpu.memory_space<vmem>>, %arg2: memref<33x16xf32, #tpu.memory_space<vmem>>, %arg3: memref<33x1xf32, #tpu.memory_space<vmem>>, %arg4: memref<16x33xf32, #tpu.memory_space<vmem>>, %arg5: memref<2x4xf32, #tpu.memory_space<vmem>>, %arg6: memref<2x4xf32, #tpu.memory_space<vmem>>, %arg7: memref<2x1xf32, #tpu.memory_space<vmem>>, %arg8: memref<2x1280xf32, #tpu.memory_space<vmem>>) attributes {dimension_semantics = [#tpu.dimension_semantics<parallel>], iteration_bounds = array<i64: 2>, scalar_prefetch = 0 : i64, scratch_operands = 0 : i64, tpu.core_type = #tpu.core_type<tc>, window_params = [{transform_indices = @transform_0, window_bounds = array<i64: 1280, 16>}, {pipeline_mode = #tpu.pipeline_mode<synchronous>, transform_indices = @transform_1, window_bounds = array<i64: 33, 16>}, {pipeline_mode = #tpu.pipeline_mode<synchronous>, transform_indices = @transform_2, window_bounds = array<i64: 33, 1>}, {pipeline_mode = #tpu.pipeline_mode<synchronous>, transform_indices = @transform_3, window_bounds = array<i64: 16, 33>}, {pipeline_mode = #tpu.pipeline_mode<synchronous>, transform_indices = @transform_4, window_bounds = array<i64: 2, 4>}, {pipeline_mode = #tpu.pipeline_mode<synchronous>, transform_indices = @transform_5, window_bounds = array<i64: 2, 4>}, {pipeline_mode = #tpu.pipeline_mode<synchronous>, transform_indices = @transform_6, window_bounds = array<i64: 2, 1>}, {transform_indices = @transform_7, window_bounds = array<i64: 2, 1280>}]} {
    %c0 = arith.constant 0 : index
    %c0_0 = arith.constant 0 : index
    %0 = vector.load %arg2[%c0, %c0_0] : memref<33x16xf32, #tpu.memory_space<vmem>>, vector<33x16xf32>
    %c0_1 = arith.constant 0 : index
    %c0_2 = arith.constant 0 : index
    %1 = vector.load %arg1[%c0_1, %c0_2] : memref<1280x16xf32, #tpu.memory_space<vmem>>, vector<1280x16xf32>
    %cst = arith.constant dense<0.000000e+00> : vector<33x1280xf32>
    %2 = tpu.matmul %0, %1, %cst {dimension_numbers = #tpu.dot_dimension_numbers<[1], [1], [0], [0], [0, 0, 1, 0], [], []>} : vector<33x16xf32>, vector<1280x16xf32>, vector<33x1280xf32> -> vector<33x1280xf32>
    %c0_3 = arith.constant 0 : index
    %c0_4 = arith.constant 0 : index
    %3 = vector.load %arg3[%c0_3, %c0_4] : memref<33x1xf32, #tpu.memory_space<vmem>>, vector<33x1xf32>
    %4 = vector.broadcast %3 : vector<33x1xf32> to vector<33x1280xf32>
    %5 = arith.addf %2, %4 : vector<33x1280xf32>
    %cst_5 = arith.constant 5.000000e-01 : f32
    %6 = vector.broadcast %cst_5 : f32 to vector<33x1280xf32>
    %7 = arith.mulf %6, %5 : vector<33x1280xf32>
    %cst_6 = arith.constant 0.707106769 : f32
    %8 = vector.broadcast %cst_6 : f32 to vector<33x1280xf32>
    %9 = arith.mulf %5, %8 : vector<33x1280xf32>
    %10 = math.erf %9 : vector<33x1280xf32>
    %cst_7 = arith.constant 1.000000e+00 : f32
    %11 = vector.broadcast %cst_7 : f32 to vector<33x1280xf32>
    %12 = arith.addf %11, %10 : vector<33x1280xf32>
    %13 = arith.mulf %7, %12 : vector<33x1280xf32>
    %c0_8 = arith.constant 0 : index
    %c0_9 = arith.constant 0 : index
    %14 = vector.load %arg4[%c0_8, %c0_9] : memref<16x33xf32, #tpu.memory_space<vmem>>, vector<16x33xf32>
    %cst_10 = arith.constant dense<0.000000e+00> : vector<16x1280xf32>
    %15 = tpu.matmul %14, %13, %cst_10 {dimension_numbers = #tpu.dot_dimension_numbers<[1], [0], [0], [1], [0, 0, 1, 1], [], []>} : vector<16x33xf32>, vector<33x1280xf32>, vector<16x1280xf32> -> vector<16x1280xf32>
    %16 = vector.extract_strided_slice %15 {offsets = [0, 0], sizes = [4, 1280], strides = [1, 1]} : vector<16x1280xf32> to vector<4x1280xf32>
    %17 = vector.extract_strided_slice %15 {offsets = [4, 0], sizes = [2, 1280], strides = [1, 1]} : vector<16x1280xf32> to vector<2x1280xf32>
    %18 = vector.extract_strided_slice %15 {offsets = [6, 0], sizes = [2, 1280], strides = [1, 1]} : vector<16x1280xf32> to vector<2x1280xf32>
    %19 = arith.subf %17, %18 : vector<2x1280xf32>
    %20 = vector.extract_strided_slice %15 {offsets = [8, 0], sizes = [4, 1280], strides = [1, 1]} : vector<16x1280xf32> to vector<4x1280xf32>
    %21 = vector.extract_strided_slice %15 {offsets = [12, 0], sizes = [4, 1280], strides = [1, 1]} : vector<16x1280xf32> to vector<4x1280xf32>
    %22 = vector.extract_strided_slice %16 {offsets = [0, 0], sizes = [2, 1280], strides = [1, 1]} : vector<4x1280xf32> to vector<2x1280xf32>
    %23 = arith.mulf %22, %19 : vector<2x1280xf32>
    %24 = vector.extract_strided_slice %16 {offsets = [2, 0], sizes = [2, 1280], strides = [1, 1]} : vector<4x1280xf32> to vector<2x1280xf32>
    %25 = arith.mulf %24, %19 : vector<2x1280xf32>
    %26 = vector.extract_strided_slice %23 {offsets = [0, 0], sizes = [1, 1280], strides = [1, 1]} : vector<2x1280xf32> to vector<1x1280xf32>
    %27 = vector.extract_strided_slice %23 {offsets = [1, 0], sizes = [1, 1280], strides = [1, 1]} : vector<2x1280xf32> to vector<1x1280xf32>
    %28 = arith.addf %26, %27 : vector<1x1280xf32>
    %cst_11 = arith.constant 0.707106769 : f32
    %29 = vector.broadcast %cst_11 : f32 to vector<1x1280xf32>
    %30 = arith.mulf %28, %29 : vector<1x1280xf32>
    %cst_12 = arith.constant 0.000000e+00 : f32
    %31 = vector.broadcast %cst_12 : f32 to vector<1x1280xf32>
    %32 = arith.subf %31, %30 : vector<1x1280xf32>
    %33 = math.exp %32 : vector<1x1280xf32>
    %cst_13 = arith.constant 1.000000e+00 : f32
    %34 = vector.broadcast %cst_13 : f32 to vector<1x1280xf32>
    %35 = arith.addf %34, %33 : vector<1x1280xf32>
    %36 = tpu.reciprocal %35 : vector<1x1280xf32> -> vector<1x1280xf32>
    %37 = vector.extract_strided_slice %25 {offsets = [0, 0], sizes = [1, 1280], strides = [1, 1]} : vector<2x1280xf32> to vector<1x1280xf32>
    %38 = vector.extract_strided_slice %25 {offsets = [1, 0], sizes = [1, 1280], strides = [1, 1]} : vector<2x1280xf32> to vector<1x1280xf32>
    %39 = arith.addf %37, %38 : vector<1x1280xf32>
    %cst_14 = arith.constant 0.707106769 : f32
    %40 = vector.broadcast %cst_14 : f32 to vector<1x1280xf32>
    %41 = arith.mulf %39, %40 : vector<1x1280xf32>
    %cst_15 = arith.constant 0.000000e+00 : f32
    %42 = vector.broadcast %cst_15 : f32 to vector<1x1280xf32>
    %43 = arith.subf %42, %41 : vector<1x1280xf32>
    %44 = math.exp %43 : vector<1x1280xf32>
    %cst_16 = arith.constant 1.000000e+00 : f32
    %45 = vector.broadcast %cst_16 : f32 to vector<1x1280xf32>
    %46 = arith.addf %45, %44 : vector<1x1280xf32>
    %47 = tpu.reciprocal %46 : vector<1x1280xf32> -> vector<1x1280xf32>
    %48 = arith.subf %20, %21 : vector<4x1280xf32>
    %49 = vector.broadcast %36 : vector<1x1280xf32> to vector<4x1280xf32>
    %50 = arith.mulf %49, %48 : vector<4x1280xf32>
    %51 = arith.addf %21, %50 : vector<4x1280xf32>
    %52 = vector.broadcast %47 : vector<1x1280xf32> to vector<4x1280xf32>
    %53 = arith.mulf %52, %48 : vector<4x1280xf32>
    %54 = arith.addf %21, %53 : vector<4x1280xf32>
    %c0_17 = arith.constant 0 : index
    %c0_18 = arith.constant 0 : index
    %55 = vector.load %arg5[%c0_17, %c0_18] : memref<2x4xf32, #tpu.memory_space<vmem>>, vector<2x4xf32>
    %cst_19 = arith.constant 5.000000e-01 : f32
    %56 = vector.broadcast %cst_19 : f32 to vector<4x1280xf32>
    %57 = arith.mulf %56, %51 : vector<4x1280xf32>
    %cst_20 = arith.constant 0.707106769 : f32
    %58 = vector.broadcast %cst_20 : f32 to vector<4x1280xf32>
    %59 = arith.mulf %51, %58 : vector<4x1280xf32>
    %60 = math.erf %59 : vector<4x1280xf32>
    %cst_21 = arith.constant 1.000000e+00 : f32
    %61 = vector.broadcast %cst_21 : f32 to vector<4x1280xf32>
    %62 = arith.addf %61, %60 : vector<4x1280xf32>
    %63 = arith.mulf %57, %62 : vector<4x1280xf32>
    %cst_22 = arith.constant dense<0.000000e+00> : vector<2x1280xf32>
    %64 = tpu.matmul %55, %63, %cst_22 {dimension_numbers = #tpu.dot_dimension_numbers<[1], [0], [0], [1], [0, 0, 1, 1], [], []>} : vector<2x4xf32>, vector<4x1280xf32>, vector<2x1280xf32> -> vector<2x1280xf32>
    %c0_23 = arith.constant 0 : index
    %c0_24 = arith.constant 0 : index
    %65 = vector.load %arg6[%c0_23, %c0_24] : memref<2x4xf32, #tpu.memory_space<vmem>>, vector<2x4xf32>
    %cst_25 = arith.constant 5.000000e-01 : f32
    %66 = vector.broadcast %cst_25 : f32 to vector<4x1280xf32>
    %67 = arith.mulf %66, %54 : vector<4x1280xf32>
    %cst_26 = arith.constant 0.707106769 : f32
    %68 = vector.broadcast %cst_26 : f32 to vector<4x1280xf32>
    %69 = arith.mulf %54, %68 : vector<4x1280xf32>
    %70 = math.erf %69 : vector<4x1280xf32>
    %cst_27 = arith.constant 1.000000e+00 : f32
    %71 = vector.broadcast %cst_27 : f32 to vector<4x1280xf32>
    %72 = arith.addf %71, %70 : vector<4x1280xf32>
    %73 = arith.mulf %67, %72 : vector<4x1280xf32>
    %cst_28 = arith.constant dense<0.000000e+00> : vector<2x1280xf32>
    %74 = tpu.matmul %65, %73, %cst_28 {dimension_numbers = #tpu.dot_dimension_numbers<[1], [0], [0], [1], [0, 0, 1, 1], [], []>} : vector<2x4xf32>, vector<4x1280xf32>, vector<2x1280xf32> -> vector<2x1280xf32>
    %75 = arith.addf %64, %74 : vector<2x1280xf32>
    %c0_29 = arith.constant 0 : index
    %c0_30 = arith.constant 0 : index
    %76 = vector.load %arg7[%c0_29, %c0_30] : memref<2x1xf32, #tpu.memory_space<vmem>>, vector<2x1xf32>
    %77 = vector.broadcast %76 : vector<2x1xf32> to vector<2x1280xf32>
    %78 = arith.addf %75, %77 : vector<2x1280xf32>
    %79 = vector.extract_strided_slice %78 {offsets = [0, 0], sizes = [1, 1280], strides = [1, 1]} : vector<2x1280xf32> to vector<1x1280xf32>
    %80 = vector.extract_strided_slice %78 {offsets = [1, 0], sizes = [1, 1280], strides = [1, 1]} : vector<2x1280xf32> to vector<1x1280xf32>
    %81 = arith.subf %79, %80 : vector<1x1280xf32>
    %cst_31 = arith.constant 0.000000e+00 : f32
    %82 = vector.broadcast %cst_31 : f32 to vector<1x1280xf32>
    %83 = arith.subf %82, %81 : vector<1x1280xf32>
    %84 = math.exp %83 : vector<1x1280xf32>
    %cst_32 = arith.constant 1.000000e+00 : f32
    %85 = vector.broadcast %cst_32 : f32 to vector<1x1280xf32>
    %86 = arith.addf %85, %84 : vector<1x1280xf32>
    %87 = tpu.reciprocal %86 : vector<1x1280xf32> -> vector<1x1280xf32>
    %c0_33 = arith.constant 0 : index
    %c0_34 = arith.constant 0 : index
    %88 = vector.load %arg8[%c0_33, %c0_34] : memref<2x1280xf32, #tpu.memory_space<vmem>>, vector<1x1280xf32>
    tpu.vector_store %arg8[%c0_33, %c0_34], %87 {strides = array<i32>} : memref<2x1280xf32, #tpu.memory_space<vmem>>, vector<1x1280xf32>,
    %cst_35 = arith.constant 1.000000e+00 : f32
    %89 = vector.broadcast %cst_35 : f32 to vector<1x1280xf32>
    %90 = arith.subf %89, %87 : vector<1x1280xf32>
    %c1 = arith.constant 1 : index
    %c0_36 = arith.constant 0 : index
    %91 = vector.load %arg8[%c1, %c0_36] : memref<2x1280xf32, #tpu.memory_space<vmem>>, vector<1x1280xf32>
    tpu.vector_store %arg8[%c1, %c0_36], %90 {strides = array<i32>} : memref<2x1280xf32, #tpu.memory_space<vmem>>, vector<1x1280xf32>,
    return
  }
  func.func @transform_0(%arg0: i32) -> (i32, i32) {
    %c0_i32 = arith.constant 0 : i32
    %c0_i32_0 = arith.constant 0 : i32
    return %arg0, %c0_i32 : i32, i32
  }
  func.func @transform_1(%arg0: i32) -> (i32, i32) {
    %c0_i32 = arith.constant 0 : i32
    %c0_i32_0 = arith.constant 0 : i32
    %c0_i32_1 = arith.constant 0 : i32
    return %c0_i32, %c0_i32_0 : i32, i32
  }
  func.func @transform_2(%arg0: i32) -> (i32, i32) {
    %c0_i32 = arith.constant 0 : i32
    %c0_i32_0 = arith.constant 0 : i32
    %c0_i32_1 = arith.constant 0 : i32
    return %c0_i32, %c0_i32_0 : i32, i32
  }
  func.func @transform_3(%arg0: i32) -> (i32, i32) {
    %c0_i32 = arith.constant 0 : i32
    %c0_i32_0 = arith.constant 0 : i32
    %c0_i32_1 = arith.constant 0 : i32
    return %c0_i32, %c0_i32_0 : i32, i32
  }
  func.func @transform_4(%arg0: i32) -> (i32, i32) {
    %c0_i32 = arith.constant 0 : i32
    %c0_i32_0 = arith.constant 0 : i32
    %c0_i32_1 = arith.constant 0 : i32
    return %c0_i32, %c0_i32_0 : i32, i32
  }
  func.func @transform_5(%arg0: i32) -> (i32, i32) {
    %c0_i32 = arith.constant 0 : i32
    %c0_i32_0 = arith.constant 0 : i32
    %c0_i32_1 = arith.constant 0 : i32
    return %c0_i32, %c0_i32_0 : i32, i32
  }
  func.func @transform_6(%arg0: i32) -> (i32, i32) {
    %c0_i32 = arith.constant 0 : i32
    %c0_i32_0 = arith.constant 0 : i32
    %c0_i32_1 = arith.constant 0 : i32
    return %c0_i32, %c0_i32_0 : i32, i32
  }
  func.func @transform_7(%arg0: i32) -> (i32, i32) {
    %c0_i32 = arith.constant 0 : i32
    %c0_i32_0 = arith.constant 0 : i32
    return %c0_i32, %arg0 : i32, i32
  }
}

</mosaic_0001>

<llo_original>
// kernel: transformer_forward.1
$region0: #{transformer_forward.1}
  #allocation0 [shape = 'u32[]', space=smem, size = 0x4, offset = 0x4, fixed_abs, tag = 'smem constant byte address 0x4 - core index']
  #allocation1 [shape = 'u32[144,128]{1,0:T(1,128)}', space=vmem, size = 0x12000, scoped, tag = 'internal scratch']
  %s0 = inlined_call_operand.vmem [shape: f32[2560,16], index: 0, kind: input, shape index: {}]
  %s1 = inlined_call_operand.vmem [shape: f32[33,16], index: 1, kind: input, shape index: {}]
  %s2 = inlined_call_operand.vmem [shape: f32[33,1], index: 2, kind: input, shape index: {}]
  %s3 = inlined_call_operand.vmem [shape: f32[16,33], index: 3, kind: input, shape index: {}]
  %s4 = inlined_call_operand.vmem [shape: f32[2,4], index: 4, kind: input, shape index: {}]
  %s5 = inlined_call_operand.vmem [shape: f32[2,4], index: 5, kind: input, shape index: {}]
  %s6 = inlined_call_operand.vmem [shape: f32[2,1], index: 6, kind: input, shape index: {}]
  %s7 = inlined_call_operand.vmem [shape: f32[2,2560], index: 7, kind: output, shape index: {}]
  %s8 = sld [smem:[#allocation0]]
  $region61: #{transformer_forward.1} parent=0
    _
  %s10 = ssub.s32 1, %s8
  %s11 = scalar_select 0, %s10, %s8
  loop: start=0, step=1, limit=4
  $region2: #{transformer_forward.1} parent=0 // loop_pre_header
    _
  $region3: #{transformer_forward.1} parent=0 // loop_header
    %s13 = sphi 0, %s17
    %p14 = scmp.ge.s32.totalorder %s13, 4
    %s23 = sphi 0, %s25
    %s26 = sphi 0, %s23
    %s27 = sphi 0, %s26
    %s43 = sphi 0, %s27
    %s47 = sphi 0, %s47
    %s49 = sphi 0, %s47
    %s50 = sphi 0, %s49
    %s64 = sphi 0, %s50
    %s68 = sphi 0, %s68
    %s70 = sphi 0, %s68
    %s71 = sphi 0, %s70
    %s85 = sphi 0, %s71
    %s89 = sphi 0, %s89
    %s91 = sphi 0, %s89
    %s92 = sphi 0, %s91
    %s106 = sphi 0, %s92
    %s110 = sphi 0, %s110
    %s112 = sphi 0, %s110
    %s113 = sphi 0, %s112
    %s127 = sphi 0, %s113
    %s131 = sphi 0, %s131
    %s133 = sphi 0, %s131
    %s134 = sphi 0, %s133
    %s148 = sphi 0, %s134
    %s152 = sphi 0, %s152
    %s154 = sphi 0, %s152
    %s155 = sphi 0, %s154
    %s169 = sphi 0, %s155
    %s175 = sphi 0, %s177
    %s178 = sphi 0, %s175
    %s179 = sphi 0, %s178
    %s195 = sphi 0, %s179
  $region4: #{transformer_forward.1} parent=0 // loop_header_branch
    %16 = sbr.rel (%p14) target = $region8
  $region5: #{transformer_forward.1} parent=0 // loop_body
    %s18 = ssub.s32 %s13, 1
    %s19 = ssub.s32 %s13, 2
    %s20 = sadd.s32 %s13, 1
    %s21 = ssub.s32 %s13, %s20
    %p22 = scmp.eq.s32.totalorder %s21, 0
    %s24 = sadd.s32 %s23, 1
    %s25 = scalar_select %p22, %s23, %s24
    %p28 = pneg %p22
    %p29 = scmp.eq.s32.totalorder %s13, 1
    %p30 = por %p28, %p29
    %p31 = scmp.ne.s32.totalorder %s23, %s26
    %p32 = scmp.eq.s32.totalorder %s13, 0
    %p33 = por %p31, %p32
    %p34 = scmp.ne.s32.totalorder %s23, %s26
    %p35 = scmp.eq.s32.totalorder %s18, 1
    %p36 = por %p34, %p35
    %p37 = scmp.ne.s32.totalorder %s26, %s27
    %p38 = scmp.eq.s32.totalorder %s18, 0
    %p39 = por %p37, %p38
    %p40 = scmp.ne.s32.totalorder %s26, %s27
    %p41 = scmp.eq.s32.totalorder %s19, 1
    %p42 = por %p40, %p41
    %p44 = scmp.ne.s32.totalorder %s27, %s43
    %p45 = scmp.eq.s32.totalorder %s19, 0
    %p46 = por %p44, %p45
    %s48 = sadd.s32 %s47, 1
    %p51 = scmp.eq.s32.totalorder %s13, 1
    %p52 = scmp.ne.s32.totalorder %s47, %s49
    %p53 = scmp.eq.s32.totalorder %s13, 0
    %p54 = por %p52, %p53
    %p55 = scmp.ne.s32.totalorder %s47, %s49
    %p56 = scmp.eq.s32.totalorder %s18, 1
    %p57 = por %p55, %p56
    %p58 = scmp.ne.s32.totalorder %s49, %s50
    %p59 = scmp.eq.s32.totalorder %s18, 0
    %p60 = por %p58, %p59
    %p61 = scmp.ne.s32.totalorder %s49, %s50
    %p62 = scmp.eq.s32.totalorder %s19, 1
    %p63 = por %p61, %p62
    %p65 = scmp.ne.s32.totalorder %s50, %s64
    %p66 = scmp.eq.s32.totalorder %s19, 0
    %p67 = por %p65, %p66
    %s69 = sadd.s32 %s68, 1
    %p72 = scmp.eq.s32.totalorder %s13, 1
    %p73 = scmp.ne.s32.totalorder %s68, %s70
    %p74 = scmp.eq.s32.totalorder %s13, 0
    %p75 = por %p73, %p74
    %p76 = scmp.ne.s32.totalorder %s68, %s70
    %p77 = scmp.eq.s32.totalorder %s18, 1
    %p78 = por %p76, %p77
    %p79 = scmp.ne.s32.totalorder %s70, %s71
    %p80 = scmp.eq.s32.totalorder %s18, 0
    %p81 = por %p79, %p80
    %p82 = scmp.ne.s32.totalorder %s70, %s71
    %p83 = scmp.eq.s32.totalorder %s19, 1
    %p84 = por %p82, %p83
    %p86 = scmp.ne.s32.totalorder %s71, %s85
    %p87 = scmp.eq.s32.totalorder %s19, 0
    %p88 = por %p86, %p87
    %s90 = sadd.s32 %s89, 1
    %p93 = scmp.eq.s32.totalorder %s13, 1
    %p94 = scmp.ne.s32.totalorder %s89, %s91
    %p95 = scmp.eq.s32.totalorder %s13, 0
    %p96 = por %p94, %p95
    %p97 = scmp.ne.s32.totalorder %s89, %s91
    %p98 = scmp.eq.s32.totalorder %s18, 1
    %p99 = por %p97, %p98
    %p100 = scmp.ne.s32.totalorder %s91, %s92
    %p101 = scmp.eq.s32.totalorder %s18, 0
    %p102 = por %p100, %p101
    %p103 = scmp.ne.s32.totalorder %s91, %s92
    %p104 = scmp.eq.s32.totalorder %s19, 1
    %p105 = por %p103, %p104
    %p107 = scmp.ne.s32.totalorder %s92, %s106
    %p108 = scmp.eq.s32.totalorder %s19, 0
    %p109 = por %p107, %p108
    %s111 = sadd.s32 %s110, 1
    %p114 = scmp.eq.s32.totalorder %s13, 1
    %p115 = scmp.ne.s32.totalorder %s110, %s112
    %p116 = scmp.eq.s32.totalorder %s13, 0
    %p117 = por %p115, %p116
    %p118 = scmp.ne.s32.totalorder %s110, %s112
    %p119 = scmp.eq.s32.totalorder %s18, 1
    %p120 = por %p118, %p119
    %p121 = scmp.ne.s32.totalorder %s112, %s113
    %p122 = scmp.eq.s32.totalorder %s18, 0
    %p123 = por %p121, %p122
    %p124 = scmp.ne.s32.totalorder %s112, %s113
    %p125 = scmp.eq.s32.totalorder %s19, 1
    %p126 = por %p124, %p125
    %p128 = scmp.ne.s32.totalorder %s113, %s127
    %p129 = scmp.eq.s32.totalorder %s19, 0
    %p130 = por %p128, %p129
    %s132 = sadd.s32 %s131, 1
    %p135 = scmp.eq.s32.totalorder %s13, 1
    %p136 = scmp.ne.s32.totalorder %s131, %s133
    %p137 = scmp.eq.s32.totalorder %s13, 0
    %p138 = por %p136, %p137
    %p139 = scmp.ne.s32.totalorder %s131, %s133
    %p140 = scmp.eq.s32.totalorder %s18, 1
    %p141 = por %p139, %p140
    %p142 = scmp.ne.s32.totalorder %s133, %s134
    %p143 = scmp.eq.s32.totalorder %s18, 0
    %p144 = por %p142, %p143
    %p145 = scmp.ne.s32.totalorder %s133, %s134
    %p146 = scmp.eq.s32.totalorder %s19, 1
    %p147 = por %p145, %p146
    %p149 = scmp.ne.s32.totalorder %s134, %s148
    %p150 = scmp.eq.s32.totalorder %s19, 0
    %p151 = por %p149, %p150
    %s153 = sadd.s32 %s152, 1
    %p156 = scmp.eq.s32.totalorder %s13, 1
    %p157 = scmp.ne.s32.totalorder %s152, %s154
    %p158 = scmp.eq.s32.totalorder %s13, 0
    %p159 = por %p157, %p158
    %p160 = scmp.ne.s32.totalorder %s152, %s154
    %p161 = scmp.eq.s32.totalorder %s18, 1
    %p162 = por %p160, %p161
    %p163 = scmp.ne.s32.totalorder %s154, %s155
    %p164 = scmp.eq.s32.totalorder %s18, 0
    %p165 = por %p163, %p164
    %p166 = scmp.ne.s32.totalorder %s154, %s155
    %p167 = scmp.eq.s32.totalorder %s19, 1
    %p168 = por %p166, %p167
    %p170 = scmp.ne.s32.totalorder %s155, %s169
    %p171 = scmp.eq.s32.totalorder %s19, 0
    %p172 = por %p170, %p171
    %s173 = ssub.s32 %s13, %s20
    %p174 = scmp.eq.s32.totalorder %s173, 0
    %s176 = sadd.s32 %s175, 1
    %s177 = scalar_select %p174, %s175, %s176
    %p180 = pneg %p174
    %p181 = scmp.eq.s32.totalorder %s13, 1
    %p182 = por %p180, %p181
    %p183 = scmp.ne.s32.totalorder %s175, %s178
    %p184 = scmp.eq.s32.totalorder %s13, 0
    %p185 = por %p183, %p184
    %p186 = scmp.ne.s32.totalorder %s175, %s178
    %p187 = scmp.eq.s32.totalorder %s18, 1
    %p188 = por %p186, %p187
    %p189 = scmp.ne.s32.totalorder %s178, %s179
    %p190 = scmp.eq.s32.totalorder %s18, 0
    %p191 = por %p189, %p190
    %p192 = scmp.ne.s32.totalorder %s178, %s179
    %p193 = scmp.eq.s32.totalorder %s19, 1
    %p194 = por %p192, %p193
    %p196 = scmp.ne.s32.totalorder %s179, %s195
    %p197 = scmp.eq.s32.totalorder %s19, 0
    %p198 = por %p196, %p197
    %p199 = scmp.le.s32.totalorder 1, %s13
    %p200 = scmp.lt.s32.totalorder %s13, 3
    %p201 = pnand %p199, %p200
    %p202 = pneg %p201
    // Predicated region
    $region9: #{transformer_forward.1} parent=5 // pred_check
      _
    $region10: #{transformer_forward.1} parent=5 // pred_check_branch
      %204 = sbr.rel (%p201) target = $region12
    $region11: #{transformer_forward.1} parent=5 // pred_region
      %s205 = ssub.s32 %s13, 1
      // Predicated region
      $region13: #{transformer_forward.1} parent=11 // pred_check
        %p206 = pneg %p60
      $region14: #{transformer_forward.1} parent=11 // pred_check_branch
        %208 = sbr.rel (%p206) target = $region16
      $region15: #{transformer_forward.1} parent=11 // pred_region
        _
      $region16: #{transformer_forward.1} parent=11 // pred_fallthru
        _
      // Predicated region
      $region17: #{transformer_forward.1} parent=11 // pred_check
        %p209 = pneg %p81
      $region18: #{transformer_forward.1} parent=11 // pred_check_branch
        %211 = sbr.rel (%p209) target = $region20
      $region19: #{transformer_forward.1} parent=11 // pred_region
        _
      $region20: #{transformer_forward.1} parent=11 // pred_fallthru
        _
      // Predicated region
      $region21: #{transformer_forward.1} parent=11 // pred_check
        %p212 = pneg %p102
      $region22: #{transformer_forward.1} parent=11 // pred_check_branch
        %214 = sbr.rel (%p212) target = $region24
      $region23: #{transformer_forward.1} parent=11 // pred_region
        _
      $region24: #{transformer_forward.1} parent=11 // pred_fallthru
        _
      // Predicated region
      $region25: #{transformer_forward.1} parent=11 // pred_check
        %p215 = pneg %p123
      $region26: #{transformer_forward.1} parent=11 // pred_check_branch
        %217 = sbr.rel (%p215) target = $region28
      $region27: #{transformer_forward.1} parent=11 // pred_region
        _
      $region28: #{transformer_forward.1} parent=11 // pred_fallthru
        _
      // Predicated region
      $region29: #{transformer_forward.1} parent=11 // pred_check
        %p218 = pneg %p144
      $region30: #{transformer_forward.1} parent=11 // pred_check_branch
        %220 = sbr.rel (%p218) target = $region32
      $region31: #{transformer_forward.1} parent=11 // pred_region
        _
      $region32: #{transformer_forward.1} parent=11 // pred_fallthru
        _
      // Predicated region
      $region33: #{transformer_forward.1} parent=11 // pred_check
        %p221 = pneg %p165
      $region34: #{transformer_forward.1} parent=11 // pred_check_branch
        %223 = sbr.rel (%p221) target = $region36
      $region35: #{transformer_forward.1} parent=11 // pred_region
        _
      $region36: #{transformer_forward.1} parent=11 // pred_fallthru
        _
    $region12: #{transformer_forward.1} parent=5 // pred_fallthru
      _
    %p224 = scmp.lt.s32.totalorder %s13, 2
    // Predicated region
    $region37: #{transformer_forward.1} parent=5 // pred_check
      %p225 = pneg %p224
    $region38: #{transformer_forward.1} parent=5 // pred_check_branch
      %227 = sbr.rel (%p225) target = $region40
    $region39: #{transformer_forward.1} parent=5 // pred_region
      // Predicated region
      $region41: #{transformer_forward.1} parent=39 // pred_check
        %p228 = pneg %p33
      $region42: #{transformer_forward.1} parent=39 // pred_check_branch
        %230 = sbr.rel (%p228) target = $region44
      $region43: #{transformer_forward.1} parent=39 // pred_region
        %s231 = smul.u32 160, %s13
        %p232 = scmp.lt.s32.totalorder %s231, 319
        %s233 = scalar_select %p232, %s231, 319
        %s234 = smul.addr %s233, 8
        %s235 = scalar_lea.vmem %s0, %s234
        %s236 = smul.u32 160, %s13
      $region44: #{transformer_forward.1} parent=39 // pred_fallthru
        _
    $region40: #{transformer_forward.1} parent=5 // pred_fallthru
      _
    %p237 = scmp.le.s32.totalorder 1, %s13
    %p238 = scmp.lt.s32.totalorder %s13, 3
    %p239 = pnand %p237, %p238
    %p240 = pneg %p239
    // Predicated region
    $region45: #{transformer_forward.1} parent=5 // pred_check
      _
    $region46: #{transformer_forward.1} parent=5 // pred_check_branch
      %242 = sbr.rel (%p239) target = $region48
    $region47: #{transformer_forward.1} parent=5 // pred_region
      %s243 = ssub.s32 %s13, 1
      %s244 = smul.u32 160, %s18
      %p245 = scmp.lt.s32.totalorder %s244, 319
      %s246 = scalar_select %p245, %s244, 319
      %s247 = smul.addr %s246, 8
      %s248 = scalar_lea.vmem %s0, %s247
      %p249 = pneg %p39
      %p250 = pneg %p36
      %p251 = pneg %p60
      %p252 = pneg %p57
      %p253 = pneg %p81
      %p254 = pneg %p78
      %p255 = pneg %p102
      %p256 = pneg %p99
      %p257 = pneg %p123
      %p258 = pneg %p120
      %p259 = pneg %p144
      %p260 = pneg %p141
      %p261 = pneg %p165
      %p262 = pneg %p162
      %p263 = pneg %p191
      %p264 = pneg %p188
      %s265 = smul.u32 10, %s18
      %p266 = scmp.lt.s32.totalorder %s265, 19
      %s267 = scalar_select %p266, %s265, 19
      %s268 = smul.addr %s267, 2
      %s269 = scalar_lea.vmem %s7, %s268
      %s270 = smul.u32 160, %s18
      %p271 = scmp.lt.s32.totalorder %s270, 319
      %s272 = scalar_select %p271, %s270, 319
      %s273 = smul.addr %s272, 8
      %s274 = scalar_lea.vmem %s0, %s273
      %s275 = smul.u32 160, %s18
      %s276 = smul.u32 10, %s18
      %p277 = scmp.lt.s32.totalorder %s276, 19
      %s278 = scalar_select %p277, %s276, 19
      %s279 = smul.addr %s278, 2
      %s280 = scalar_lea.vmem %s7, %s279
      %s281 = smul.u32 10, %s18
      %v282 = vld [vmem:[%s1] sm:$0xff]
      %v283 = vld [vmem:[%s1 + $0x8] sm:$0xff]
      %v284 = vld [vmem:[%s1 + $0x10] sm:$0xff]
      %v285 = vld [vmem:[%s1 + $0x18] sm:$0xff]
      %v286 = vld [vmem:[%s1 + $0x20] sm:$0x1]
      %v287 = vld [vmem:[%s274] sm:$0xff]
      %v288 = vld [vmem:[%s274 + $0x8] sm:$0xff]
      %v289 = vld [vmem:[%s274 + $0x10] sm:$0xff]
      %v290 = vld [vmem:[%s274 + $0x18] sm:$0xff]
      %v291 = vld [vmem:[%s274 + $0x20] sm:$0xff]
      %v292 = vld [vmem:[%s274 + $0x28] sm:$0xff]
      %v293 = vld [vmem:[%s274 + $0x30] sm:$0xff]
      %v294 = vld [vmem:[%s274 + $0x38] sm:$0xff]
      %v295 = vld [vmem:[%s274 + $0x40] sm:$0xff]
      %v296 = vld [vmem:[%s274 + $0x48] sm:$0xff]
      %v297 = vld [vmem:[%s274 + $0x50] sm:$0xff]
      %v298 = vld [vmem:[%s274 + $0x58] sm:$0xff]
      %v299 = vld [vmem:[%s274 + $0x60] sm:$0xff]
      %v300 = vld [vmem:[%s274 + $0x68] sm:$0xff]
      %v301 = vld [vmem:[%s274 + $0x70] sm:$0xff]
      %v302 = vld [vmem:[%s274 + $0x78] sm:$0xff]
      %v303 = vld [vmem:[%s274 + $0x80] sm:$0xff]
      %v304 = vld [vmem:[%s274 + $0x88] sm:$0xff]
      %v305 = vld [vmem:[%s274 + $0x90] sm:$0xff]
      %v306 = vld [vmem:[%s274 + $0x98] sm:$0xff]
      %v307 = vld [vmem:[%s274 + $0xa0] sm:$0xff]
      %v308 = vld [vmem:[%s274 + $0xa8] sm:$0xff]
      %v309 = vld [vmem:[%s274 + $0xb0] sm:$0xff]
      %v310 = vld [vmem:[%s274 + $0xb8] sm:$0xff]
      %v311 = vld [vmem:[%s274 + $0xc0] sm:$0xff]
      %v312 = vld [vmem:[%s274 + $0xc8] sm:$0xff]
      %v313 = vld [vmem:[%s274 + $0xd0] sm:$0xff]
      %v314 = vld [vmem:[%s274 + $0xd8] sm:$0xff]
      %v315 = vld [vmem:[%s274 + $0xe0] sm:$0xff]
      %v316 = vld [vmem:[%s274 + $0xe8] sm:$0xff]
      %v317 = vld [vmem:[%s274 + $0xf0] sm:$0xff]
      %v318 = vld [vmem:[%s274 + $0xf8] sm:$0xff]
      %v319 = vld [vmem:[%s274 + $0x100] sm:$0xff]
      %v320 = vld [vmem:[%s274 + $0x108] sm:$0xff]
      %v321 = vld [vmem:[%s274 + $0x110] sm:$0xff]
      %v322 = vld [vmem:[%s274 + $0x118] sm:$0xff]
      %v323 = vld [vmem:[%s274 + $0x120] sm:$0xff]
      %v324 = vld [vmem:[%s274 + $0x128] sm:$0xff]
      %v325 = vld [vmem:[%s274 + $0x130] sm:$0xff]
      %v326 = vld [vmem:[%s274 + $0x138] sm:$0xff]
      %v327 = vld [vmem:[%s274 + $0x140] sm:$0xff]
      %v328 = vld [vmem:[%s274 + $0x148] sm:$0xff]
      %v329 = vld [vmem:[%s274 + $0x150] sm:$0xff]
      %v330 = vld [vmem:[%s274 + $0x158] sm:$0xff]
      %v331 = vld [vmem:[%s274 + $0x160] sm:$0xff]
      %v332 = vld [vmem:[%s274 + $0x168] sm:$0xff]
      %v333 = vld [vmem:[%s274 + $0x170] sm:$0xff]
      %v334 = vld [vmem:[%s274 + $0x178] sm:$0xff]
      %v335 = vld [vmem:[%s274 + $0x180] sm:$0xff]
      %v336 = vld [vmem:[%s274 + $0x188] sm:$0xff]
      %v337 = vld [vmem:[%s274 + $0x190] sm:$0xff]
      %v338 = vld [vmem:[%s274 + $0x198] sm:$0xff]
      %v339 = vld [vmem:[%s274 + $0x1a0] sm:$0xff]
      %v340 = vld [vmem:[%s274 + $0x1a8] sm:$0xff]
      %v341 = vld [vmem:[%s274 + $0x1b0] sm:$0xff]
      %v342 = vld [vmem:[%s274 + $0x1b8] sm:$0xff]
      %v343 = vld [vmem:[%s274 + $0x1c0] sm:$0xff]
      %v344 = vld [vmem:[%s274 + $0x1c8] sm:$0xff]
      %v345 = vld [vmem:[%s274 + $0x1d0] sm:$0xff]
      %v346 = vld [vmem:[%s274 + $0x1d8] sm:$0xff]
      %v347 = vld [vmem:[%s274 + $0x1e0] sm:$0xff]
      %v348 = vld [vmem:[%s274 + $0x1e8] sm:$0xff]
      %v349 = vld [vmem:[%s274 + $0x1f0] sm:$0xff]
      %v350 = vld [vmem:[%s274 + $0x1f8] sm:$0xff]
      %v351 = vld [vmem:[%s274 + $0x200] sm:$0xff]
      %v352 = vld [vmem:[%s274 + $0x208] sm:$0xff]
      %v353 = vld [vmem:[%s274 + $0x210] sm:$0xff]
      %v354 = vld [vmem:[%s274 + $0x218] sm:$0xff]
      %v355 = vld [vmem:[%s274 + $0x220] sm:$0xff]
      %v356 = vld [vmem:[%s274 + $0x228] sm:$0xff]
      %v357 = vld [vmem:[%s274 + $0x230] sm:$0xff]
      %v358 = vld [vmem:[%s274 + $0x238] sm:$0xff]
      %v359 = vld [vmem:[%s274 + $0x240] sm:$0xff]
      %v360 = vld [vmem:[%s274 + $0x248] sm:$0xff]
      %v361 = vld [vmem:[%s274 + $0x250] sm:$0xff]
      %v362 = vld [vmem:[%s274 + $0x258] sm:$0xff]
      %v363 = vld [vmem:[%s274 + $0x260] sm:$0xff]
      %v364 = vld [vmem:[%s274 + $0x268] sm:$0xff]
      %v365 = vld [vmem:[%s274 + $0x270] sm:$0xff]
      %v366 = vld [vmem:[%s274 + $0x278] sm:$0xff]
      %v367 = vld [vmem:[%s274 + $0x280] sm:$0xff]
      %v368 = vld [vmem:[%s274 + $0x288] sm:$0xff]
      %v369 = vld [vmem:[%s274 + $0x290] sm:$0xff]
      %v370 = vld [vmem:[%s274 + $0x298] sm:$0xff]
      %v371 = vld [vmem:[%s274 + $0x2a0] sm:$0xff]
      %v372 = vld [vmem:[%s274 + $0x2a8] sm:$0xff]
      %v373 = vld [vmem:[%s274 + $0x2b0] sm:$0xff]
      %v374 = vld [vmem:[%s274 + $0x2b8] sm:$0xff]
      %v375 = vld [vmem:[%s274 + $0x2c0] sm:$0xff]
      %v376 = vld [vmem:[%s274 + $0x2c8] sm:$0xff]
      %v377 = vld [vmem:[%s274 + $0x2d0] sm:$0xff]
      %v378 = vld [vmem:[%s274 + $0x2d8] sm:$0xff]
      %v379 = vld [vmem:[%s274 + $0x2e0] sm:$0xff]
      %v380 = vld [vmem:[%s274 + $0x2e8] sm:$0xff]
      %v381 = vld [vmem:[%s274 + $0x2f0] sm:$0xff]
      %v382 = vld [vmem:[%s274 + $0x2f8] sm:$0xff]
      %v383 = vld [vmem:[%s274 + $0x300] sm:$0xff]
      %v384 = vld [vmem:[%s274 + $0x308] sm:$0xff]
      %v385 = vld [vmem:[%s274 + $0x310] sm:$0xff]
      %v386 = vld [vmem:[%s274 + $0x318] sm:$0xff]
      %v387 = vld [vmem:[%s274 + $0x320] sm:$0xff]
      %v388 = vld [vmem:[%s274 + $0x328] sm:$0xff]
      %v389 = vld [vmem:[%s274 + $0x330] sm:$0xff]
      %v390 = vld [vmem:[%s274 + $0x338] sm:$0xff]
      %v391 = vld [vmem:[%s274 + $0x340] sm:$0xff]
      %v392 = vld [vmem:[%s274 + $0x348] sm:$0xff]
      %v393 = vld [vmem:[%s274 + $0x350] sm:$0xff]
      %v394 = vld [vmem:[%s274 + $0x358] sm:$0xff]
      %v395 = vld [vmem:[%s274 + $0x360] sm:$0xff]
      %v396 = vld [vmem:[%s274 + $0x368] sm:$0xff]
      %v397 = vld [vmem:[%s274 + $0x370] sm:$0xff]
      %v398 = vld [vmem:[%s274 + $0x378] sm:$0xff]
      %v399 = vld [vmem:[%s274 + $0x380] sm:$0xff]
      %v400 = vld [vmem:[%s274 + $0x388] sm:$0xff]
      %v401 = vld [vmem:[%s274 + $0x390] sm:$0xff]
      %v402 = vld [vmem:[%s274 + $0x398] sm:$0xff]
      %v403 = vld [vmem:[%s274 + $0x3a0] sm:$0xff]
      %v404 = vld [vmem:[%s274 + $0x3a8] sm:$0xff]
      %v405 = vld [vmem:[%s274 + $0x3b0] sm:$0xff]
      %v406 = vld [vmem:[%s274 + $0x3b8] sm:$0xff]
      %v407 = vld [vmem:[%s274 + $0x3c0] sm:$0xff]
      %v408 = vld [vmem:[%s274 + $0x3c8] sm:$0xff]
      %v409 = vld [vmem:[%s274 + $0x3d0] sm:$0xff]
      %v410 = vld [vmem:[%s274 + $0x3d8] sm:$0xff]
      %v411 = vld [vmem:[%s274 + $0x3e0] sm:$0xff]
      %v412 = vld [vmem:[%s274 + $0x3e8] sm:$0xff]
      %v413 = vld [vmem:[%s274 + $0x3f0] sm:$0xff]
      %v414 = vld [vmem:[%s274 + $0x3f8] sm:$0xff]
      %v415 = vld [vmem:[%s274 + $0x400] sm:$0xff]
      %v416 = vld [vmem:[%s274 + $0x408] sm:$0xff]
      %v417 = vld [vmem:[%s274 + $0x410] sm:$0xff]
      %v418 = vld [vmem:[%s274 + $0x418] sm:$0xff]
      %v419 = vld [vmem:[%s274 + $0x420] sm:$0xff]
      %v420 = vld [vmem:[%s274 + $0x428] sm:$0xff]
      %v421 = vld [vmem:[%s274 + $0x430] sm:$0xff]
      %v422 = vld [vmem:[%s274 + $0x438] sm:$0xff]
      %v423 = vld [vmem:[%s274 + $0x440] sm:$0xff]
      %v424 = vld [vmem:[%s274 + $0x448] sm:$0xff]
      %v425 = vld [vmem:[%s274 + $0x450] sm:$0xff]
      %v426 = vld [vmem:[%s274 + $0x458] sm:$0xff]
      %v427 = vld [vmem:[%s274 + $0x460] sm:$0xff]
      %v428 = vld [vmem:[%s274 + $0x468] sm:$0xff]
      %v429 = vld [vmem:[%s274 + $0x470] sm:$0xff]
      %v430 = vld [vmem:[%s274 + $0x478] sm:$0xff]
      %v431 = vld [vmem:[%s274 + $0x480] sm:$0xff]
      %v432 = vld [vmem:[%s274 + $0x488] sm:$0xff]
      %v433 = vld [vmem:[%s274 + $0x490] sm:$0xff]
      %v434 = vld [vmem:[%s274 + $0x498] sm:$0xff]
      %v435 = vld [vmem:[%s274 + $0x4a0] sm:$0xff]
      %v436 = vld [vmem:[%s274 + $0x4a8] sm:$0xff]
      %v437 = vld [vmem:[%s274 + $0x4b0] sm:$0xff]
      %v438 = vld [vmem:[%s274 + $0x4b8] sm:$0xff]
      %v439 = vld [vmem:[%s274 + $0x4c0] sm:$0xff]
      %v440 = vld [vmem:[%s274 + $0x4c8] sm:$0xff]
      %v441 = vld [vmem:[%s274 + $0x4d0] sm:$0xff]
      %v442 = vld [vmem:[%s274 + $0x4d8] sm:$0xff]
      %v443 = vld [vmem:[%s274 + $0x4e0] sm:$0xff]
      %v444 = vld [vmem:[%s274 + $0x4e8] sm:$0xff]
      %v445 = vld [vmem:[%s274 + $0x4f0] sm:$0xff]
      %v446 = vld [vmem:[%s274 + $0x4f8] sm:$0xff]
      %v447 = vld [vmem:[%s2] sm:$0xff]
      %v448 = vld [vmem:[%s2 + $0x8] sm:$0xff]
      %v449 = vld [vmem:[%s2 + $0x10] sm:$0xff]
      %v450 = vld [vmem:[%s2 + $0x18] sm:$0xff]
      %v451 = vld [vmem:[%s2 + $0x20] sm:$0x1]
      %453 = vset.pattern.permute.xlu0 0
      %454 = vperm.xlu0 %453, %v447
      %v455 = vpop.permute.xlu0 %454
      %458 = vset.pattern.permute.xlu0 0
      %459 = vperm.xlu0 %458, %v448
      %v460 = vpop.permute.xlu0 %459
      %463 = vset.pattern.permute.xlu0 0
      %464 = vperm.xlu0 %463, %v449
      %v465 = vpop.permute.xlu0 %464
      %468 = vset.pattern.permute.xlu0 0
      %469 = vperm.xlu0 %468, %v450
      %v470 = vpop.permute.xlu0 %469
      %473 = vset.pattern.permute.xlu0 0
      %474 = vperm.xlu0 %473, %v451
      %v475 = vpop.permute.xlu0 %474
      %vm477 = vcmask 130048
      %v479 = vsel %vm477, %v282, 0
      %v482 = vsel %vm477, %v283, 0
      %v485 = vsel %vm477, %v284, 0
      %v488 = vsel %vm477, %v285, 0
      %v491 = vsel %vm477, %v286, 0
      %v494 = vsel %vm477, %v287, 0
      %v497 = vsel %vm477, %v288, 0
      %v500 = vsel %vm477, %v289, 0
      %v503 = vsel %vm477, %v290, 0
      %v506 = vsel %vm477, %v291, 0
      %v509 = vsel %vm477, %v292, 0
      %v512 = vsel %vm477, %v293, 0
      %v515 = vsel %vm477, %v294, 0
      %v518 = vsel %vm477, %v295, 0
      %v521 = vsel %vm477, %v296, 0
      %v524 = vsel %vm477, %v297, 0
      %v527 = vsel %vm477, %v298, 0
      %v530 = vsel %vm477, %v299, 0
      %v533 = vsel %vm477, %v300, 0
      %v536 = vsel %vm477, %v301, 0
      %v539 = vsel %vm477, %v302, 0
      %v542 = vsel %vm477, %v303, 0
      %v545 = vsel %vm477, %v304, 0
      %v548 = vsel %vm477, %v305, 0
      %v551 = vsel %vm477, %v306, 0
      %v554 = vsel %vm477, %v307, 0
      %v557 = vsel %vm477, %v308, 0
      %v560 = vsel %vm477, %v309, 0
      %v563 = vsel %vm477, %v310, 0
      %v566 = vsel %vm477, %v311, 0
      %v569 = vsel %vm477, %v312, 0
      %v572 = vsel %vm477, %v313, 0
      %v575 = vsel %vm477, %v314, 0
      %v578 = vsel %vm477, %v315, 0
      %v581 = vsel %vm477, %v316, 0
      %v584 = vsel %vm477, %v317, 0
      %v587 = vsel %vm477, %v318, 0
      %v590 = vsel %vm477, %v319, 0
      %v593 = vsel %vm477, %v320, 0
      %v596 = vsel %vm477, %v321, 0
      %v599 = vsel %vm477, %v322, 0
      %v602 = vsel %vm477, %v323, 0
      %v605 = vsel %vm477, %v324, 0
      %v608 = vsel %vm477, %v325, 0
      %v611 = vsel %vm477, %v326, 0
      %v614 = vsel %vm477, %v327, 0
      %v617 = vsel %vm477, %v328, 0
      %v620 = vsel %vm477, %v329, 0
      %v623 = vsel %vm477, %v330, 0
      %v626 = vsel %vm477, %v331, 0
      %v629 = vsel %vm477, %v332, 0
      %v632 = vsel %vm477, %v333, 0
      %v635 = vsel %vm477, %v334, 0
      %v638 = vsel %vm477, %v335, 0
      %v641 = vsel %vm477, %v336, 0
      %v644 = vsel %vm477, %v337, 0
      %v647 = vsel %vm477, %v338, 0
      %v650 = vsel %vm477, %v339, 0
      %v653 = vsel %vm477, %v340, 0
      %v656 = vsel %vm477, %v341, 0
      %v659 = vsel %vm477, %v342, 0
      %v662 = vsel %vm477, %v343, 0
      %v665 = vsel %vm477, %v344, 0
      %v668 = vsel %vm477, %v345, 0
      %v671 = vsel %vm477, %v346, 0
      %v674 = vsel %vm477, %v347, 0
      %v677 = vsel %vm477, %v348, 0
      %v680 = vsel %vm477, %v349, 0
      %v683 = vsel %vm477, %v350, 0
      %v686 = vsel %vm477, %v351, 0
      %v689 = vsel %vm477, %v352, 0
      %v692 = vsel %vm477, %v353, 0
      %v695 = vsel %vm477, %v354, 0
      %v698 = vsel %vm477, %v355, 0
      %v701 = vsel %vm477, %v356, 0
      %v704 = vsel %vm477, %v357, 0
      %v707 = vsel %vm477, %v358, 0
      %v710 = vsel %vm477, %v359, 0
      %v713 = vsel %vm477, %v360, 0
      %v716 = vsel %vm477, %v361, 0
      %v719 = vsel %vm477, %v362, 0
      %v722 = vsel %vm477, %v363, 0
      %v725 = vsel %vm477, %v364, 0
      %v728 = vsel %vm477, %v365, 0
      %v731 = vsel %vm477, %v366, 0
      %v734 = vsel %vm477, %v367, 0
      %v737 = vsel %vm477, %v368, 0
      %v740 = vsel %vm477, %v369, 0
      %v743 = vsel %vm477, %v370, 0
      %v746 = vsel %vm477, %v371, 0
      %v749 = vsel %vm477, %v372, 0
      %v752 = vsel %vm477, %v373, 0
      %v755 = vsel %vm477, %v374, 0
      %v758 = vsel %vm477, %v375, 0
      %v761 = vsel %vm477, %v376, 0
      %v764 = vsel %vm477, %v377, 0
      %v767 = vsel %vm477, %v378, 0
      %v770 = vsel %vm477, %v379, 0
      %v773 = vsel %vm477, %v380, 0
      %v776 = vsel %vm477, %v381, 0
      %v779 = vsel %vm477, %v382, 0
      %v782 = vsel %vm477, %v383, 0
      %v785 = vsel %vm477, %v384, 0
      %v788 = vsel %vm477, %v385, 0
      %v791 = vsel %vm477, %v386, 0
      %v794 = vsel %vm477, %v387, 0
      %v797 = vsel %vm477, %v388, 0
      %v800 = vsel %vm477, %v389, 0
      %v803 = vsel %vm477, %v390, 0
      %v806 = vsel %vm477, %v391, 0
      %v809 = vsel %vm477, %v392, 0
      %v812 = vsel %vm477, %v393, 0
      %v815 = vsel %vm477, %v394, 0
      %v818 = vsel %vm477, %v395, 0
      %v821 = vsel %vm477, %v396, 0
      %v824 = vsel %vm477, %v397, 0
      %v827 = vsel %vm477, %v398, 0
      %v830 = vsel %vm477, %v399, 0
      %v833 = vsel %vm477, %v400, 0
      %v836 = vsel %vm477, %v401, 0
      %v839 = vsel %vm477, %v402, 0
      %v842 = vsel %vm477, %v403, 0
      %v845 = vsel %vm477, %v404, 0
      %v848 = vsel %vm477, %v405, 0
      %v851 = vsel %vm477, %v406, 0
      %v854 = vsel %vm477, %v407, 0
      %v857 = vsel %vm477, %v408, 0
      %v860 = vsel %vm477, %v409, 0
      %v863 = vsel %vm477, %v410, 0
      %v866 = vsel %vm477, %v411, 0
      %v869 = vsel %vm477, %v412, 0
      %v872 = vsel %vm477, %v413, 0
      %v875 = vsel %vm477, %v414, 0
      %v878 = vsel %vm477, %v415, 0
      %v881 = vsel %vm477, %v416, 0
      %v884 = vsel %vm477, %v417, 0
      %v887 = vsel %vm477, %v418, 0
      %v890 = vsel %vm477, %v419, 0
      %v893 = vsel %vm477, %v420, 0
      %v896 = vsel %vm477, %v421, 0
      %v899 = vsel %vm477, %v422, 0
      %v902 = vsel %vm477, %v423, 0
      %v905 = vsel %vm477, %v424, 0
      %v908 = vsel %vm477, %v425, 0
      %v911 = vsel %vm477, %v426, 0
      %v914 = vsel %vm477, %v427, 0
      %v917 = vsel %vm477, %v428, 0
      %v920 = vsel %vm477, %v429, 0
      %v923 = vsel %vm477, %v430, 0
      %v926 = vsel %vm477, %v431, 0
      %v929 = vsel %vm477, %v432, 0
      %v932 = vsel %vm477, %v433, 0
      %v935 = vsel %vm477, %v434, 0
      %v938 = vsel %vm477, %v435, 0
      %v941 = vsel %vm477, %v436, 0
      %v944 = vsel %vm477, %v437, 0
      %v947 = vsel %vm477, %v438, 0
      %v950 = vsel %vm477, %v439, 0
      %v953 = vsel %vm477, %v440, 0
      %v956 = vsel %vm477, %v441, 0
      %v959 = vsel %vm477, %v442, 0
      %v962 = vsel %vm477, %v443, 0
      %v965 = vsel %vm477, %v444, 0
      %v968 = vsel %vm477, %v445, 0
      %v971 = vsel %vm477, %v446, 0
      %973 = vmatprep.subr.mxu0 0.0
      %974 = vmatpush1.xpose.msra.mxu0 %v494
      %975 = vmatprep.subr.mxu0 0.0
      %976 = vmatpush1.xpose.msra.mxu0 %v497
      %977 = vmatprep.subr.mxu0 0.0
      %978 = vmatpush1.xpose.msra.mxu0 %v500
      %979 = vmatprep.subr.mxu0 0.0
      %980 = vmatpush1.xpose.msra.mxu0 %v503
      %981 = vmatprep.subr.mxu0 0.0
      %982 = vmatpush1.xpose.msra.mxu0 %v506
      %983 = vmatprep.subr.mxu0 0.0
      %984 = vmatpush1.xpose.msra.mxu0 %v509
      %985 = vmatprep.subr.mxu0 0.0
      %986 = vmatpush1.xpose.msra.mxu0 %v512
      %987 = vmatprep.subr.mxu0 0.0
      %988 = vmatpush1.xpose.msra.mxu0 %v515
      %989 = vmatprep.subr.mxu0 0.0
      %990 = vmatpush1.xpose.msra.mxu0 %v518
      %991 = vmatprep.subr.mxu0 0.0
      %992 = vmatpush1.xpose.msra.mxu0 %v521
      %993 = vmatprep.subr.mxu0 0.0
      %994 = vmatpush1.xpose.msra.mxu0 %v524
      %995 = vmatprep.subr.mxu0 0.0
      %996 = vmatpush1.xpose.msra.mxu0 %v527
      %997 = vmatprep.subr.mxu0 0.0
      %998 = vmatpush1.xpose.msra.mxu0 %v530
      %999 = vmatprep.subr.mxu0 0.0
      %1000 = vmatpush1.xpose.msra.mxu0 %v533
      %1001 = vmatprep.subr.mxu0 0.0
      %1002 = vmatpush1.xpose.msra.mxu0 %v536
      %1003 = vmatprep.subr.mxu0 0.0
      %1004 = vmatpush1.xpose.msra.mxu0 %v539
      %1005 = vmatprep.subr.mxu0 0.0
      %1006 = vmatpush1.xpose.msra.mxu0 %v542
      %1007 = vmatprep.subr.mxu0 0.0
      %1008 = vmatpush1.xpose.msra.mxu0 %v545
      %1009 = vmatprep.subr.mxu0 0.0
      %1010 = vmatpush1.xpose.msra.mxu0 %v548
      %1011 = vmatprep.subr.mxu0 0.0
      %1012 = vmatpush1.xpose.msra.mxu0 %v551
      %1013 = vmatprep.subr.mxu0 0.0
      %1014 = vmatpush1.xpose.msra.mxu0 %v554
      %1015 = vmatprep.subr.mxu0 0.0
      %1016 = vmatpush1.xpose.msra.mxu0 %v557
      %1017 = vmatprep.subr.mxu0 0.0
      %1018 = vmatpush1.xpose.msra.mxu0 %v560
      %1019 = vmatprep.subr.mxu0 0.0
      %1020 = vmatpush1.xpose.msra.mxu0 %v563
      %1021 = vmatprep.subr.mxu0 0.0
      %1022 = vmatpush1.xpose.msra.mxu0 %v566
      %1023 = vmatprep.subr.mxu0 0.0
      %1024 = vmatpush1.xpose.msra.mxu0 %v569
      %1025 = vmatprep.subr.mxu0 0.0
      %1026 = vmatpush1.xpose.msra.mxu0 %v572
      %1027 = vmatprep.subr.mxu0 0.0
      %1028 = vmatpush1.xpose.msra.mxu0 %v575
      %1029 = vmatprep.subr.mxu0 0.0
      %1030 = vmatpush1.xpose.msra.mxu0 %v578
      %1031 = vmatprep.subr.mxu0 0.0
      %1032 = vmatpush1.xpose.msra.mxu0 %v581
      %1033 = vmatprep.subr.mxu0 0.0
      %1034 = vmatpush1.xpose.msra.mxu0 %v584
      %1035 = vmatprep.subr.mxu0 0.0
      %1036 = vmatpush1.xpose.msra.mxu0 %v587
      %1037 = vmatprep.mubr.f32.mxu0 0.0
      %1038 = vmatmul.mubr.f32.gmra.mrb[0].mxu0 %v479
      %v1039 = vpop.f32.mrb[0].mxu0
      %v1040 = vadd.f32 %v455, %v1039
      %v1041 = vpop.f32.mrb[0].mxu0
      %v1042 = vadd.f32 %v455, %v1041
      %1043 = vmatprep.mubr.f32.mxu0 0.0
      %1044 = vmatmul.mubr.f32.gmra.mrb[0].mxu0 %v482
      %v1045 = vpop.f32.mrb[0].mxu0
      %v1046 = vadd.f32 %v460, %v1045
      %v1047 = vpop.f32.mrb[0].mxu0
      %v1048 = vadd.f32 %v460, %v1047
      %1049 = vmatprep.mubr.f32.mxu0 0.0
      %1050 = vmatmul.mubr.f32.gmra.mrb[0].mxu0 %v485
      %v1051 = vpop.f32.mrb[0].mxu0
      %v1052 = vadd.f32 %v465, %v1051
      %v1053 = vpop.f32.mrb[0].mxu0
      %v1054 = vadd.f32 %v465, %v1053
      %1055 = vmatprep.mubr.f32.mxu0 0.0
      %1056 = vmatmul.mubr.f32.gmra.mrb[0].mxu0 %v488
      %v1057 = vpop.f32.mrb[0].mxu0
      %v1058 = vadd.f32 %v470, %v1057
      %v1059 = vpop.f32.mrb[0].mxu0
      %v1060 = vadd.f32 %v470, %v1059
      %1061 = vmatprep.mubr.f32.mxu0 0.0
      %1062 = vmatmul.mubr.f32.gmra.mrb[0].mxu0 %v491
      %v1063 = vpop.f32.mrb[0].mxu0
      %v1064 = vadd.f32 %v475, %v1063
      %v1065 = vpop.f32.mrb[0].mxu0
      %v1066 = vadd.f32 %v475, %v1065
      %1067 = vdwg.mxu0
      %1068 = vmatprep.subr.mxu0 0.0
      %1069 = vmatpush1.xpose.msra.mxu0 %v590
      %1070 = vmatprep.subr.mxu0 0.0
      %1071 = vmatpush1.xpose.msra.mxu0 %v593
      %1072 = vmatprep.subr.mxu0 0.0
      %1073 = vmatpush1.xpose.msra.mxu0 %v596
      %1074 = vmatprep.subr.mxu0 0.0
      %1075 = vmatpush1.xpose.msra.mxu0 %v599
      %1076 = vmatprep.subr.mxu0 0.0
      %1077 = vmatpush1.xpose.msra.mxu0 %v602
      %1078 = vmatprep.subr.mxu0 0.0
      %1079 = vmatpush1.xpose.msra.mxu0 %v605
      %1080 = vmatprep.subr.mxu0 0.0
      %1081 = vmatpush1.xpose.msra.mxu0 %v608
      %1082 = vmatprep.subr.mxu0 0.0
      %1083 = vmatpush1.xpose.msra.mxu0 %v611
      %1084 = vmatprep.subr.mxu0 0.0
      %1085 = vmatpush1.xpose.msra.mxu0 %v614
      %1086 = vmatprep.subr.mxu0 0.0
      %1087 = vmatpush1.xpose.msra.mxu0 %v617
      %1088 = vmatprep.subr.mxu0 0.0
      %1089 = vmatpush1.xpose.msra.mxu0 %v620
      %1090 = vmatprep.subr.mxu0 0.0
      %1091 = vmatpush1.xpose.msra.mxu0 %v623
      %1092 = vmatprep.subr.mxu0 0.0
      %1093 = vmatpush1.xpose.msra.mxu0 %v626
      %1094 = vmatprep.subr.mxu0 0.0
      %1095 = vmatpush1.xpose.msra.mxu0 %v629
      %1096 = vmatprep.subr.mxu0 0.0
      %1097 = vmatpush1.xpose.msra.mxu0 %v632
      %1098 = vmatprep.subr.mxu0 0.0
      %1099 = vmatpush1.xpose.msra.mxu0 %v635
      %1100 = vmatprep.subr.mxu0 0.0
      %1101 = vmatpush1.xpose.msra.mxu0 %v638
      %1102 = vmatprep.subr.mxu0 0.0
      %1103 = vmatpush1.xpose.msra.mxu0 %v641
      %1104 = vmatprep.subr.mxu0 0.0
      %1105 = vmatpush1.xpose.msra.mxu0 %v644
      %1106 = vmatprep.subr.mxu0 0.0
      %1107 = vmatpush1.xpose.msra.mxu0 %v647
      %1108 = vmatprep.subr.mxu0 0.0
      %1109 = vmatpush1.xpose.msra.mxu0 %v650
      %1110 = vmatprep.subr.mxu0 0.0
      %1111 = vmatpush1.xpose.msra.mxu0 %v653
      %1112 = vmatprep.subr.mxu0 0.0
      %1113 = vmatpush1.xpose.msra.mxu0 %v656
      %1114 = vmatprep.subr.mxu0 0.0
      %1115 = vmatpush1.xpose.msra.mxu0 %v659
      %1116 = vmatprep.subr.mxu0 0.0
      %1117 = vmatpush1.xpose.msra.mxu0 %v662
      %1118 = vmatprep.subr.mxu0 0.0
      %1119 = vmatpush1.xpose.msra.mxu0 %v665
      %1120 = vmatprep.subr.mxu0 0.0
      %1121 = vmatpush1.xpose.msra.mxu0 %v668
      %1122 = vmatprep.subr.mxu0 0.0
      %1123 = vmatpush1.xpose.msra.mxu0 %v671
      %1124 = vmatprep.subr.mxu0 0.0
      %1125 = vmatpush1.xpose.msra.mxu0 %v674
      %1126 = vmatprep.subr.mxu0 0.0
      %1127 = vmatpush1.xpose.msra.mxu0 %v677
      %1128 = vmatprep.subr.mxu0 0.0
      %1129 = vmatpush1.xpose.msra.mxu0 %v680
      %1130 = vmatprep.subr.mxu0 0.0
      %1131 = vmatpush1.xpose.msra.mxu0 %v683
      %1132 = vmatprep.mubr.f32.mxu0 0.0
      %1133 = vmatmul.mubr.f32.gmra.mrb[0].mxu0 %v479
      %v1134 = vpop.f32.mrb[0].mxu0
      %v1135 = vadd.f32 %v455, %v1134
      %v1136 = vpop.f32.mrb[0].mxu0
      %v1137 = vadd.f32 %v455, %v1136
      %1138 = vmatprep.mubr.f32.mxu0 0.0
      %1139 = vmatmul.mubr.f32.gmra.mrb[0].mxu0 %v482
      %v1140 = vpop.f32.mrb[0].mxu0
      %v1141 = vadd.f32 %v460, %v1140
      %v1142 = vpop.f32.mrb[0].mxu0
      %v1143 = vadd.f32 %v460, %v1142
      %1144 = vmatprep.mubr.f32.mxu0 0.0
      %1145 = vmatmul.mubr.f32.gmra.mrb[0].mxu0 %v485
      %v1146 = vpop.f32.mrb[0].mxu0
      %v1147 = vadd.f32 %v465, %v1146
      %v1148 = vpop.f32.mrb[0].mxu0
      %v1149 = vadd.f32 %v465, %v1148
      %1150 = vmatprep.mubr.f32.mxu0 0.0
      %1151 = vmatmul.mubr.f32.gmra.mrb[0].mxu0 %v488
      %v1152 = vpop.f32.mrb[0].mxu0
      %v1153 = vadd.f32 %v470, %v1152
      %v1154 = vpop.f32.mrb[0].mxu0
      %v1155 = vadd.f32 %v470, %v1154
      %1156 = vmatprep.mubr.f32.mxu0 0.0
      %1157 = vmatmul.mubr.f32.gmra.mrb[0].mxu0 %v491
      %v1158 = vpop.f32.mrb[0].mxu0
      %v1159 = vadd.f32 %v475, %v1158
      %v1160 = vpop.f32.mrb[0].mxu0
      %v1161 = vadd.f32 %v475, %v1160
      %1162 = vdwg.mxu0
      %1163 = vmatprep.subr.mxu0 0.0
      %1164 = vmatpush1.xpose.msra.mxu0 %v686
      %1165 = vmatprep.subr.mxu0 0.0
      %1166 = vmatpush1.xpose.msra.mxu0 %v689
      %1167 = vmatprep.subr.mxu0 0.0
      %1168 = vmatpush1.xpose.msra.mxu0 %v692
      %1169 = vmatprep.subr.mxu0 0.0
      %1170 = vmatpush1.xpose.msra.mxu0 %v695
      %1171 = vmatprep.subr.mxu0 0.0
      %1172 = vmatpush1.xpose.msra.mxu0 %v698
      %1173 = vmatprep.subr.mxu0 0.0
      %1174 = vmatpush1.xpose.msra.mxu0 %v701
      %1175 = vmatprep.subr.mxu0 0.0
      %1176 = vmatpush1.xpose.msra.mxu0 %v704
      %1177 = vmatprep.subr.mxu0 0.0
      %1178 = vmatpush1.xpose.msra.mxu0 %v707
      %1179 = vmatprep.subr.mxu0 0.0
      %1180 = vmatpush1.xpose.msra.mxu0 %v710
      %1181 = vmatprep.subr.mxu0 0.0
      %1182 = vmatpush1.xpose.msra.mxu0 %v713
      %1183 = vmatprep.subr.mxu0 0.0
      %1184 = vmatpush1.xpose.msra.mxu0 %v716
      %1185 = vmatprep.subr.mxu0 0.0
      %1186 = vmatpush1.xpose.msra.mxu0 %v719
      %1187 = vmatprep.subr.mxu0 0.0
      %1188 = vmatpush1.xpose.msra.mxu0 %v722
      %1189 = vmatprep.subr.mxu0 0.0
      %1190 = vmatpush1.xpose.msra.mxu0 %v725
      %1191 = vmatprep.subr.mxu0 0.0
      %1192 = vmatpush1.xpose.msra.mxu0 %v728
      %1193 = vmatprep.subr.mxu0 0.0
      %1194 = vmatpush1.xpose.msra.mxu0 %v731
      %1195 = vmatprep.subr.mxu0 0.0
      %1196 = vmatpush1.xpose.msra.mxu0 %v734
      %1197 = vmatprep.subr.mxu0 0.0
      %1198 = vmatpush1.xpose.msra.mxu0 %v737
      %1199 = vmatprep.subr.mxu0 0.0
      %1200 = vmatpush1.xpose.msra.mxu0 %v740
      %1201 = vmatprep.subr.mxu0 0.0
      %1202 = vmatpush1.xpose.msra.mxu0 %v743
      %1203 = vmatprep.subr.mxu0 0.0
      %1204 = vmatpush1.xpose.msra.mxu0 %v746
      %1205 = vmatprep.subr.mxu0 0.0
      %1206 = vmatpush1.xpose.msra.mxu0 %v749
      %1207 = vmatprep.subr.mxu0 0.0
      %1208 = vmatpush1.xpose.msra.mxu0 %v752
      %1209 = vmatprep.subr.mxu0 0.0
      %1210 = vmatpush1.xpose.msra.mxu0 %v755
      %1211 = vmatprep.subr.mxu0 0.0
      %1212 = vmatpush1.xpose.msra.mxu0 %v758
      %1213 = vmatprep.subr.mxu0 0.0
      %1214 = vmatpush1.xpose.msra.mxu0 %v761
      %1215 = vmatprep.subr.mxu0 0.0
      %1216 = vmatpush1.xpose.msra.mxu0 %v764
      %1217 = vmatprep.subr.mxu0 0.0
      %1218 = vmatpush1.xpose.msra.mxu0 %v767
      %1219 = vmatprep.subr.mxu0 0.0
      %1220 = vmatpush1.xpose.msra.mxu0 %v770
      %1221 = vmatprep.subr.mxu0 0.0
      %1222 = vmatpush1.xpose.msra.mxu0 %v773
      %1223 = vmatprep.subr.mxu0 0.0
      %1224 = vmatpush1.xpose.msra.mxu0 %v776
      %1225 = vmatprep.subr.mxu0 0.0
      %1226 = vmatpush1.xpose.msra.mxu0 %v779
      %1227 = vmatprep.mubr.f32.mxu0 0.0
      %1228 = vmatmul.mubr.f32.gmra.mrb[0].mxu0 %v479
      %v1229 = vpop.f32.mrb[0].mxu0
      %v1230 = vadd.f32 %v455, %v1229
      %v1231 = vpop.f32.mrb[0].mxu0
      %v1232 = vadd.f32 %v455, %v1231
      %1233 = vmatprep.mubr.f32.mxu0 0.0
      %1234 = vmatmul.mubr.f32.gmra.mrb[0].mxu0 %v482
      %v1235 = vpop.f32.mrb[0].mxu0
      %v1236 = vadd.f32 %v460, %v1235
      %v1237 = vpop.f32.mrb[0].mxu0
      %v1238 = vadd.f32 %v460, %v1237
      %1239 = vmatprep.mubr.f32.mxu0 0.0
      %1240 = vmatmul.mubr.f32.gmra.mrb[0].mxu0 %v485
      %v1241 = vpop.f32.mrb[0].mxu0
      %v1242 = vadd.f32 %v465, %v1241
      %v1243 = vpop.f32.mrb[0].mxu0
      %v1244 = vadd.f32 %v465, %v1243
      %1245 = vmatprep.mubr.f32.mxu0 0.0
      %1246 = vmatmul.mubr.f32.gmra.mrb[0].mxu0 %v488
      %v1247 = vpop.f32.mrb[0].mxu0
      %v1248 = vadd.f32 %v470, %v1247
      %v1249 = vpop.f32.mrb[0].mxu0
      %v1250 = vadd.f32 %v470, %v1249
      %1251 = vmatprep.mubr.f32.mxu0 0.0
      %1252 = vmatmul.mubr.f32.gmra.mrb[0].mxu0 %v491
      %v1253 = vpop.f32.mrb[0].mxu0
      %v1254 = vadd.f32 %v475, %v1253
      %v1255 = vpop.f32.mrb[0].mxu0
      %v1256 = vadd.f32 %v475, %v1255
      %1257 = vdwg.mxu0
      %1258 = vmatprep.subr.mxu0 0.0
      %1259 = vmatpush1.xpose.msra.mxu0 %v782
      %1260 = vmatprep.subr.mxu0 0.0
      %1261 = vmatpush1.xpose.msra.mxu0 %v785
      %1262 = vmatprep.subr.mxu0 0.0
      %1263 = vmatpush1.xpose.msra.mxu0 %v788
      %1264 = vmatprep.subr.mxu0 0.0
      %1265 = vmatpush1.xpose.msra.mxu0 %v791
      %1266 = vmatprep.subr.mxu0 0.0
      %1267 = vmatpush1.xpose.msra.mxu0 %v794
      %1268 = vmatprep.subr.mxu0 0.0
      %1269 = vmatpush1.xpose.msra.mxu0 %v797
      %1270 = vmatprep.subr.mxu0 0.0
      %1271 = vmatpush1.xpose.msra.mxu0 %v800
      %1272 = vmatprep.subr.mxu0 0.0
      %1273 = vmatpush1.xpose.msra.mxu0 %v803
      %1274 = vmatprep.subr.mxu0 0.0
      %1275 = vmatpush1.xpose.msra.mxu0 %v806
      %1276 = vmatprep.subr.mxu0 0.0
      %1277 = vmatpush1.xpose.msra.mxu0 %v809
      %1278 = vmatprep.subr.mxu0 0.0
      %1279 = vmatpush1.xpose.msra.mxu0 %v812
      %1280 = vmatprep.subr.mxu0 0.0
      %1281 = vmatpush1.xpose.msra.mxu0 %v815
      %1282 = vmatprep.subr.mxu0 0.0
      %1283 = vmatpush1.xpose.msra.mxu0 %v818
      %1284 = vmatprep.subr.mxu0 0.0
      %1285 = vmatpush1.xpose.msra.mxu0 %v821
      %1286 = vmatprep.subr.mxu0 0.0
      %1287 = vmatpush1.xpose.msra.mxu0 %v824
      %1288 = vmatprep.subr.mxu0 0.0
      %1289 = vmatpush1.xpose.msra.mxu0 %v827
      %1290 = vmatprep.subr.mxu0 0.0
      %1291 = vmatpush1.xpose.msra.mxu0 %v830
      %1292 = vmatprep.subr.mxu0 0.0
      %1293 = vmatpush1.xpose.msra.mxu0 %v833
      %1294 = vmatprep.subr.mxu0 0.0
      %1295 = vmatpush1.xpose.msra.mxu0 %v836
      %1296 = vmatprep.subr.mxu0 0.0
      %1297 = vmatpush1.xpose.msra.mxu0 %v839
      %1298 = vmatprep.subr.mxu0 0.0
      %1299 = vmatpush1.xpose.msra.mxu0 %v842
      %1300 = vmatprep.subr.mxu0 0.0
      %1301 = vmatpush1.xpose.msra.mxu0 %v845
      %1302 = vmatprep.subr.mxu0 0.0
      %1303 = vmatpush1.xpose.msra.mxu0 %v848
      %1304 = vmatprep.subr.mxu0 0.0
      %1305 = vmatpush1.xpose.msra.mxu0 %v851
      %1306 = vmatprep.subr.mxu0 0.0
      %1307 = vmatpush1.xpose.msra.mxu0 %v854
      %1308 = vmatprep.subr.mxu0 0.0
      %1309 = vmatpush1.xpose.msra.mxu0 %v857
      %1310 = vmatprep.subr.mxu0 0.0
      %1311 = vmatpush1.xpose.msra.mxu0 %v860
      %1312 = vmatprep.subr.mxu0 0.0
      %1313 = vmatpush1.xpose.msra.mxu0 %v863
      %1314 = vmatprep.subr.mxu0 0.0
      %1315 = vmatpush1.xpose.msra.mxu0 %v866
      %1316 = vmatprep.subr.mxu0 0.0
      %1317 = vmatpush1.xpose.msra.mxu0 %v869
      %1318 = vmatprep.subr.mxu0 0.0
      %1319 = vmatpush1.xpose.msra.mxu0 %v872
      %1320 = vmatprep.subr.mxu0 0.0
      %1321 = vmatpush1.xpose.msra.mxu0 %v875
      %1322 = vmatprep.mubr.f32.mxu0 0.0
      %1323 = vmatmul.mubr.f32.gmra.mrb[0].mxu0 %v479
      %v1324 = vpop.f32.mrb[0].mxu0
      %v1325 = vadd.f32 %v455, %v1324
      %v1326 = vpop.f32.mrb[0].mxu0
      %v1327 = vadd.f32 %v455, %v1326
      %1328 = vmatprep.mubr.f32.mxu0 0.0
      %1329 = vmatmul.mubr.f32.gmra.mrb[0].mxu0 %v482
      %v1330 = vpop.f32.mrb[0].mxu0
      %v1331 = vadd.f32 %v460, %v1330
      %v1332 = vpop.f32.mrb[0].mxu0
      %v1333 = vadd.f32 %v460, %v1332
      %1334 = vmatprep.mubr.f32.mxu0 0.0
      %1335 = vmatmul.mubr.f32.gmra.mrb[0].mxu0 %v485
      %v1336 = vpop.f32.mrb[0].mxu0
      %v1337 = vadd.f32 %v465, %v1336
      %v1338 = vpop.f32.mrb[0].mxu0
      %v1339 = vadd.f32 %v465, %v1338
      %1340 = vmatprep.mubr.f32.mxu0 0.0
      %1341 = vmatmul.mubr.f32.gmra.mrb[0].mxu0 %v488
      %v1342 = vpop.f32.mrb[0].mxu0
      %v1343 = vadd.f32 %v470, %v1342
      %v1344 = vpop.f32.mrb[0].mxu0
      %v1345 = vadd.f32 %v470, %v1344
      %1346 = vmatprep.mubr.f32.mxu0 0.0
      %1347 = vmatmul.mubr.f32.gmra.mrb[0].mxu0 %v491
      %v1348 = vpop.f32.mrb[0].mxu0
      %v1349 = vadd.f32 %v475, %v1348
      %v1350 = vpop.f32.mrb[0].mxu0
      %v1351 = vadd.f32 %v475, %v1350
      %1352 = vdwg.mxu0
      %1353 = vmatprep.subr.mxu0 0.0
      %1354 = vmatpush1.xpose.msra.mxu0 %v878
      %1355 = vmatprep.subr.mxu0 0.0
      %1356 = vmatpush1.xpose.msra.mxu0 %v881
      %1357 = vmatprep.subr.mxu0 0.0
      %1358 = vmatpush1.xpose.msra.mxu0 %v884
      %1359 = vmatprep.subr.mxu0 0.0
      %1360 = vmatpush1.xpose.msra.mxu0 %v887
      %1361 = vmatprep.subr.mxu0 0.0
      %1362 = vmatpush1.xpose.msra.mxu0 %v890
      %1363 = vmatprep.subr.mxu0 0.0
      %1364 = vmatpush1.xpose.msra.mxu0 %v893
      %1365 = vmatprep.subr.mxu0 0.0
      %1366 = vmatpush1.xpose.msra.mxu0 %v896
      %1367 = vmatprep.subr.mxu0 0.0
      %1368 = vmatpush1.xpose.msra.mxu0 %v899
      %1369 = vmatprep.subr.mxu0 0.0
      %1370 = vmatpush1.xpose.msra.mxu0 %v902
      %1371 = vmatprep.subr.mxu0 0.0
      %1372 = vmatpush1.xpose.msra.mxu0 %v905
      %1373 = vmatprep.subr.mxu0 0.0
      %1374 = vmatpush1.xpose.msra.mxu0 %v908
      %1375 = vmatprep.subr.mxu0 0.0
      %1376 = vmatpush1.xpose.msra.mxu0 %v911
      %1377 = vmatprep.subr.mxu0 0.0
      %1378 = vmatpush1.xpose.msra.mxu0 %v914
      %1379 = vmatprep.subr.mxu0 0.0
      %1380 = vmatpush1.xpose.msra.mxu0 %v917
      %1381 = vmatprep.subr.mxu0 0.0
      %1382 = vmatpush1.xpose.msra.mxu0 %v920
      %1383 = vmatprep.subr.mxu0 0.0
      %1384 = vmatpush1.xpose.msra.mxu0 %v923
      %1385 = vmatprep.subr.mxu0 0.0
      %1386 = vmatpush1.xpose.msra.mxu0 %v926
      %1387 = vmatprep.subr.mxu0 0.0
      %1388 = vmatpush1.xpose.msra.mxu0 %v929
      %1389 = vmatprep.subr.mxu0 0.0
      %1390 = vmatpush1.xpose.msra.mxu0 %v932
      %1391 = vmatprep.subr.mxu0 0.0
      %1392 = vmatpush1.xpose.msra.mxu0 %v935
      %1393 = vmatprep.subr.mxu0 0.0
      %1394 = vmatpush1.xpose.msra.mxu0 %v938
      %1395 = vmatprep.subr.mxu0 0.0
      %1396 = vmatpush1.xpose.msra.mxu0 %v941
      %1397 = vmatprep.subr.mxu0 0.0
      %1398 = vmatpush1.xpose.msra.mxu0 %v944
      %1399 = vmatprep.subr.mxu0 0.0
      %1400 = vmatpush1.xpose.msra.mxu0 %v947
      %1401 = vmatprep.subr.mxu0 0.0
      %1402 = vmatpush1.xpose.msra.mxu0 %v950
      %1403 = vmatprep.subr.mxu0 0.0
      %1404 = vmatpush1.xpose.msra.mxu0 %v953
      %1405 = vmatprep.subr.mxu0 0.0
      %1406 = vmatpush1.xpose.msra.mxu0 %v956
      %1407 = vmatprep.subr.mxu0 0.0
      %1408 = vmatpush1.xpose.msra.mxu0 %v959
      %1409 = vmatprep.subr.mxu0 0.0
      %1410 = vmatpush1.xpose.msra.mxu0 %v962
      %1411 = vmatprep.subr.mxu0 0.0
      %1412 = vmatpush1.xpose.msra.mxu0 %v965
      %1413 = vmatprep.subr.mxu0 0.0
      %1414 = vmatpush1.xpose.msra.mxu0 %v968
      %1415 = vmatprep.subr.mxu0 0.0
      %1416 = vmatpush1.xpose.msra.mxu0 %v971
      %1417 = vmatprep.mubr.f32.mxu0 0.0
      %1418 = vmatmul.mubr.f32.gmra.mrb[0].mxu0 %v479
      %v1419 = vpop.f32.mrb[0].mxu0
      %v1420 = vadd.f32 %v455, %v1419
      %v1421 = vpop.f32.mrb[0].mxu0
      %v1422 = vadd.f32 %v455, %v1421
      %1423 = vmatprep.mubr.f32.mxu0 0.0
      %1424 = vmatmul.mubr.f32.gmra.mrb[0].mxu0 %v482
      %v1425 = vpop.f32.mrb[0].mxu0
      %v1426 = vadd.f32 %v460, %v1425
      %v1427 = vpop.f32.mrb[0].mxu0
      %v1428 = vadd.f32 %v460, %v1427
      %1429 = vmatprep.mubr.f32.mxu0 0.0
      %1430 = vmatmul.mubr.f32.gmra.mrb[0].mxu0 %v485
      %v1431 = vpop.f32.mrb[0].mxu0
      %v1432 = vadd.f32 %v465, %v1431
      %v1433 = vpop.f32.mrb[0].mxu0
      %v1434 = vadd.f32 %v465, %v1433
      %1435 = vmatprep.mubr.f32.mxu0 0.0
      %1436 = vmatmul.mubr.f32.gmra.mrb[0].mxu0 %v488
      %v1437 = vpop.f32.mrb[0].mxu0
      %v1438 = vadd.f32 %v470, %v1437
      %v1439 = vpop.f32.mrb[0].mxu0
      %v1440 = vadd.f32 %v470, %v1439
      %1441 = vmatprep.mubr.f32.mxu0 0.0
      %1442 = vmatmul.mubr.f32.gmra.mrb[0].mxu0 %v491
      %v1443 = vpop.f32.mrb[0].mxu0
      %v1444 = vadd.f32 %v475, %v1443
      %v1445 = vpop.f32.mrb[0].mxu0
      %v1446 = vadd.f32 %v475, %v1445
      %1447 = vdwg.mxu0
      %v1448 = vmul.f32 %v1040, 0.5
      %v1449 = vmul.f32 %v1042, 0.5
      %v1450 = vmul.f32 %v1135, 0.5
      %v1451 = vmul.f32 %v1137, 0.5
      %v1452 = vmul.f32 %v1230, 0.5
      %v1453 = vmul.f32 %v1232, 0.5
      %v1454 = vmul.f32 %v1325, 0.5
      %v1455 = vmul.f32 %v1327, 0.5
      %v1456 = vmul.f32 %v1420, 0.5
      %v1457 = vmul.f32 %v1422, 0.5
      %v1458 = vmul.f32 %v1046, 0.5
      %v1459 = vmul.f32 %v1048, 0.5
      %v1460 = vmul.f32 %v1141, 0.5
      %v1461 = vmul.f32 %v1143, 0.5
      %v1462 = vmul.f32 %v1236, 0.5
      %v1463 = vmul.f32 %v1238, 0.5
      %v1464 = vmul.f32 %v1331, 0.5
      %v1465 = vmul.f32 %v1333, 0.5
      %v1466 = vmul.f32 %v1426, 0.5
      %v1467 = vmul.f32 %v1428, 0.5
      %v1468 = vmul.f32 %v1052, 0.5
      %v1469 = vmul.f32 %v1054, 0.5
      %v1470 = vmul.f32 %v1147, 0.5
      %v1471 = vmul.f32 %v1149, 0.5
      %v1472 = vmul.f32 %v1242, 0.5
      %v1473 = vmul.f32 %v1244, 0.5
      %v1474 = vmul.f32 %v1337, 0.5
      %v1475 = vmul.f32 %v1339, 0.5
      %v1476 = vmul.f32 %v1432, 0.5
      %v1477 = vmul.f32 %v1434, 0.5
      %v1478 = vmul.f32 %v1058, 0.5
      %v1479 = vmul.f32 %v1060, 0.5
      %v1480 = vmul.f32 %v1153, 0.5
      %v1481 = vmul.f32 %v1155, 0.5
      %v1482 = vmul.f32 %v1248, 0.5
      %v1483 = vmul.f32 %v1250, 0.5
      %v1484 = vmul.f32 %v1343, 0.5
      %v1485 = vmul.f32 %v1345, 0.5
      %v1486 = vmul.f32 %v1438, 0.5
      %v1487 = vmul.f32 %v1440, 0.5
      %v1488 = vmul.f32 %v1064, 0.5
      %v1489 = vmul.f32 %v1066, 0.5
      %v1490 = vmul.f32 %v1159, 0.5
      %v1491 = vmul.f32 %v1161, 0.5
      %v1492 = vmul.f32 %v1254, 0.5
      %v1493 = vmul.f32 %v1256, 0.5
      %v1494 = vmul.f32 %v1349, 0.5
      %v1495 = vmul.f32 %v1351, 0.5
      %v1496 = vmul.f32 %v1444, 0.5
      %v1497 = vmul.f32 %v1446, 0.5
      %v1498 = vmul.f32 %v1040, 0.70710677
      %v1499 = vmul.f32 %v1042, 0.70710677
      %v1500 = vmul.f32 %v1135, 0.70710677
      %v1501 = vmul.f32 %v1137, 0.70710677
      %v1502 = vmul.f32 %v1230, 0.70710677
      %v1503 = vmul.f32 %v1232, 0.70710677
      %v1504 = vmul.f32 %v1325, 0.70710677
      %v1505 = vmul.f32 %v1327, 0.70710677
      %v1506 = vmul.f32 %v1420, 0.70710677
      %v1507 = vmul.f32 %v1422, 0.70710677
      %v1508 = vmul.f32 %v1046, 0.70710677
      %v1509 = vmul.f32 %v1048, 0.70710677
      %v1510 = vmul.f32 %v1141, 0.70710677
      %v1511 = vmul.f32 %v1143, 0.70710677
      %v1512 = vmul.f32 %v1236, 0.70710677
      %v1513 = vmul.f32 %v1238, 0.70710677
      %v1514 = vmul.f32 %v1331, 0.70710677
      %v1515 = vmul.f32 %v1333, 0.70710677
      %v1516 = vmul.f32 %v1426, 0.70710677
      %v1517 = vmul.f32 %v1428, 0.70710677
      %v1518 = vmul.f32 %v1052, 0.70710677
      %v1519 = vmul.f32 %v1054, 0.70710677
      %v1520 = vmul.f32 %v1147, 0.70710677
      %v1521 = vmul.f32 %v1149, 0.70710677
      %v1522 = vmul.f32 %v1242, 0.70710677
      %v1523 = vmul.f32 %v1244, 0.70710677
      %v1524 = vmul.f32 %v1337, 0.70710677
      %v1525 = vmul.f32 %v1339, 0.70710677
      %v1526 = vmul.f32 %v1432, 0.70710677
      %v1527 = vmul.f32 %v1434, 0.70710677
      %v1528 = vmul.f32 %v1058, 0.70710677
      %v1529 = vmul.f32 %v1060, 0.70710677
      %v1530 = vmul.f32 %v1153, 0.70710677
      %v1531 = vmul.f32 %v1155, 0.70710677
      %v1532 = vmul.f32 %v1248, 0.70710677
      %v1533 = vmul.f32 %v1250, 0.70710677
      %v1534 = vmul.f32 %v1343, 0.70710677
      %v1535 = vmul.f32 %v1345, 0.70710677
      %v1536 = vmul.f32 %v1438, 0.70710677
      %v1537 = vmul.f32 %v1440, 0.70710677
      %v1538 = vmul.f32 %v1064, 0.70710677
      %v1539 = vmul.f32 %v1066, 0.70710677
      %v1540 = vmul.f32 %v1159, 0.70710677
      %v1541 = vmul.f32 %v1161, 0.70710677
      %v1542 = vmul.f32 %v1254, 0.70710677
      %v1543 = vmul.f32 %v1256, 0.70710677
      %v1544 = vmul.f32 %v1349, 0.70710677
      %v1545 = vmul.f32 %v1351, 0.70710677
      %v1546 = vmul.f32 %v1444, 0.70710677
      %v1547 = vmul.f32 %v1446, 0.70710677
      %v1548 = verf.f32.pop %v1498
      %v1549 = verf.f32.pop %v1499
      %v1550 = verf.f32.pop %v1500
      %v1551 = verf.f32.pop %v1501
      %v1552 = verf.f32.pop %v1502
      %v1553 = verf.f32.pop %v1503
      %v1554 = verf.f32.pop %v1504
      %v1555 = verf.f32.pop %v1505
      %v1556 = verf.f32.pop %v1506
      %v1557 = verf.f32.pop %v1507
      %v1558 = verf.f32.pop %v1508
      %v1559 = verf.f32.pop %v1509
      %v1560 = verf.f32.pop %v1510
      %v1561 = verf.f32.pop %v1511
      %v1562 = verf.f32.pop %v1512
      %v1563 = verf.f32.pop %v1513
      %v1564 = verf.f32.pop %v1514
      %v1565 = verf.f32.pop %v1515
      %v1566 = verf.f32.pop %v1516
      %v1567 = verf.f32.pop %v1517
      %v1568 = verf.f32.pop %v1518
      %v1569 = verf.f32.pop %v1519
      %v1570 = verf.f32.pop %v1520
      %v1571 = verf.f32.pop %v1521
      %v1572 = verf.f32.pop %v1522
      %v1573 = verf.f32.pop %v1523
      %v1574 = verf.f32.pop %v1524
      %v1575 = verf.f32.pop %v1525
      %v1576 = verf.f32.pop %v1526
      %v1577 = verf.f32.pop %v1527
      %v1578 = verf.f32.pop %v1528
      %v1579 = verf.f32.pop %v1529
      %v1580 = verf.f32.pop %v1530
      %v1581 = verf.f32.pop %v1531
      %v1582 = verf.f32.pop %v1532
      %v1583 = verf.f32.pop %v1533
      %v1584 = verf.f32.pop %v1534
      %v1585 = verf.f32.pop %v1535
      %v1586 = verf.f32.pop %v1536
      %v1587 = verf.f32.pop %v1537
      %v1588 = verf.f32.pop %v1538
      %v1589 = verf.f32.pop %v1539
      %v1590 = verf.f32.pop %v1540
      %v1591 = verf.f32.pop %v1541
      %v1592 = verf.f32.pop %v1542
      %v1593 = verf.f32.pop %v1543
      %v1594 = verf.f32.pop %v1544
      %v1595 = verf.f32.pop %v1545
      %v1596 = verf.f32.pop %v1546
      %v1597 = verf.f32.pop %v1547
      %v1598 = vadd.f32 %v1548, 1.0
      %v1599 = vadd.f32 %v1549, 1.0
      %v1600 = vadd.f32 %v1550, 1.0
      %v1601 = vadd.f32 %v1551, 1.0
      %v1602 = vadd.f32 %v1552, 1.0
      %v1603 = vadd.f32 %v1553, 1.0
      %v1604 = vadd.f32 %v1554, 1.0
      %v1605 = vadd.f32 %v1555, 1.0
      %v1606 = vadd.f32 %v1556, 1.0
      %v1607 = vadd.f32 %v1557, 1.0
      %v1608 = vadd.f32 %v1558, 1.0
      %v1609 = vadd.f32 %v1559, 1.0
      %v1610 = vadd.f32 %v1560, 1.0
      %v1611 = vadd.f32 %v1561, 1.0
      %v1612 = vadd.f32 %v1562, 1.0
      %v1613 = vadd.f32 %v1563, 1.0
      %v1614 = vadd.f32 %v1564, 1.0
      %v1615 = vadd.f32 %v1565, 1.0
      %v1616 = vadd.f32 %v1566, 1.0
      %v1617 = vadd.f32 %v1567, 1.0
      %v1618 = vadd.f32 %v1568, 1.0
      %v1619 = vadd.f32 %v1569, 1.0
      %v1620 = vadd.f32 %v1570, 1.0
      %v1621 = vadd.f32 %v1571, 1.0
      %v1622 = vadd.f32 %v1572, 1.0
      %v1623 = vadd.f32 %v1573, 1.0
      %v1624 = vadd.f32 %v1574, 1.0
      %v1625 = vadd.f32 %v1575, 1.0
      %v1626 = vadd.f32 %v1576, 1.0
      %v1627 = vadd.f32 %v1577, 1.0
      %v1628 = vadd.f32 %v1578, 1.0
      %v1629 = vadd.f32 %v1579, 1.0
      %v1630 = vadd.f32 %v1580, 1.0
      %v1631 = vadd.f32 %v1581, 1.0
      %v1632 = vadd.f32 %v1582, 1.0
      %v1633 = vadd.f32 %v1583, 1.0
      %v1634 = vadd.f32 %v1584, 1.0
      %v1635 = vadd.f32 %v1585, 1.0
      %v1636 = vadd.f32 %v1586, 1.0
      %v1637 = vadd.f32 %v1587, 1.0
      %v1638 = vadd.f32 %v1588, 1.0
      %v1639 = vadd.f32 %v1589, 1.0
      %v1640 = vadd.f32 %v1590, 1.0
      %v1641 = vadd.f32 %v1591, 1.0
      %v1642 = vadd.f32 %v1592, 1.0
      %v1643 = vadd.f32 %v1593, 1.0
      %v1644 = vadd.f32 %v1594, 1.0
      %v1645 = vadd.f32 %v1595, 1.0
      %v1646 = vadd.f32 %v1596, 1.0
      %v1647 = vadd.f32 %v1597, 1.0
      %v1648 = vmul.f32 %v1448, %v1598
      %v1649 = vmul.f32 %v1449, %v1599
      %v1650 = vmul.f32 %v1450, %v1600
      %v1651 = vmul.f32 %v1451, %v1601
      %v1652 = vmul.f32 %v1452, %v1602
      %v1653 = vmul.f32 %v1453, %v1603
      %v1654 = vmul.f32 %v1454, %v1604
      %v1655 = vmul.f32 %v1455, %v1605
      %v1656 = vmul.f32 %v1456, %v1606
      %v1657 = vmul.f32 %v1457, %v1607
      %v1658 = vmul.f32 %v1458, %v1608
      %v1659 = vmul.f32 %v1459, %v1609
      %v1660 = vmul.f32 %v1460, %v1610
      %v1661 = vmul.f32 %v1461, %v1611
      %v1662 = vmul.f32 %v1462, %v1612
      %v1663 = vmul.f32 %v1463, %v1613
      %v1664 = vmul.f32 %v1464, %v1614
      %v1665 = vmul.f32 %v1465, %v1615
      %v1666 = vmul.f32 %v1466, %v1616
      %v1667 = vmul.f32 %v1467, %v1617
      %v1668 = vmul.f32 %v1468, %v1618
      %v1669 = vmul.f32 %v1469, %v1619
      %v1670 = vmul.f32 %v1470, %v1620
      %v1671 = vmul.f32 %v1471, %v1621
      %v1672 = vmul.f32 %v1472, %v1622
      %v1673 = vmul.f32 %v1473, %v1623
      %v1674 = vmul.f32 %v1474, %v1624
      %v1675 = vmul.f32 %v1475, %v1625
      %v1676 = vmul.f32 %v1476, %v1626
      %v1677 = vmul.f32 %v1477, %v1627
      %v1678 = vmul.f32 %v1478, %v1628
      %v1679 = vmul.f32 %v1479, %v1629
      %v1680 = vmul.f32 %v1480, %v1630
      %v1681 = vmul.f32 %v1481, %v1631
      %v1682 = vmul.f32 %v1482, %v1632
      %v1683 = vmul.f32 %v1483, %v1633
      %v1684 = vmul.f32 %v1484, %v1634
      %v1685 = vmul.f32 %v1485, %v1635
      %v1686 = vmul.f32 %v1486, %v1636
      %v1687 = vmul.f32 %v1487, %v1637
      %v1688 = vmul.f32 %v1488, %v1638
      %v1689 = vmul.f32 %v1489, %v1639
      %v1690 = vmul.f32 %v1490, %v1640
      %v1691 = vmul.f32 %v1491, %v1641
      %v1692 = vmul.f32 %v1492, %v1642
      %v1693 = vmul.f32 %v1493, %v1643
      %v1694 = vmul.f32 %v1494, %v1644
      %v1695 = vmul.f32 %v1495, %v1645
      %v1696 = vmul.f32 %v1496, %v1646
      %v1697 = vmul.f32 %v1497, %v1647
      %v1698 = vld [vmem:[%s3] sm:$0xff]
      %v1699 = vld [vmem:[%s3 + $0x8] sm:$0xff]
      %vm1700 = vcmask 269312
      %v1702 = vsel %vm1700, %v1698, 0
      %v1705 = vsel %vm1700, %v1699, 0
      %vm1707 = vcmask 1040384
      %v1709 = vsel %vm1707, %v1688, 0
      %v1712 = vsel %vm1707, %v1689, 0
      %v1715 = vsel %vm1707, %v1690, 0
      %v1718 = vsel %vm1707, %v1691, 0
      %v1721 = vsel %vm1707, %v1692, 0
      %v1724 = vsel %vm1707, %v1693, 0
      %v1727 = vsel %vm1707, %v1694, 0
      %v1730 = vsel %vm1707, %v1695, 0
      %v1733 = vsel %vm1707, %v1696, 0
      %v1736 = vsel %vm1707, %v1697, 0
      %1738 = vmatprep.subr.mxu0 %v1649
      %1739 = vmatpush1.msra.mxu0 %v1648
      %1740 = vmatprep.subr.mxu0 %v1659
      %1741 = vmatpush1.msra.mxu0 %v1658
      %1742 = vmatprep.subr.mxu0 %v1669
      %1743 = vmatpush1.msra.mxu0 %v1668
      %1744 = vmatprep.subr.mxu0 %v1679
      %1745 = vmatpush1.msra.mxu0 %v1678
      %1746 = vmatprep.subr.mxu0 %v1712
      %1747 = vmatpush1.msra.mxu0 %v1709
      %1748 = vmatprep.subr.mxu0 0.0
      %1749 = vmatpush1.msra.mxu0 0.0
      %1750 = vmatprep.subr.mxu0 0.0
      %1751 = vmatpush1.msra.mxu0 0.0
      %1752 = vmatprep.subr.mxu0 0.0
      %1753 = vmatpush1.msra.mxu0 0.0
      %1754 = vmatprep.subr.mxu0 0.0
      %1755 = vmatpush1.msra.mxu0 0.0
      %1756 = vmatprep.subr.mxu0 0.0
      %1757 = vmatpush1.msra.mxu0 0.0
      %1758 = vmatprep.subr.mxu0 0.0
      %1759 = vmatpush1.msra.mxu0 0.0
      %1760 = vmatprep.subr.mxu0 0.0
      %1761 = vmatpush1.msra.mxu0 0.0
      %1762 = vmatprep.subr.mxu0 0.0
      %1763 = vmatpush1.msra.mxu0 0.0
      %1764 = vmatprep.subr.mxu0 0.0
      %1765 = vmatpush1.msra.mxu0 0.0
      %1766 = vmatprep.subr.mxu0 0.0
      %1767 = vmatpush1.msra.mxu0 0.0
      %1768 = vmatprep.subr.mxu0 0.0
      %1769 = vmatpush1.msra.mxu0 0.0
      %1770 = vmatprep.subr.mxu0 0.0
      %1771 = vmatpush1.msra.mxu0 0.0
      %1772 = vmatprep.subr.mxu0 0.0
      %1773 = vmatpush1.msra.mxu0 0.0
      %1774 = vmatprep.subr.mxu0 0.0
      %1775 = vmatpush1.msra.mxu0 0.0
      %1776 = vmatprep.subr.mxu0 0.0
      %1777 = vmatpush1.msra.mxu0 0.0
      %1778 = vmatprep.subr.mxu0 0.0
      %1779 = vmatpush1.msra.mxu0 0.0
      %1780 = vmatprep.subr.mxu0 0.0
      %1781 = vmatpush1.msra.mxu0 0.0
      %1782 = vmatprep.subr.mxu0 0.0
      %1783 = vmatpush1.msra.mxu0 0.0
      %1784 = vmatprep.subr.mxu0 0.0
      %1785 = vmatpush1.msra.mxu0 0.0
      %1786 = vmatprep.subr.mxu0 0.0
      %1787 = vmatpush1.msra.mxu0 0.0
      %1788 = vmatprep.subr.mxu0 0.0
      %1789 = vmatpush1.msra.mxu0 0.0
      %1790 = vmatprep.subr.mxu0 0.0
      %1791 = vmatpush1.msra.mxu0 0.0
      %1792 = vmatprep.subr.mxu0 0.0
      %1793 = vmatpush1.msra.mxu0 0.0
      %1794 = vmatprep.subr.mxu0 0.0
      %1795 = vmatpush1.msra.mxu0 0.0
      %1796 = vmatprep.subr.mxu0 0.0
      %1797 = vmatpush1.msra.mxu0 0.0
      %1798 = vmatprep.subr.mxu0 0.0
      %1799 = vmatpush1.msra.mxu0 0.0
      %1800 = vmatprep.subr.mxu0 0.0
      %1801 = vmatpush1.msra.mxu0 0.0
      %1802 = vmatprep.mubr.f32.mxu0 0.0
      %1803 = vmatmul.mubr.f32.gmra.mrb[0].mxu0 %v1702
      %v1804 = vpop.f32.mrb[0].mxu0
      %v1805 = vadd.f32 0.0, %v1804
      %v1806 = vpop.f32.mrb[0].mxu0
      %v1807 = vadd.f32 0.0, %v1806
      %1808 = vmatprep.mubr.f32.mxu0 0.0
      %1809 = vmatmul.mubr.f32.gmra.mrb[0].mxu0 %v1705
      %v1810 = vpop.f32.mrb[0].mxu0
      %v1811 = vadd.f32 0.0, %v1810
      %v1812 = vpop.f32.mrb[0].mxu0
      %v1813 = vadd.f32 0.0, %v1812
      %1814 = vdwg.mxu0
      %1815 = vmatprep.subr.mxu0 %v1651
      %1816 = vmatpush1.msra.mxu0 %v1650
      %1817 = vmatprep.subr.mxu0 %v1661
      %1818 = vmatpush1.msra.mxu0 %v1660
      %1819 = vmatprep.subr.mxu0 %v1671
      %1820 = vmatpush1.msra.mxu0 %v1670
      %1821 = vmatprep.subr.mxu0 %v1681
      %1822 = vmatpush1.msra.mxu0 %v1680
      %1823 = vmatprep.subr.mxu0 %v1718
      %1824 = vmatpush1.msra.mxu0 %v1715
      %1825 = vmatprep.subr.mxu0 0.0
      %1826 = vmatpush1.msra.mxu0 0.0
      %1827 = vmatprep.subr.mxu0 0.0
      %1828 = vmatpush1.msra.mxu0 0.0
      %1829 = vmatprep.subr.mxu0 0.0
      %1830 = vmatpush1.msra.mxu0 0.0
      %1831 = vmatprep.subr.mxu0 0.0
      %1832 = vmatpush1.msra.mxu0 0.0
      %1833 = vmatprep.subr.mxu0 0.0
      %1834 = vmatpush1.msra.mxu0 0.0
      %1835 = vmatprep.subr.mxu0 0.0
      %1836 = vmatpush1.msra.mxu0 0.0
      %1837 = vmatprep.subr.mxu0 0.0
      %1838 = vmatpush1.msra.mxu0 0.0
      %1839 = vmatprep.subr.mxu0 0.0
      %1840 = vmatpush1.msra.mxu0 0.0
      %1841 = vmatprep.subr.mxu0 0.0
      %1842 = vmatpush1.msra.mxu0 0.0
      %1843 = vmatprep.subr.mxu0 0.0
      %1844 = vmatpush1.msra.mxu0 0.0
      %1845 = vmatprep.subr.mxu0 0.0
      %1846 = vmatpush1.msra.mxu0 0.0
      %1847 = vmatprep.subr.mxu0 0.0
      %1848 = vmatpush1.msra.mxu0 0.0
      %1849 = vmatprep.subr.mxu0 0.0
      %1850 = vmatpush1.msra.mxu0 0.0
      %1851 = vmatprep.subr.mxu0 0.0
      %1852 = vmatpush1.msra.mxu0 0.0
      %1853 = vmatprep.subr.mxu0 0.0
      %1854 = vmatpush1.msra.mxu0 0.0
      %1855 = vmatprep.subr.mxu0 0.0
      %1856 = vmatpush1.msra.mxu0 0.0
      %1857 = vmatprep.subr.mxu0 0.0
      %1858 = vmatpush1.msra.mxu0 0.0
      %1859 = vmatprep.subr.mxu0 0.0
      %1860 = vmatpush1.msra.mxu0 0.0
      %1861 = vmatprep.subr.mxu0 0.0
      %1862 = vmatpush1.msra.mxu0 0.0
      %1863 = vmatprep.subr.mxu0 0.0
      %1864 = vmatpush1.msra.mxu0 0.0
      %1865 = vmatprep.subr.mxu0 0.0
      %1866 = vmatpush1.msra.mxu0 0.0
      %1867 = vmatprep.subr.mxu0 0.0
      %1868 = vmatpush1.msra.mxu0 0.0
      %1869 = vmatprep.subr.mxu0 0.0
      %1870 = vmatpush1.msra.mxu0 0.0
      %1871 = vmatprep.subr.mxu0 0.0
      %1872 = vmatpush1.msra.mxu0 0.0
      %1873 = vmatprep.subr.mxu0 0.0
      %1874 = vmatpush1.msra.mxu0 0.0
      %1875 = vmatprep.subr.mxu0 0.0
      %1876 = vmatpush1.msra.mxu0 0.0
      %1877 = vmatprep.subr.mxu0 0.0
      %1878 = vmatpush1.msra.mxu0 0.0
      %1879 = vmatprep.mubr.f32.mxu0 0.0
      %1880 = vmatmul.mubr.f32.gmra.mrb[0].mxu0 %v1702
      %v1881 = vpop.f32.mrb[0].mxu0
      %v1882 = vadd.f32 0.0, %v1881
      %v1883 = vpop.f32.mrb[0].mxu0
      %v1884 = vadd.f32 0.0, %v1883
      %1885 = vmatprep.mubr.f32.mxu0 0.0
      %1886 = vmatmul.mubr.f32.gmra.mrb[0].mxu0 %v1705
      %v1887 = vpop.f32.mrb[0].mxu0
      %v1888 = vadd.f32 0.0, %v1887
      %v1889 = vpop.f32.mrb[0].mxu0
      %v1890 = vadd.f32 0.0, %v1889
      %1891 = vdwg.mxu0
      %1892 = vmatprep.subr.mxu0 %v1653
      %1893 = vmatpush1.msra.mxu0 %v1652
      %1894 = vmatprep.subr.mxu0 %v1663
      %1895 = vmatpush1.msra.mxu0 %v1662
      %1896 = vmatprep.subr.mxu0 %v1673
      %1897 = vmatpush1.msra.mxu0 %v1672
      %1898 = vmatprep.subr.mxu0 %v1683
      %1899 = vmatpush1.msra.mxu0 %v1682
      %1900 = vmatprep.subr.mxu0 %v1724
      %1901 = vmatpush1.msra.mxu0 %v1721
      %1902 = vmatprep.subr.mxu0 0.0
      %1903 = vmatpush1.msra.mxu0 0.0
      %1904 = vmatprep.subr.mxu0 0.0
      %1905 = vmatpush1.msra.mxu0 0.0
      %1906 = vmatprep.subr.mxu0 0.0
      %1907 = vmatpush1.msra.mxu0 0.0
      %1908 = vmatprep.subr.mxu0 0.0
      %1909 = vmatpush1.msra.mxu0 0.0
      %1910 = vmatprep.subr.mxu0 0.0
      %1911 = vmatpush1.msra.mxu0 0.0
      %1912 = vmatprep.subr.mxu0 0.0
      %1913 = vmatpush1.msra.mxu0 0.0
      %1914 = vmatprep.subr.mxu0 0.0
      %1915 = vmatpush1.msra.mxu0 0.0
      %1916 = vmatprep.subr.mxu0 0.0
      %1917 = vmatpush1.msra.mxu0 0.0
      %1918 = vmatprep.subr.mxu0 0.0
      %1919 = vmatpush1.msra.mxu0 0.0
      %1920 = vmatprep.subr.mxu0 0.0
      %1921 = vmatpush1.msra.mxu0 0.0
      %1922 = vmatprep.subr.mxu0 0.0
      %1923 = vmatpush1.msra.mxu0 0.0
      %1924 = vmatprep.subr.mxu0 0.0
      %1925 = vmatpush1.msra.mxu0 0.0
      %1926 = vmatprep.subr.mxu0 0.0
      %1927 = vmatpush1.msra.mxu0 0.0
      %1928 = vmatprep.subr.mxu0 0.0
      %1929 = vmatpush1.msra.mxu0 0.0
      %1930 = vmatprep.subr.mxu0 0.0
      %1931 = vmatpush1.msra.mxu0 0.0
      %1932 = vmatprep.subr.mxu0 0.0
      %1933 = vmatpush1.msra.mxu0 0.0
      %1934 = vmatprep.subr.mxu0 0.0
      %1935 = vmatpush1.msra.mxu0 0.0
      %1936 = vmatprep.subr.mxu0 0.0
      %1937 = vmatpush1.msra.mxu0 0.0
      %1938 = vmatprep.subr.mxu0 0.0
      %1939 = vmatpush1.msra.mxu0 0.0
      %1940 = vmatprep.subr.mxu0 0.0
      %1941 = vmatpush1.msra.mxu0 0.0
      %1942 = vmatprep.subr.mxu0 0.0
      %1943 = vmatpush1.msra.mxu0 0.0
      %1944 = vmatprep.subr.mxu0 0.0
      %1945 = vmatpush1.msra.mxu0 0.0
      %1946 = vmatprep.subr.mxu0 0.0
      %1947 = vmatpush1.msra.mxu0 0.0
      %1948 = vmatprep.subr.mxu0 0.0
      %1949 = vmatpush1.msra.mxu0 0.0
      %1950 = vmatprep.subr.mxu0 0.0
      %1951 = vmatpush1.msra.mxu0 0.0
      %1952 = vmatprep.subr.mxu0 0.0
      %1953 = vmatpush1.msra.mxu0 0.0
      %1954 = vmatprep.subr.mxu0 0.0
      %1955 = vmatpush1.msra.mxu0 0.0
      %1956 = vmatprep.mubr.f32.mxu0 0.0
      %1957 = vmatmul.mubr.f32.gmra.mrb[0].mxu0 %v1702
      %v1958 = vpop.f32.mrb[0].mxu0
      %v1959 = vadd.f32 0.0, %v1958
      %v1960 = vpop.f32.mrb[0].mxu0
      %v1961 = vadd.f32 0.0, %v1960
      %1962 = vmatprep.mubr.f32.mxu0 0.0
      %1963 = vmatmul.mubr.f32.gmra.mrb[0].mxu0 %v1705
      %v1964 = vpop.f32.mrb[0].mxu0
      %v1965 = vadd.f32 0.0, %v1964
      %v1966 = vpop.f32.mrb[0].mxu0
      %v1967 = vadd.f32 0.0, %v1966
      %1968 = vdwg.mxu0
      %1969 = vmatprep.subr.mxu0 %v1655
      %1970 = vmatpush1.msra.mxu0 %v1654
      %1971 = vmatprep.subr.mxu0 %v1665
      %1972 = vmatpush1.msra.mxu0 %v1664
      %1973 = vmatprep.subr.mxu0 %v1675
      %1974 = vmatpush1.msra.mxu0 %v1674
      %1975 = vmatprep.subr.mxu0 %v1685
      %1976 = vmatpush1.msra.mxu0 %v1684
      %1977 = vmatprep.subr.mxu0 %v1730
      %1978 = vmatpush1.msra.mxu0 %v1727
      %1979 = vmatprep.subr.mxu0 0.0
      %1980 = vmatpush1.msra.mxu0 0.0
      %1981 = vmatprep.subr.mxu0 0.0
      %1982 = vmatpush1.msra.mxu0 0.0
      %1983 = vmatprep.subr.mxu0 0.0
      %1984 = vmatpush1.msra.mxu0 0.0
      %1985 = vmatprep.subr.mxu0 0.0
      %1986 = vmatpush1.msra.mxu0 0.0
      %1987 = vmatprep.subr.mxu0 0.0
      %1988 = vmatpush1.msra.mxu0 0.0
      %1989 = vmatprep.subr.mxu0 0.0
      %1990 = vmatpush1.msra.mxu0 0.0
      %1991 = vmatprep.subr.mxu0 0.0
      %1992 = vmatpush1.msra.mxu0 0.0
      %1993 = vmatprep.subr.mxu0 0.0
      %1994 = vmatpush1.msra.mxu0 0.0
      %1995 = vmatprep.subr.mxu0 0.0
      %1996 = vmatpush1.msra.mxu0 0.0
      %1997 = vmatprep.subr.mxu0 0.0
      %1998 = vmatpush1.msra.mxu0 0.0
      %1999 = vmatprep.subr.mxu0 0.0
      %2000 = vmatpush1.msra.mxu0 0.0
      %2001 = vmatprep.subr.mxu0 0.0
      %2002 = vmatpush1.msra.mxu0 0.0
      %2003 = vmatprep.subr.mxu0 0.0
      %2004 = vmatpush1.msra.mxu0 0.0
      %2005 = vmatprep.subr.mxu0 0.0
      %2006 = vmatpush1.msra.mxu0 0.0
      %2007 = vmatprep.subr.mxu0 0.0
      %2008 = vmatpush1.msra.mxu0 0.0
      %2009 = vmatprep.subr.mxu0 0.0
      %2010 = vmatpush1.msra.mxu0 0.0
      %2011 = vmatprep.subr.mxu0 0.0
      %2012 = vmatpush1.msra.mxu0 0.0
      %2013 = vmatprep.subr.mxu0 0.0
      %2014 = vmatpush1.msra.mxu0 0.0
      %2015 = vmatprep.subr.mxu0 0.0
      %2016 = vmatpush1.msra.mxu0 0.0
      %2017 = vmatprep.subr.mxu0 0.0
      %2018 = vmatpush1.msra.mxu0 0.0
      %2019 = vmatprep.subr.mxu0 0.0
      %2020 = vmatpush1.msra.mxu0 0.0
      %2021 = vmatprep.subr.mxu0 0.0
      %2022 = vmatpush1.msra.mxu0 0.0
      %2023 = vmatprep.subr.mxu0 0.0
      %2024 = vmatpush1.msra.mxu0 0.0
      %2025 = vmatprep.subr.mxu0 0.0
      %2026 = vmatpush1.msra.mxu0 0.0
      %2027 = vmatprep.subr.mxu0 0.0
      %2028 = vmatpush1.msra.mxu0 0.0
      %2029 = vmatprep.subr.mxu0 0.0
      %2030 = vmatpush1.msra.mxu0 0.0
      %2031 = vmatprep.subr.mxu0 0.0
      %2032 = vmatpush1.msra.mxu0 0.0
      %2033 = vmatprep.mubr.f32.mxu0 0.0
      %2034 = vmatmul.mubr.f32.gmra.mrb[0].mxu0 %v1702
      %v2035 = vpop.f32.mrb[0].mxu0
      %v2036 = vadd.f32 0.0, %v2035
      %v2037 = vpop.f32.mrb[0].mxu0
      %v2038 = vadd.f32 0.0, %v2037
      %2039 = vmatprep.mubr.f32.mxu0 0.0
      %2040 = vmatmul.mubr.f32.gmra.mrb[0].mxu0 %v1705
      %v2041 = vpop.f32.mrb[0].mxu0
      %v2042 = vadd.f32 0.0, %v2041
      %v2043 = vpop.f32.mrb[0].mxu0
      %v2044 = vadd.f32 0.0, %v2043
      %2045 = vdwg.mxu0
      %2046 = vmatprep.subr.mxu0 %v1657
      %2047 = vmatpush1.msra.mxu0 %v1656
      %2048 = vmatprep.subr.mxu0 %v1667
      %2049 = vmatpush1.msra.mxu0 %v1666
      %2050 = vmatprep.subr.mxu0 %v1677
      %2051 = vmatpush1.msra.mxu0 %v1676
      %2052 = vmatprep.subr.mxu0 %v1687
      %2053 = vmatpush1.msra.mxu0 %v1686
      %2054 = vmatprep.subr.mxu0 %v1736
      %2055 = vmatpush1.msra.mxu0 %v1733
      %2056 = vmatprep.subr.mxu0 0.0
      %2057 = vmatpush1.msra.mxu0 0.0
      %2058 = vmatprep.subr.mxu0 0.0
      %2059 = vmatpush1.msra.mxu0 0.0
      %2060 = vmatprep.subr.mxu0 0.0
      %2061 = vmatpush1.msra.mxu0 0.0
      %2062 = vmatprep.subr.mxu0 0.0
      %2063 = vmatpush1.msra.mxu0 0.0
      %2064 = vmatprep.subr.mxu0 0.0
      %2065 = vmatpush1.msra.mxu0 0.0
      %2066 = vmatprep.subr.mxu0 0.0
      %2067 = vmatpush1.msra.mxu0 0.0
      %2068 = vmatprep.subr.mxu0 0.0
      %2069 = vmatpush1.msra.mxu0 0.0
      %2070 = vmatprep.subr.mxu0 0.0
      %2071 = vmatpush1.msra.mxu0 0.0
      %2072 = vmatprep.subr.mxu0 0.0
      %2073 = vmatpush1.msra.mxu0 0.0
      %2074 = vmatprep.subr.mxu0 0.0
      %2075 = vmatpush1.msra.mxu0 0.0
      %2076 = vmatprep.subr.mxu0 0.0
      %2077 = vmatpush1.msra.mxu0 0.0
      %2078 = vmatprep.subr.mxu0 0.0
      %2079 = vmatpush1.msra.mxu0 0.0
      %2080 = vmatprep.subr.mxu0 0.0
      %2081 = vmatpush1.msra.mxu0 0.0
      %2082 = vmatprep.subr.mxu0 0.0
      %2083 = vmatpush1.msra.mxu0 0.0
      %2084 = vmatprep.subr.mxu0 0.0
      %2085 = vmatpush1.msra.mxu0 0.0
      %2086 = vmatprep.subr.mxu0 0.0
      %2087 = vmatpush1.msra.mxu0 0.0
      %2088 = vmatprep.subr.mxu0 0.0
      %2089 = vmatpush1.msra.mxu0 0.0
      %2090 = vmatprep.subr.mxu0 0.0
      %2091 = vmatpush1.msra.mxu0 0.0
      %2092 = vmatprep.subr.mxu0 0.0
      %2093 = vmatpush1.msra.mxu0 0.0
      %2094 = vmatprep.subr.mxu0 0.0
      %2095 = vmatpush1.msra.mxu0 0.0
      %2096 = vmatprep.subr.mxu0 0.0
      %2097 = vmatpush1.msra.mxu0 0.0
      %2098 = vmatprep.subr.mxu0 0.0
      %2099 = vmatpush1.msra.mxu0 0.0
      %2100 = vmatprep.subr.mxu0 0.0
      %2101 = vmatpush1.msra.mxu0 0.0
      %2102 = vmatprep.subr.mxu0 0.0
      %2103 = vmatpush1.msra.mxu0 0.0
      %2104 = vmatprep.subr.mxu0 0.0
      %2105 = vmatpush1.msra.mxu0 0.0
      %2106 = vmatprep.subr.mxu0 0.0
      %2107 = vmatpush1.msra.mxu0 0.0
      %2108 = vmatprep.subr.mxu0 0.0
      %2109 = vmatpush1.msra.mxu0 0.0
      %2110 = vmatprep.mubr.f32.mxu0 0.0
      %2111 = vmatmul.mubr.f32.gmra.mrb[0].mxu0 %v1702
      %v2112 = vpop.f32.mrb[0].mxu0
      %v2113 = vadd.f32 0.0, %v2112
      %v2114 = vpop.f32.mrb[0].mxu0
      %v2115 = vadd.f32 0.0, %v2114
      %2116 = vmatprep.mubr.f32.mxu0 0.0
      %2117 = vmatmul.mubr.f32.gmra.mrb[0].mxu0 %v1705
      %v2118 = vpop.f32.mrb[0].mxu0
      %v2119 = vadd.f32 0.0, %v2118
      %v2120 = vpop.f32.mrb[0].mxu0
      %v2121 = vadd.f32 0.0, %v2120
      %2122 = vdwg.mxu0
      %v2133 = vrot.slane %v1805, 2
      %v2134 = vrot.slane %v1807, 2
      %v2135 = vrot.slane %v1882, 2
      %v2136 = vrot.slane %v1884, 2
      %v2137 = vrot.slane %v1959, 2
      %v2138 = vrot.slane %v1961, 2
      %v2139 = vrot.slane %v2036, 2
      %v2140 = vrot.slane %v2038, 2
      %v2141 = vrot.slane %v2113, 2
      %v2142 = vrot.slane %v2115, 2
      %v2153 = vsub.f32 %v1805, %v2133
      %v2154 = vsub.f32 %v1807, %v2134
      %v2155 = vsub.f32 %v1882, %v2135
      %v2156 = vsub.f32 %v1884, %v2136
      %v2157 = vsub.f32 %v1959, %v2137
      %v2158 = vsub.f32 %v1961, %v2138
      %v2159 = vsub.f32 %v2036, %v2139
      %v2160 = vsub.f32 %v2038, %v2140
      %v2161 = vsub.f32 %v2113, %v2141
      %v2162 = vsub.f32 %v2115, %v2142
      %v2173 = vrot.slane %v2153, 4
      %v2174 = vrot.slane %v2154, 4
      %v2175 = vrot.slane %v2155, 4
      %v2176 = vrot.slane %v2156, 4
      %v2177 = vrot.slane %v2157, 4
      %v2178 = vrot.slane %v2158, 4
      %v2179 = vrot.slane %v2159, 4
      %v2180 = vrot.slane %v2160, 4
      %v2181 = vrot.slane %v2161, 4
      %v2182 = vrot.slane %v2162, 4
      %v2193 = vmul.f32 %v1805, %v2173
      %v2194 = vmul.f32 %v1807, %v2174
      %v2195 = vmul.f32 %v1882, %v2175
      %v2196 = vmul.f32 %v1884, %v2176
      %v2197 = vmul.f32 %v1959, %v2177
      %v2198 = vmul.f32 %v1961, %v2178
      %v2199 = vmul.f32 %v2036, %v2179
      %v2200 = vmul.f32 %v2038, %v2180
      %v2201 = vmul.f32 %v2113, %v2181
      %v2202 = vmul.f32 %v2115, %v2182
      %v2203 = vrot.slane %v2153, 2
      %v2204 = vrot.slane %v2154, 2
      %v2205 = vrot.slane %v2155, 2
      %v2206 = vrot.slane %v2156, 2
      %v2207 = vrot.slane %v2157, 2
      %v2208 = vrot.slane %v2158, 2
      %v2209 = vrot.slane %v2159, 2
      %v2210 = vrot.slane %v2160, 2
      %v2211 = vrot.slane %v2161, 2
      %v2212 = vrot.slane %v2162, 2
      %v2223 = vmul.f32 %v1805, %v2203
      %v2224 = vmul.f32 %v1807, %v2204
      %v2225 = vmul.f32 %v1882, %v2205
      %v2226 = vmul.f32 %v1884, %v2206
      %v2227 = vmul.f32 %v1959, %v2207
      %v2228 = vmul.f32 %v1961, %v2208
      %v2229 = vmul.f32 %v2036, %v2209
      %v2230 = vmul.f32 %v2038, %v2210
      %v2231 = vmul.f32 %v2113, %v2211
      %v2232 = vmul.f32 %v2115, %v2212
      %v2243 = vrot.slane %v2193, 1
      %v2244 = vrot.slane %v2194, 1
      %v2245 = vrot.slane %v2195, 1
      %v2246 = vrot.slane %v2196, 1
      %v2247 = vrot.slane %v2197, 1
      %v2248 = vrot.slane %v2198, 1
      %v2249 = vrot.slane %v2199, 1
      %v2250 = vrot.slane %v2200, 1
      %v2251 = vrot.slane %v2201, 1
      %v2252 = vrot.slane %v2202, 1
      %v2263 = vadd.f32 %v2193, %v2243
      %v2264 = vadd.f32 %v2194, %v2244
      %v2265 = vadd.f32 %v2195, %v2245
      %v2266 = vadd.f32 %v2196, %v2246
      %v2267 = vadd.f32 %v2197, %v2247
      %v2268 = vadd.f32 %v2198, %v2248
      %v2269 = vadd.f32 %v2199, %v2249
      %v2270 = vadd.f32 %v2200, %v2250
      %v2271 = vadd.f32 %v2201, %v2251
      %v2272 = vadd.f32 %v2202, %v2252
      %v2273 = vmul.f32 %v2263, 0.70710677
      %v2274 = vmul.f32 %v2264, 0.70710677
      %v2275 = vmul.f32 %v2265, 0.70710677
      %v2276 = vmul.f32 %v2266, 0.70710677
      %v2277 = vmul.f32 %v2267, 0.70710677
      %v2278 = vmul.f32 %v2268, 0.70710677
      %v2279 = vmul.f32 %v2269, 0.70710677
      %v2280 = vmul.f32 %v2270, 0.70710677
      %v2281 = vmul.f32 %v2271, 0.70710677
      %v2282 = vmul.f32 %v2272, 0.70710677
      %v2283 = vsub.f32 0.0, %v2273
      %v2284 = vsub.f32 0.0, %v2274
      %v2285 = vsub.f32 0.0, %v2275
      %v2286 = vsub.f32 0.0, %v2276
      %v2287 = vsub.f32 0.0, %v2277
      %v2288 = vsub.f32 0.0, %v2278
      %v2289 = vsub.f32 0.0, %v2279
      %v2290 = vsub.f32 0.0, %v2280
      %v2291 = vsub.f32 0.0, %v2281
      %v2292 = vsub.f32 0.0, %v2282
      %v2293 = vmul.f32 %v2283, 1.442695
      %v2294 = vpow.pop %v2293
      %v2295 = vmul.f32 %v2284, 1.442695
      %v2296 = vpow.pop %v2295
      %v2297 = vmul.f32 %v2285, 1.442695
      %v2298 = vpow.pop %v2297
      %v2299 = vmul.f32 %v2286, 1.442695
      %v2300 = vpow.pop %v2299
      %v2301 = vmul.f32 %v2287, 1.442695
      %v2302 = vpow.pop %v2301
      %v2303 = vmul.f32 %v2288, 1.442695
      %v2304 = vpow.pop %v2303
      %v2305 = vmul.f32 %v2289, 1.442695
      %v2306 = vpow.pop %v2305
      %v2307 = vmul.f32 %v2290, 1.442695
      %v2308 = vpow.pop %v2307
      %v2309 = vmul.f32 %v2291, 1.442695
      %v2310 = vpow.pop %v2309
      %v2311 = vmul.f32 %v2292, 1.442695
      %v2312 = vpow.pop %v2311
      %v2313 = vadd.f32 %v2294, 1.0
      %v2314 = vadd.f32 %v2296, 1.0
      %v2315 = vadd.f32 %v2298, 1.0
      %v2316 = vadd.f32 %v2300, 1.0
      %v2317 = vadd.f32 %v2302, 1.0
      %v2318 = vadd.f32 %v2304, 1.0
      %v2319 = vadd.f32 %v2306, 1.0
      %v2320 = vadd.f32 %v2308, 1.0
      %v2321 = vadd.f32 %v2310, 1.0
      %v2322 = vadd.f32 %v2312, 1.0
      %v2323 = vrcp.pop %v2313
      %v2324 = vrcp.pop %v2314
      %v2325 = vrcp.pop %v2315
      %v2326 = vrcp.pop %v2316
      %v2327 = vrcp.pop %v2317
      %v2328 = vrcp.pop %v2318
      %v2329 = vrcp.pop %v2319
      %v2330 = vrcp.pop %v2320
      %v2331 = vrcp.pop %v2321
      %v2332 = vrcp.pop %v2322
      %v2343 = vrot.slane %v2223, 1
      %v2344 = vrot.slane %v2224, 1
      %v2345 = vrot.slane %v2225, 1
      %v2346 = vrot.slane %v2226, 1
      %v2347 = vrot.slane %v2227, 1
      %v2348 = vrot.slane %v2228, 1
      %v2349 = vrot.slane %v2229, 1
      %v2350 = vrot.slane %v2230, 1
      %v2351 = vrot.slane %v2231, 1
      %v2352 = vrot.slane %v2232, 1
      %v2363 = vadd.f32 %v2223, %v2343
      %v2364 = vadd.f32 %v2224, %v2344
      %v2365 = vadd.f32 %v2225, %v2345
      %v2366 = vadd.f32 %v2226, %v2346
      %v2367 = vadd.f32 %v2227, %v2347
      %v2368 = vadd.f32 %v2228, %v2348
      %v2369 = vadd.f32 %v2229, %v2349
      %v2370 = vadd.f32 %v2230, %v2350
      %v2371 = vadd.f32 %v2231, %v2351
      %v2372 = vadd.f32 %v2232, %v2352
      %v2373 = vmul.f32 %v2363, 0.70710677
      %v2374 = vmul.f32 %v2364, 0.70710677
      %v2375 = vmul.f32 %v2365, 0.70710677
      %v2376 = vmul.f32 %v2366, 0.70710677
      %v2377 = vmul.f32 %v2367, 0.70710677
      %v2378 = vmul.f32 %v2368, 0.70710677
      %v2379 = vmul.f32 %v2369, 0.70710677
      %v2380 = vmul.f32 %v2370, 0.70710677
      %v2381 = vmul.f32 %v2371, 0.70710677
      %v2382 = vmul.f32 %v2372, 0.70710677
      %v2383 = vsub.f32 0.0, %v2373
      %v2384 = vsub.f32 0.0, %v2374
      %v2385 = vsub.f32 0.0, %v2375
      %v2386 = vsub.f32 0.0, %v2376
      %v2387 = vsub.f32 0.0, %v2377
      %v2388 = vsub.f32 0.0, %v2378
      %v2389 = vsub.f32 0.0, %v2379
      %v2390 = vsub.f32 0.0, %v2380
      %v2391 = vsub.f32 0.0, %v2381
      %v2392 = vsub.f32 0.0, %v2382
      %v2393 = vmul.f32 %v2383, 1.442695
      %v2394 = vpow.pop %v2393
      %v2395 = vmul.f32 %v2384, 1.442695
      %v2396 = vpow.pop %v2395
      %v2397 = vmul.f32 %v2385, 1.442695
      %v2398 = vpow.pop %v2397
      %v2399 = vmul.f32 %v2386, 1.442695
      %v2400 = vpow.pop %v2399
      %v2401 = vmul.f32 %v2387, 1.442695
      %v2402 = vpow.pop %v2401
      %v2403 = vmul.f32 %v2388, 1.442695
      %v2404 = vpow.pop %v2403
      %v2405 = vmul.f32 %v2389, 1.442695
      %v2406 = vpow.pop %v2405
      %v2407 = vmul.f32 %v2390, 1.442695
      %v2408 = vpow.pop %v2407
      %v2409 = vmul.f32 %v2391, 1.442695
      %v2410 = vpow.pop %v2409
      %v2411 = vmul.f32 %v2392, 1.442695
      %v2412 = vpow.pop %v2411
      %v2413 = vadd.f32 %v2394, 1.0
      %v2414 = vadd.f32 %v2396, 1.0
      %v2415 = vadd.f32 %v2398, 1.0
      %v2416 = vadd.f32 %v2400, 1.0
      %v2417 = vadd.f32 %v2402, 1.0
      %v2418 = vadd.f32 %v2404, 1.0
      %v2419 = vadd.f32 %v2406, 1.0
      %v2420 = vadd.f32 %v2408, 1.0
      %v2421 = vadd.f32 %v2410, 1.0
      %v2422 = vadd.f32 %v2412, 1.0
      %v2423 = vrcp.pop %v2413
      %v2424 = vrcp.pop %v2414
      %v2425 = vrcp.pop %v2415
      %v2426 = vrcp.pop %v2416
      %v2427 = vrcp.pop %v2417
      %v2428 = vrcp.pop %v2418
      %v2429 = vrcp.pop %v2419
      %v2430 = vrcp.pop %v2420
      %v2431 = vrcp.pop %v2421
      %v2432 = vrcp.pop %v2422
      %v2443 = vrot.slane %v1811, 4
      %v2444 = vrot.slane %v1813, 4
      %v2445 = vrot.slane %v1888, 4
      %v2446 = vrot.slane %v1890, 4
      %v2447 = vrot.slane %v1965, 4
      %v2448 = vrot.slane %v1967, 4
      %v2449 = vrot.slane %v2042, 4
      %v2450 = vrot.slane %v2044, 4
      %v2451 = vrot.slane %v2119, 4
      %v2452 = vrot.slane %v2121, 4
      %v2463 = vsub.f32 %v1811, %v2443
      %v2464 = vsub.f32 %v1813, %v2444
      %v2465 = vsub.f32 %v1888, %v2445
      %v2466 = vsub.f32 %v1890, %v2446
      %v2467 = vsub.f32 %v1965, %v2447
      %v2468 = vsub.f32 %v1967, %v2448
      %v2469 = vsub.f32 %v2042, %v2449
      %v2470 = vsub.f32 %v2044, %v2450
      %v2471 = vsub.f32 %v2119, %v2451
      %v2472 = vsub.f32 %v2121, %v2452
      %v2473 = vlaneseq
      %v2474 = vshrl.u32 %v2473, 7
      %v2475 = vsub.s32 0, %v2474
      %v2476 = vrot.slane %v2323, %v2475
      %v2477 = vlaneseq
      %v2478 = vshrl.u32 %v2477, 7
      %v2479 = vsub.s32 0, %v2478
      %v2480 = vrot.slane %v2324, %v2479
      %v2481 = vlaneseq
      %v2482 = vshrl.u32 %v2481, 7
      %v2483 = vsub.s32 0, %v2482
      %v2484 = vrot.slane %v2325, %v2483
      %v2485 = vlaneseq
      %v2486 = vshrl.u32 %v2485, 7
      %v2487 = vsub.s32 0, %v2486
      %v2488 = vrot.slane %v2326, %v2487
      %v2489 = vlaneseq
      %v2490 = vshrl.u32 %v2489, 7
      %v2491 = vsub.s32 0, %v2490
      %v2492 = vrot.slane %v2327, %v2491
      %v2493 = vlaneseq
      %v2494 = vshrl.u32 %v2493, 7
      %v2495 = vsub.s32 0, %v2494
      %v2496 = vrot.slane %v2328, %v2495
      %v2497 = vlaneseq
      %v2498 = vshrl.u32 %v2497, 7
      %v2499 = vsub.s32 0, %v2498
      %v2500 = vrot.slane %v2329, %v2499
      %v2501 = vlaneseq
      %v2502 = vshrl.u32 %v2501, 7
      %v2503 = vsub.s32 0, %v2502
      %v2504 = vrot.slane %v2330, %v2503
      %v2505 = vlaneseq
      %v2506 = vshrl.u32 %v2505, 7
      %v2507 = vsub.s32 0, %v2506
      %v2508 = vrot.slane %v2331, %v2507
      %v2509 = vlaneseq
      %v2510 = vshrl.u32 %v2509, 7
      %v2511 = vsub.s32 0, %v2510
      %v2512 = vrot.slane %v2332, %v2511
      %v2513 = vmul.f32 %v2476, %v2463
      %v2514 = vmul.f32 %v2480, %v2464
      %v2515 = vmul.f32 %v2484, %v2465
      %v2516 = vmul.f32 %v2488, %v2466
      %v2517 = vmul.f32 %v2492, %v2467
      %v2518 = vmul.f32 %v2496, %v2468
      %v2519 = vmul.f32 %v2500, %v2469
      %v2520 = vmul.f32 %v2504, %v2470
      %v2521 = vmul.f32 %v2508, %v2471
      %v2522 = vmul.f32 %v2512, %v2472
      %v2533 = vrot.slane %v2513, 4
      %v2534 = vrot.slane %v2514, 4
      %v2535 = vrot.slane %v2515, 4
      %v2536 = vrot.slane %v2516, 4
      %v2537 = vrot.slane %v2517, 4
      %v2538 = vrot.slane %v2518, 4
      %v2539 = vrot.slane %v2519, 4
      %v2540 = vrot.slane %v2520, 4
      %v2541 = vrot.slane %v2521, 4
      %v2542 = vrot.slane %v2522, 4
      %v2553 = vadd.f32 %v1811, %v2533
      %v2554 = vadd.f32 %v1813, %v2534
      %v2555 = vadd.f32 %v1888, %v2535
      %v2556 = vadd.f32 %v1890, %v2536
      %v2557 = vadd.f32 %v1965, %v2537
      %v2558 = vadd.f32 %v1967, %v2538
      %v2559 = vadd.f32 %v2042, %v2539
      %v2560 = vadd.f32 %v2044, %v2540
      %v2561 = vadd.f32 %v2119, %v2541
      %v2562 = vadd.f32 %v2121, %v2542
      %v2563 = vlaneseq
      %v2564 = vshrl.u32 %v2563, 7
      %v2565 = vsub.s32 2, %v2564
      %v2566 = vrot.slane %v2423, %v2565
      %v2567 = vlaneseq
      %v2568 = vshrl.u32 %v2567, 7
      %v2569 = vsub.s32 2, %v2568
      %v2570 = vrot.slane %v2424, %v2569
      %v2571 = vlaneseq
      %v2572 = vshrl.u32 %v2571, 7
      %v2573 = vsub.s32 2, %v2572
      %v2574 = vrot.slane %v2425, %v2573
      %v2575 = vlaneseq
      %v2576 = vshrl.u32 %v2575, 7
      %v2577 = vsub.s32 2, %v2576
      %v2578 = vrot.slane %v2426, %v2577
      %v2579 = vlaneseq
      %v2580 = vshrl.u32 %v2579, 7
      %v2581 = vsub.s32 2, %v2580
      %v2582 = vrot.slane %v2427, %v2581
      %v2583 = vlaneseq
      %v2584 = vshrl.u32 %v2583, 7
      %v2585 = vsub.s32 2, %v2584
      %v2586 = vrot.slane %v2428, %v2585
      %v2587 = vlaneseq
      %v2588 = vshrl.u32 %v2587, 7
      %v2589 = vsub.s32 2, %v2588
      %v2590 = vrot.slane %v2429, %v2589
      %v2591 = vlaneseq
      %v2592 = vshrl.u32 %v2591, 7
      %v2593 = vsub.s32 2, %v2592
      %v2594 = vrot.slane %v2430, %v2593
      %v2595 = vlaneseq
      %v2596 = vshrl.u32 %v2595, 7
      %v2597 = vsub.s32 2, %v2596
      %v2598 = vrot.slane %v2431, %v2597
      %v2599 = vlaneseq
      %v2600 = vshrl.u32 %v2599, 7
      %v2601 = vsub.s32 2, %v2600
      %v2602 = vrot.slane %v2432, %v2601
      %v2603 = vmul.f32 %v2566, %v2463
      %v2604 = vmul.f32 %v2570, %v2464
      %v2605 = vmul.f32 %v2574, %v2465
      %v2606 = vmul.f32 %v2578, %v2466
      %v2607 = vmul.f32 %v2582, %v2467
      %v2608 = vmul.f32 %v2586, %v2468
      %v2609 = vmul.f32 %v2590, %v2469
      %v2610 = vmul.f32 %v2594, %v2470
      %v2611 = vmul.f32 %v2598, %v2471
      %v2612 = vmul.f32 %v2602, %v2472
      %v2623 = vrot.slane %v2603, 4
      %v2624 = vrot.slane %v2604, 4
      %v2625 = vrot.slane %v2605, 4
      %v2626 = vrot.slane %v2606, 4
      %v2627 = vrot.slane %v2607, 4
      %v2628 = vrot.slane %v2608, 4
      %v2629 = vrot.slane %v2609, 4
      %v2630 = vrot.slane %v2610, 4
      %v2631 = vrot.slane %v2611, 4
      %v2632 = vrot.slane %v2612, 4
      %v2643 = vadd.f32 %v1811, %v2623
      %v2644 = vadd.f32 %v1813, %v2624
      %v2645 = vadd.f32 %v1888, %v2625
      %v2646 = vadd.f32 %v1890, %v2626
      %v2647 = vadd.f32 %v1965, %v2627
      %v2648 = vadd.f32 %v1967, %v2628
      %v2649 = vadd.f32 %v2042, %v2629
      %v2650 = vadd.f32 %v2044, %v2630
      %v2651 = vadd.f32 %v2119, %v2631
      %v2652 = vadd.f32 %v2121, %v2632
      %v2653 = vld [vmem:[%s4] sm:$0x3]
      %v2654 = vmul.f32 %v2553, 0.5
      %v2655 = vmul.f32 %v2554, 0.5
      %v2656 = vmul.f32 %v2555, 0.5
      %v2657 = vmul.f32 %v2556, 0.5
      %v2658 = vmul.f32 %v2557, 0.5
      %v2659 = vmul.f32 %v2558, 0.5
      %v2660 = vmul.f32 %v2559, 0.5
      %v2661 = vmul.f32 %v2560, 0.5
      %v2662 = vmul.f32 %v2561, 0.5
      %v2663 = vmul.f32 %v2562, 0.5
      %v2664 = vmul.f32 %v2553, 0.70710677
      %v2665 = vmul.f32 %v2554, 0.70710677
      %v2666 = vmul.f32 %v2555, 0.70710677
      %v2667 = vmul.f32 %v2556, 0.70710677
      %v2668 = vmul.f32 %v2557, 0.70710677
      %v2669 = vmul.f32 %v2558, 0.70710677
      %v2670 = vmul.f32 %v2559, 0.70710677
      %v2671 = vmul.f32 %v2560, 0.70710677
      %v2672 = vmul.f32 %v2561, 0.70710677
      %v2673 = vmul.f32 %v2562, 0.70710677
      %v2674 = verf.f32.pop %v2664
      %v2675 = verf.f32.pop %v2665
      %v2676 = verf.f32.pop %v2666
      %v2677 = verf.f32.pop %v2667
      %v2678 = verf.f32.pop %v2668
      %v2679 = verf.f32.pop %v2669
      %v2680 = verf.f32.pop %v2670
      %v2681 = verf.f32.pop %v2671
      %v2682 = verf.f32.pop %v2672
      %v2683 = verf.f32.pop %v2673
      %v2684 = vadd.f32 %v2674, 1.0
      %v2685 = vadd.f32 %v2675, 1.0
      %v2686 = vadd.f32 %v2676, 1.0
      %v2687 = vadd.f32 %v2677, 1.0
      %v2688 = vadd.f32 %v2678, 1.0
      %v2689 = vadd.f32 %v2679, 1.0
      %v2690 = vadd.f32 %v2680, 1.0
      %v2691 = vadd.f32 %v2681, 1.0
      %v2692 = vadd.f32 %v2682, 1.0
      %v2693 = vadd.f32 %v2683, 1.0
      %v2694 = vmul.f32 %v2654, %v2684
      %v2695 = vmul.f32 %v2655, %v2685
      %v2696 = vmul.f32 %v2656, %v2686
      %v2697 = vmul.f32 %v2657, %v2687
      %v2698 = vmul.f32 %v2658, %v2688
      %v2699 = vmul.f32 %v2659, %v2689
      %v2700 = vmul.f32 %v2660, %v2690
      %v2701 = vmul.f32 %v2661, %v2691
      %v2702 = vmul.f32 %v2662, %v2692
      %v2703 = vmul.f32 %v2663, %v2693
      %v2704 = vld [vmem:[%s5] sm:$0x3]
      %v2705 = vmul.f32 %v2643, 0.5
      %v2706 = vmul.f32 %v2644, 0.5
      %v2707 = vmul.f32 %v2645, 0.5
      %v2708 = vmul.f32 %v2646, 0.5
      %v2709 = vmul.f32 %v2647, 0.5
      %v2710 = vmul.f32 %v2648, 0.5
      %v2711 = vmul.f32 %v2649, 0.5
      %v2712 = vmul.f32 %v2650, 0.5
      %v2713 = vmul.f32 %v2651, 0.5
      %v2714 = vmul.f32 %v2652, 0.5
      %v2715 = vmul.f32 %v2643, 0.70710677
      %v2716 = vmul.f32 %v2644, 0.70710677
      %v2717 = vmul.f32 %v2645, 0.70710677
      %v2718 = vmul.f32 %v2646, 0.70710677
      %v2719 = vmul.f32 %v2647, 0.70710677
      %v2720 = vmul.f32 %v2648, 0.70710677
      %v2721 = vmul.f32 %v2649, 0.70710677
      %v2722 = vmul.f32 %v2650, 0.70710677
      %v2723 = vmul.f32 %v2651, 0.70710677
      %v2724 = vmul.f32 %v2652, 0.70710677
      %v2725 = verf.f32.pop %v2715
      %v2726 = verf.f32.pop %v2716
      %v2727 = verf.f32.pop %v2717
      %v2728 = verf.f32.pop %v2718
      %v2729 = verf.f32.pop %v2719
      %v2730 = verf.f32.pop %v2720
      %v2731 = verf.f32.pop %v2721
      %v2732 = verf.f32.pop %v2722
      %v2733 = verf.f32.pop %v2723
      %v2734 = verf.f32.pop %v2724
      %v2735 = vadd.f32 %v2725, 1.0
      %v2736 = vadd.f32 %v2726, 1.0
      %v2737 = vadd.f32 %v2727, 1.0
      %v2738 = vadd.f32 %v2728, 1.0
      %v2739 = vadd.f32 %v2729, 1.0
      %v2740 = vadd.f32 %v2730, 1.0
      %v2741 = vadd.f32 %v2731, 1.0
      %v2742 = vadd.f32 %v2732, 1.0
      %v2743 = vadd.f32 %v2733, 1.0
      %v2744 = vadd.f32 %v2734, 1.0
      %v2745 = vmul.f32 %v2705, %v2735
      %v2746 = vmul.f32 %v2706, %v2736
      %v2747 = vmul.f32 %v2707, %v2737
      %v2748 = vmul.f32 %v2708, %v2738
      %v2749 = vmul.f32 %v2709, %v2739
      %v2750 = vmul.f32 %v2710, %v2740
      %v2751 = vmul.f32 %v2711, %v2741
      %v2752 = vmul.f32 %v2712, %v2742
      %v2753 = vmul.f32 %v2713, %v2743
      %v2754 = vmul.f32 %v2714, %v2744
      %v2765 = vrot.slane %v2745, 4
      %v2766 = vrot.slane %v2746, 4
      %v2767 = vrot.slane %v2747, 4
      %v2768 = vrot.slane %v2748, 4
      %v2769 = vrot.slane %v2749, 4
      %v2770 = vrot.slane %v2750, 4
      %v2771 = vrot.slane %v2751, 4
      %v2772 = vrot.slane %v2752, 4
      %v2773 = vrot.slane %v2753, 4
      %v2774 = vrot.slane %v2754, 4
      %vm2775 = vcmask 31744
      %v2777 = vsel %vm2775, %v2704, 0
      %vm2779 = vcmask 1043456
      %v2780 = vsel %vm2779, %v2765, 0
      %v2782 = vsel %vm2779, %v2766, 0
      %v2784 = vsel %vm2779, %v2767, 0
      %v2786 = vsel %vm2779, %v2768, 0
      %v2788 = vsel %vm2779, %v2769, 0
      %v2790 = vsel %vm2779, %v2770, 0
      %v2792 = vsel %vm2779, %v2771, 0
      %v2794 = vsel %vm2779, %v2772, 0
      %v2796 = vsel %vm2779, %v2773, 0
      %v2798 = vsel %vm2779, %v2774, 0
      %2800 = vmatprep.subr.mxu0 %v2782
      %2801 = vmatpush1.msra.mxu0 %v2780
      %2802 = vmatprep.subr.mxu0 0.0
      %2803 = vmatpush1.msra.mxu0 0.0
      %2804 = vmatprep.subr.mxu0 0.0
      %2805 = vmatpush1.msra.mxu0 0.0
      %2806 = vmatprep.subr.mxu0 0.0
      %2807 = vmatpush1.msra.mxu0 0.0
      %2808 = vmatprep.subr.mxu0 0.0
      %2809 = vmatpush1.msra.mxu0 0.0
      %2810 = vmatprep.subr.mxu0 0.0
      %2811 = vmatpush1.msra.mxu0 0.0
      %2812 = vmatprep.subr.mxu0 0.0
      %2813 = vmatpush1.msra.mxu0 0.0
      %2814 = vmatprep.subr.mxu0 0.0
      %2815 = vmatpush1.msra.mxu0 0.0
      %2816 = vmatprep.subr.mxu0 0.0
      %2817 = vmatpush1.msra.mxu0 0.0
      %2818 = vmatprep.subr.mxu0 0.0
      %2819 = vmatpush1.msra.mxu0 0.0
      %2820 = vmatprep.subr.mxu0 0.0
      %2821 = vmatpush1.msra.mxu0 0.0
      %2822 = vmatprep.subr.mxu0 0.0
      %2823 = vmatpush1.msra.mxu0 0.0
      %2824 = vmatprep.subr.mxu0 0.0
      %2825 = vmatpush1.msra.mxu0 0.0
      %2826 = vmatprep.subr.mxu0 0.0
      %2827 = vmatpush1.msra.mxu0 0.0
      %2828 = vmatprep.subr.mxu0 0.0
      %2829 = vmatpush1.msra.mxu0 0.0
      %2830 = vmatprep.subr.mxu0 0.0
      %2831 = vmatpush1.msra.mxu0 0.0
      %2832 = vmatprep.subr.mxu0 0.0
      %2833 = vmatpush1.msra.mxu0 0.0
      %2834 = vmatprep.subr.mxu0 0.0
      %2835 = vmatpush1.msra.mxu0 0.0
      %2836 = vmatprep.subr.mxu0 0.0
      %2837 = vmatpush1.msra.mxu0 0.0
      %2838 = vmatprep.subr.mxu0 0.0
      %2839 = vmatpush1.msra.mxu0 0.0
      %2840 = vmatprep.subr.mxu0 0.0
      %2841 = vmatpush1.msra.mxu0 0.0
      %2842 = vmatprep.subr.mxu0 0.0
      %2843 = vmatpush1.msra.mxu0 0.0
      %2844 = vmatprep.subr.mxu0 0.0
      %2845 = vmatpush1.msra.mxu0 0.0
      %2846 = vmatprep.subr.mxu0 0.0
      %2847 = vmatpush1.msra.mxu0 0.0
      %2848 = vmatprep.subr.mxu0 0.0
      %2849 = vmatpush1.msra.mxu0 0.0
      %2850 = vmatprep.subr.mxu0 0.0
      %2851 = vmatpush1.msra.mxu0 0.0
      %2852 = vmatprep.subr.mxu0 0.0
      %2853 = vmatpush1.msra.mxu0 0.0
      %2854 = vmatprep.subr.mxu0 0.0
      %2855 = vmatpush1.msra.mxu0 0.0
      %2856 = vmatprep.subr.mxu0 0.0
      %2857 = vmatpush1.msra.mxu0 0.0
      %2858 = vmatprep.subr.mxu0 0.0
      %2859 = vmatpush1.msra.mxu0 0.0
      %2860 = vmatprep.subr.mxu0 0.0
      %2861 = vmatpush1.msra.mxu0 0.0
      %2862 = vmatprep.subr.mxu0 0.0
      %2863 = vmatpush1.msra.mxu0 0.0
      %2864 = vmatprep.mubr.f32.mxu0 0.0
      %2865 = vmatmul.mubr.f32.gmra.mrb[0].mxu0 %v2777
      %v2866 = vpop.f32.mrb[0].mxu0
      %v2867 = vadd.f32 0.0, %v2866
      %v2868 = vpop.f32.mrb[0].mxu0
      %v2869 = vadd.f32 0.0, %v2868
      %2870 = vdwg.mxu0
      %2871 = vmatprep.subr.mxu0 %v2786
      %2872 = vmatpush1.msra.mxu0 %v2784
      %2873 = vmatprep.subr.mxu0 0.0
      %2874 = vmatpush1.msra.mxu0 0.0
      %2875 = vmatprep.subr.mxu0 0.0
      %2876 = vmatpush1.msra.mxu0 0.0
      %2877 = vmatprep.subr.mxu0 0.0
      %2878 = vmatpush1.msra.mxu0 0.0
      %2879 = vmatprep.subr.mxu0 0.0
      %2880 = vmatpush1.msra.mxu0 0.0
      %2881 = vmatprep.subr.mxu0 0.0
      %2882 = vmatpush1.msra.mxu0 0.0
      %2883 = vmatprep.subr.mxu0 0.0
      %2884 = vmatpush1.msra.mxu0 0.0
      %2885 = vmatprep.subr.mxu0 0.0
      %2886 = vmatpush1.msra.mxu0 0.0
      %2887 = vmatprep.subr.mxu0 0.0
      %2888 = vmatpush1.msra.mxu0 0.0
      %2889 = vmatprep.subr.mxu0 0.0
      %2890 = vmatpush1.msra.mxu0 0.0
      %2891 = vmatprep.subr.mxu0 0.0
      %2892 = vmatpush1.msra.mxu0 0.0
      %2893 = vmatprep.subr.mxu0 0.0
      %2894 = vmatpush1.msra.mxu0 0.0
      %2895 = vmatprep.subr.mxu0 0.0
      %2896 = vmatpush1.msra.mxu0 0.0
      %2897 = vmatprep.subr.mxu0 0.0
      %2898 = vmatpush1.msra.mxu0 0.0
      %2899 = vmatprep.subr.mxu0 0.0
      %2900 = vmatpush1.msra.mxu0 0.0
      %2901 = vmatprep.subr.mxu0 0.0
      %2902 = vmatpush1.msra.mxu0 0.0
      %2903 = vmatprep.subr.mxu0 0.0
      %2904 = vmatpush1.msra.mxu0 0.0
      %2905 = vmatprep.subr.mxu0 0.0
      %2906 = vmatpush1.msra.mxu0 0.0
      %2907 = vmatprep.subr.mxu0 0.0
      %2908 = vmatpush1.msra.mxu0 0.0
      %2909 = vmatprep.subr.mxu0 0.0
      %2910 = vmatpush1.msra.mxu0 0.0
      %2911 = vmatprep.subr.mxu0 0.0
      %2912 = vmatpush1.msra.mxu0 0.0
      %2913 = vmatprep.subr.mxu0 0.0
      %2914 = vmatpush1.msra.mxu0 0.0
      %2915 = vmatprep.subr.mxu0 0.0
      %2916 = vmatpush1.msra.mxu0 0.0
      %2917 = vmatprep.subr.mxu0 0.0
      %2918 = vmatpush1.msra.mxu0 0.0
      %2919 = vmatprep.subr.mxu0 0.0
      %2920 = vmatpush1.msra.mxu0 0.0
      %2921 = vmatprep.subr.mxu0 0.0
      %2922 = vmatpush1.msra.mxu0 0.0
      %2923 = vmatprep.subr.mxu0 0.0
      %2924 = vmatpush1.msra.mxu0 0.0
      %2925 = vmatprep.subr.mxu0 0.0
      %2926 = vmatpush1.msra.mxu0 0.0
      %2927 = vmatprep.subr.mxu0 0.0
      %2928 = vmatpush1.msra.mxu0 0.0
      %2929 = vmatprep.subr.mxu0 0.0
      %2930 = vmatpush1.msra.mxu0 0.0
      %2931 = vmatprep.subr.mxu0 0.0
      %2932 = vmatpush1.msra.mxu0 0.0
      %2933 = vmatprep.subr.mxu0 0.0
      %2934 = vmatpush1.msra.mxu0 0.0
      %2935 = vmatprep.mubr.f32.mxu0 0.0
      %2936 = vmatmul.mubr.f32.gmra.mrb[0].mxu0 %v2777
      %v2937 = vpop.f32.mrb[0].mxu0
      %v2938 = vadd.f32 0.0, %v2937
      %v2939 = vpop.f32.mrb[0].mxu0
      %v2940 = vadd.f32 0.0, %v2939
      %2941 = vdwg.mxu0
      %2942 = vmatprep.subr.mxu0 %v2790
      %2943 = vmatpush1.msra.mxu0 %v2788
      %2944 = vmatprep.subr.mxu0 0.0
      %2945 = vmatpush1.msra.mxu0 0.0
      %2946 = vmatprep.subr.mxu0 0.0
      %2947 = vmatpush1.msra.mxu0 0.0
      %2948 = vmatprep.subr.mxu0 0.0
      %2949 = vmatpush1.msra.mxu0 0.0
      %2950 = vmatprep.subr.mxu0 0.0
      %2951 = vmatpush1.msra.mxu0 0.0
      %2952 = vmatprep.subr.mxu0 0.0
      %2953 = vmatpush1.msra.mxu0 0.0
      %2954 = vmatprep.subr.mxu0 0.0
      %2955 = vmatpush1.msra.mxu0 0.0
      %2956 = vmatprep.subr.mxu0 0.0
      %2957 = vmatpush1.msra.mxu0 0.0
      %2958 = vmatprep.subr.mxu0 0.0
      %2959 = vmatpush1.msra.mxu0 0.0
      %2960 = vmatprep.subr.mxu0 0.0
      %2961 = vmatpush1.msra.mxu0 0.0
      %2962 = vmatprep.subr.mxu0 0.0
      %2963 = vmatpush1.msra.mxu0 0.0
      %2964 = vmatprep.subr.mxu0 0.0
      %2965 = vmatpush1.msra.mxu0 0.0
      %2966 = vmatprep.subr.mxu0 0.0
      %2967 = vmatpush1.msra.mxu0 0.0
      %2968 = vmatprep.subr.mxu0 0.0
      %2969 = vmatpush1.msra.mxu0 0.0
      %2970 = vmatprep.subr.mxu0 0.0
      %2971 = vmatpush1.msra.mxu0 0.0
      %2972 = vmatprep.subr.mxu0 0.0
      %2973 = vmatpush1.msra.mxu0 0.0
      %2974 = vmatprep.subr.mxu0 0.0
      %2975 = vmatpush1.msra.mxu0 0.0
      %2976 = vmatprep.subr.mxu0 0.0
      %2977 = vmatpush1.msra.mxu0 0.0
      %2978 = vmatprep.subr.mxu0 0.0
      %2979 = vmatpush1.msra.mxu0 0.0
      %2980 = vmatprep.subr.mxu0 0.0
      %2981 = vmatpush1.msra.mxu0 0.0
      %2982 = vmatprep.subr.mxu0 0.0
      %2983 = vmatpush1.msra.mxu0 0.0
      %2984 = vmatprep.subr.mxu0 0.0
      %2985 = vmatpush1.msra.mxu0 0.0
      %2986 = vmatprep.subr.mxu0 0.0
      %2987 = vmatpush1.msra.mxu0 0.0
      %2988 = vmatprep.subr.mxu0 0.0
      %2989 = vmatpush1.msra.mxu0 0.0
      %2990 = vmatprep.subr.mxu0 0.0
      %2991 = vmatpush1.msra.mxu0 0.0
      %2992 = vmatprep.subr.mxu0 0.0
      %2993 = vmatpush1.msra.mxu0 0.0
      %2994 = vmatprep.subr.mxu0 0.0
      %2995 = vmatpush1.msra.mxu0 0.0
      %2996 = vmatprep.subr.mxu0 0.0
      %2997 = vmatpush1.msra.mxu0 0.0
      %2998 = vmatprep.subr.mxu0 0.0
      %2999 = vmatpush1.msra.mxu0 0.0
      %3000 = vmatprep.subr.mxu0 0.0
      %3001 = vmatpush1.msra.mxu0 0.0
      %3002 = vmatprep.subr.mxu0 0.0
      %3003 = vmatpush1.msra.mxu0 0.0
      %3004 = vmatprep.subr.mxu0 0.0
      %3005 = vmatpush1.msra.mxu0 0.0
      %3006 = vmatprep.mubr.f32.mxu0 0.0
      %3007 = vmatmul.mubr.f32.gmra.mrb[0].mxu0 %v2777
      %v3008 = vpop.f32.mrb[0].mxu0
      %v3009 = vadd.f32 0.0, %v3008
      %v3010 = vpop.f32.mrb[0].mxu0
      %v3011 = vadd.f32 0.0, %v3010
      %3012 = vdwg.mxu0
      %3013 = vmatprep.subr.mxu0 %v2794
      %3014 = vmatpush1.msra.mxu0 %v2792
      %3015 = vmatprep.subr.mxu0 0.0
      %3016 = vmatpush1.msra.mxu0 0.0
      %3017 = vmatprep.subr.mxu0 0.0
      %3018 = vmatpush1.msra.mxu0 0.0
      %3019 = vmatprep.subr.mxu0 0.0
      %3020 = vmatpush1.msra.mxu0 0.0
      %3021 = vmatprep.subr.mxu0 0.0
      %3022 = vmatpush1.msra.mxu0 0.0
      %3023 = vmatprep.subr.mxu0 0.0
      %3024 = vmatpush1.msra.mxu0 0.0
      %3025 = vmatprep.subr.mxu0 0.0
      %3026 = vmatpush1.msra.mxu0 0.0
      %3027 = vmatprep.subr.mxu0 0.0
      %3028 = vmatpush1.msra.mxu0 0.0
      %3029 = vmatprep.subr.mxu0 0.0
      %3030 = vmatpush1.msra.mxu0 0.0
      %3031 = vmatprep.subr.mxu0 0.0
      %3032 = vmatpush1.msra.mxu0 0.0
      %3033 = vmatprep.subr.mxu0 0.0
      %3034 = vmatpush1.msra.mxu0 0.0
      %3035 = vmatprep.subr.mxu0 0.0
      %3036 = vmatpush1.msra.mxu0 0.0
      %3037 = vmatprep.subr.mxu0 0.0
      %3038 = vmatpush1.msra.mxu0 0.0
      %3039 = vmatprep.subr.mxu0 0.0
      %3040 = vmatpush1.msra.mxu0 0.0
      %3041 = vmatprep.subr.mxu0 0.0
      %3042 = vmatpush1.msra.mxu0 0.0
      %3043 = vmatprep.subr.mxu0 0.0
      %3044 = vmatpush1.msra.mxu0 0.0
      %3045 = vmatprep.subr.mxu0 0.0
      %3046 = vmatpush1.msra.mxu0 0.0
      %3047 = vmatprep.subr.mxu0 0.0
      %3048 = vmatpush1.msra.mxu0 0.0
      %3049 = vmatprep.subr.mxu0 0.0
      %3050 = vmatpush1.msra.mxu0 0.0
      %3051 = vmatprep.subr.mxu0 0.0
      %3052 = vmatpush1.msra.mxu0 0.0
      %3053 = vmatprep.subr.mxu0 0.0
      %3054 = vmatpush1.msra.mxu0 0.0
      %3055 = vmatprep.subr.mxu0 0.0
      %3056 = vmatpush1.msra.mxu0 0.0
      %3057 = vmatprep.subr.mxu0 0.0
      %3058 = vmatpush1.msra.mxu0 0.0
      %3059 = vmatprep.subr.mxu0 0.0
      %3060 = vmatpush1.msra.mxu0 0.0
      %3061 = vmatprep.subr.mxu0 0.0
      %3062 = vmatpush1.msra.mxu0 0.0
      %3063 = vmatprep.subr.mxu0 0.0
      %3064 = vmatpush1.msra.mxu0 0.0
      %3065 = vmatprep.subr.mxu0 0.0
      %3066 = vmatpush1.msra.mxu0 0.0
      %3067 = vmatprep.subr.mxu0 0.0
      %3068 = vmatpush1.msra.mxu0 0.0
      %3069 = vmatprep.subr.mxu0 0.0
      %3070 = vmatpush1.msra.mxu0 0.0
      %3071 = vmatprep.subr.mxu0 0.0
      %3072 = vmatpush1.msra.mxu0 0.0
      %3073 = vmatprep.subr.mxu0 0.0
      %3074 = vmatpush1.msra.mxu0 0.0
      %3075 = vmatprep.subr.mxu0 0.0
      %3076 = vmatpush1.msra.mxu0 0.0
      %3077 = vmatprep.mubr.f32.mxu0 0.0
      %3078 = vmatmul.mubr.f32.gmra.mrb[0].mxu0 %v2777
      %v3079 = vpop.f32.mrb[0].mxu0
      %v3080 = vadd.f32 0.0, %v3079
      %v3081 = vpop.f32.mrb[0].mxu0
      %v3082 = vadd.f32 0.0, %v3081
      %3083 = vdwg.mxu0
      %3084 = vmatprep.subr.mxu0 %v2798
      %3085 = vmatpush1.msra.mxu0 %v2796
      %3086 = vmatprep.subr.mxu0 0.0
      %3087 = vmatpush1.msra.mxu0 0.0
      %3088 = vmatprep.subr.mxu0 0.0
      %3089 = vmatpush1.msra.mxu0 0.0
      %3090 = vmatprep.subr.mxu0 0.0
      %3091 = vmatpush1.msra.mxu0 0.0
      %3092 = vmatprep.subr.mxu0 0.0
      %3093 = vmatpush1.msra.mxu0 0.0
      %3094 = vmatprep.subr.mxu0 0.0
      %3095 = vmatpush1.msra.mxu0 0.0
      %3096 = vmatprep.subr.mxu0 0.0
      %3097 = vmatpush1.msra.mxu0 0.0
      %3098 = vmatprep.subr.mxu0 0.0
      %3099 = vmatpush1.msra.mxu0 0.0
      %3100 = vmatprep.subr.mxu0 0.0
      %3101 = vmatpush1.msra.mxu0 0.0
      %3102 = vmatprep.subr.mxu0 0.0
      %3103 = vmatpush1.msra.mxu0 0.0
      %3104 = vmatprep.subr.mxu0 0.0
      %3105 = vmatpush1.msra.mxu0 0.0
      %3106 = vmatprep.subr.mxu0 0.0
      %3107 = vmatpush1.msra.mxu0 0.0
      %3108 = vmatprep.subr.mxu0 0.0
      %3109 = vmatpush1.msra.mxu0 0.0
      %3110 = vmatprep.subr.mxu0 0.0
      %3111 = vmatpush1.msra.mxu0 0.0
      %3112 = vmatprep.subr.mxu0 0.0
      %3113 = vmatpush1.msra.mxu0 0.0
      %3114 = vmatprep.subr.mxu0 0.0
      %3115 = vmatpush1.msra.mxu0 0.0
      %3116 = vmatprep.subr.mxu0 0.0
      %3117 = vmatpush1.msra.mxu0 0.0
      %3118 = vmatprep.subr.mxu0 0.0
      %3119 = vmatpush1.msra.mxu0 0.0
      %3120 = vmatprep.subr.mxu0 0.0
      %3121 = vmatpush1.msra.mxu0 0.0
      %3122 = vmatprep.subr.mxu0 0.0
      %3123 = vmatpush1.msra.mxu0 0.0
      %3124 = vmatprep.subr.mxu0 0.0
      %3125 = vmatpush1.msra.mxu0 0.0
      %3126 = vmatprep.subr.mxu0 0.0
      %3127 = vmatpush1.msra.mxu0 0.0
      %3128 = vmatprep.subr.mxu0 0.0
      %3129 = vmatpush1.msra.mxu0 0.0
      %3130 = vmatprep.subr.mxu0 0.0
      %3131 = vmatpush1.msra.mxu0 0.0
      %3132 = vmatprep.subr.mxu0 0.0
      %3133 = vmatpush1.msra.mxu0 0.0
      %3134 = vmatprep.subr.mxu0 0.0
      %3135 = vmatpush1.msra.mxu0 0.0
      %3136 = vmatprep.subr.mxu0 0.0
      %3137 = vmatpush1.msra.mxu0 0.0
      %3138 = vmatprep.subr.mxu0 0.0
      %3139 = vmatpush1.msra.mxu0 0.0
      %3140 = vmatprep.subr.mxu0 0.0
      %3141 = vmatpush1.msra.mxu0 0.0
      %3142 = vmatprep.subr.mxu0 0.0
      %3143 = vmatpush1.msra.mxu0 0.0
      %3144 = vmatprep.subr.mxu0 0.0
      %3145 = vmatpush1.msra.mxu0 0.0
      %3146 = vmatprep.subr.mxu0 0.0
      %3147 = vmatpush1.msra.mxu0 0.0
      %3148 = vmatprep.mubr.f32.mxu0 0.0
      %3149 = vmatmul.mubr.f32.gmra.mrb[0].mxu0 %v2777
      %v3150 = vpop.f32.mrb[0].mxu0
      %v3151 = vadd.f32 0.0, %v3150
      %v3152 = vpop.f32.mrb[0].mxu0
      %v3153 = vadd.f32 0.0, %v3152
      %3154 = vdwg.mxu0
      %v3165 = vrot.slane %v2694, 4
      %v3166 = vrot.slane %v2695, 4
      %v3167 = vrot.slane %v2696, 4
      %v3168 = vrot.slane %v2697, 4
      %v3169 = vrot.slane %v2698, 4
      %v3170 = vrot.slane %v2699, 4
      %v3171 = vrot.slane %v2700, 4
      %v3172 = vrot.slane %v2701, 4
      %v3173 = vrot.slane %v2702, 4
      %v3174 = vrot.slane %v2703, 4
      %v3176 = vsel %vm2775, %v2653, 0
      %v3178 = vsel %vm2779, %v3165, 0
      %v3180 = vsel %vm2779, %v3166, 0
      %v3182 = vsel %vm2779, %v3167, 0
      %v3184 = vsel %vm2779, %v3168, 0
      %v3186 = vsel %vm2779, %v3169, 0
      %v3188 = vsel %vm2779, %v3170, 0
      %v3190 = vsel %vm2779, %v3171, 0
      %v3192 = vsel %vm2779, %v3172, 0
      %v3194 = vsel %vm2779, %v3173, 0
      %v3196 = vsel %vm2779, %v3174, 0
      %3198 = vmatprep.subr.mxu0 %v3180
      %3199 = vmatpush1.msra.mxu0 %v3178
      %3200 = vmatprep.subr.mxu0 0.0
      %3201 = vmatpush1.msra.mxu0 0.0
      %3202 = vmatprep.subr.mxu0 0.0
      %3203 = vmatpush1.msra.mxu0 0.0
      %3204 = vmatprep.subr.mxu0 0.0
      %3205 = vmatpush1.msra.mxu0 0.0
      %3206 = vmatprep.subr.mxu0 0.0
      %3207 = vmatpush1.msra.mxu0 0.0
      %3208 = vmatprep.subr.mxu0 0.0
      %3209 = vmatpush1.msra.mxu0 0.0
      %3210 = vmatprep.subr.mxu0 0.0
      %3211 = vmatpush1.msra.mxu0 0.0
      %3212 = vmatprep.subr.mxu0 0.0
      %3213 = vmatpush1.msra.mxu0 0.0
      %3214 = vmatprep.subr.mxu0 0.0
      %3215 = vmatpush1.msra.mxu0 0.0
      %3216 = vmatprep.subr.mxu0 0.0
      %3217 = vmatpush1.msra.mxu0 0.0
      %3218 = vmatprep.subr.mxu0 0.0
      %3219 = vmatpush1.msra.mxu0 0.0
      %3220 = vmatprep.subr.mxu0 0.0
      %3221 = vmatpush1.msra.mxu0 0.0
      %3222 = vmatprep.subr.mxu0 0.0
      %3223 = vmatpush1.msra.mxu0 0.0
      %3224 = vmatprep.subr.mxu0 0.0
      %3225 = vmatpush1.msra.mxu0 0.0
      %3226 = vmatprep.subr.mxu0 0.0
      %3227 = vmatpush1.msra.mxu0 0.0
      %3228 = vmatprep.subr.mxu0 0.0
      %3229 = vmatpush1.msra.mxu0 0.0
      %3230 = vmatprep.subr.mxu0 0.0
      %3231 = vmatpush1.msra.mxu0 0.0
      %3232 = vmatprep.subr.mxu0 0.0
      %3233 = vmatpush1.msra.mxu0 0.0
      %3234 = vmatprep.subr.mxu0 0.0
      %3235 = vmatpush1.msra.mxu0 0.0
      %3236 = vmatprep.subr.mxu0 0.0
      %3237 = vmatpush1.msra.mxu0 0.0
      %3238 = vmatprep.subr.mxu0 0.0
      %3239 = vmatpush1.msra.mxu0 0.0
      %3240 = vmatprep.subr.mxu0 0.0
      %3241 = vmatpush1.msra.mxu0 0.0
      %3242 = vmatprep.subr.mxu0 0.0
      %3243 = vmatpush1.msra.mxu0 0.0
      %3244 = vmatprep.subr.mxu0 0.0
      %3245 = vmatpush1.msra.mxu0 0.0
      %3246 = vmatprep.subr.mxu0 0.0
      %3247 = vmatpush1.msra.mxu0 0.0
      %3248 = vmatprep.subr.mxu0 0.0
      %3249 = vmatpush1.msra.mxu0 0.0
      %3250 = vmatprep.subr.mxu0 0.0
      %3251 = vmatpush1.msra.mxu0 0.0
      %3252 = vmatprep.subr.mxu0 0.0
      %3253 = vmatpush1.msra.mxu0 0.0
      %3254 = vmatprep.subr.mxu0 0.0
      %3255 = vmatpush1.msra.mxu0 0.0
      %3256 = vmatprep.subr.mxu0 0.0
      %3257 = vmatpush1.msra.mxu0 0.0
      %3258 = vmatprep.subr.mxu0 0.0
      %3259 = vmatpush1.msra.mxu0 0.0
      %3260 = vmatprep.subr.mxu0 0.0
      %3261 = vmatpush1.msra.mxu0 0.0
      %3262 = vmatprep.mubr.f32.mxu0 0.0
      %3263 = vmatmul.mubr.f32.gmra.mrb[0].mxu0 %v3176
      %v3264 = vpop.f32.mrb[0].mxu0
      %v3265 = vadd.f32 %v2867, %v3264
      %v3266 = vpop.f32.mrb[0].mxu0
      %v3267 = vadd.f32 %v2869, %v3266
      %3268 = vdwg.mxu0
      %3269 = vmatprep.subr.mxu0 %v3184
      %3270 = vmatpush1.msra.mxu0 %v3182
      %3271 = vmatprep.subr.mxu0 0.0
      %3272 = vmatpush1.msra.mxu0 0.0
      %3273 = vmatprep.subr.mxu0 0.0
      %3274 = vmatpush1.msra.mxu0 0.0
      %3275 = vmatprep.subr.mxu0 0.0
      %3276 = vmatpush1.msra.mxu0 0.0
      %3277 = vmatprep.subr.mxu0 0.0
      %3278 = vmatpush1.msra.mxu0 0.0
      %3279 = vmatprep.subr.mxu0 0.0
      %3280 = vmatpush1.msra.mxu0 0.0
      %3281 = vmatprep.subr.mxu0 0.0
      %3282 = vmatpush1.msra.mxu0 0.0
      %3283 = vmatprep.subr.mxu0 0.0
      %3284 = vmatpush1.msra.mxu0 0.0
      %3285 = vmatprep.subr.mxu0 0.0
      %3286 = vmatpush1.msra.mxu0 0.0
      %3287 = vmatprep.subr.mxu0 0.0
      %3288 = vmatpush1.msra.mxu0 0.0
      %3289 = vmatprep.subr.mxu0 0.0
      %3290 = vmatpush1.msra.mxu0 0.0
      %3291 = vmatprep.subr.mxu0 0.0
      %3292 = vmatpush1.msra.mxu0 0.0
      %3293 = vmatprep.subr.mxu0 0.0
      %3294 = vmatpush1.msra.mxu0 0.0
      %3295 = vmatprep.subr.mxu0 0.0
      %3296 = vmatpush1.msra.mxu0 0.0
      %3297 = vmatprep.subr.mxu0 0.0
      %3298 = vmatpush1.msra.mxu0 0.0
      %3299 = vmatprep.subr.mxu0 0.0
      %3300 = vmatpush1.msra.mxu0 0.0
      %3301 = vmatprep.subr.mxu0 0.0
      %3302 = vmatpush1.msra.mxu0 0.0
      %3303 = vmatprep.subr.mxu0 0.0
      %3304 = vmatpush1.msra.mxu0 0.0
      %3305 = vmatprep.subr.mxu0 0.0
      %3306 = vmatpush1.msra.mxu0 0.0
      %3307 = vmatprep.subr.mxu0 0.0
      %3308 = vmatpush1.msra.mxu0 0.0
      %3309 = vmatprep.subr.mxu0 0.0
      %3310 = vmatpush1.msra.mxu0 0.0
      %3311 = vmatprep.subr.mxu0 0.0
      %3312 = vmatpush1.msra.mxu0 0.0
      %3313 = vmatprep.subr.mxu0 0.0
      %3314 = vmatpush1.msra.mxu0 0.0
      %3315 = vmatprep.subr.mxu0 0.0
      %3316 = vmatpush1.msra.mxu0 0.0
      %3317 = vmatprep.subr.mxu0 0.0
      %3318 = vmatpush1.msra.mxu0 0.0
      %3319 = vmatprep.subr.mxu0 0.0
      %3320 = vmatpush1.msra.mxu0 0.0
      %3321 = vmatprep.subr.mxu0 0.0
      %3322 = vmatpush1.msra.mxu0 0.0
      %3323 = vmatprep.subr.mxu0 0.0
      %3324 = vmatpush1.msra.mxu0 0.0
      %3325 = vmatprep.subr.mxu0 0.0
      %3326 = vmatpush1.msra.mxu0 0.0
      %3327 = vmatprep.subr.mxu0 0.0
      %3328 = vmatpush1.msra.mxu0 0.0
      %3329 = vmatprep.subr.mxu0 0.0
      %3330 = vmatpush1.msra.mxu0 0.0
      %3331 = vmatprep.subr.mxu0 0.0
      %3332 = vmatpush1.msra.mxu0 0.0
      %3333 = vmatprep.mubr.f32.mxu0 0.0
      %3334 = vmatmul.mubr.f32.gmra.mrb[0].mxu0 %v3176
      %v3335 = vpop.f32.mrb[0].mxu0
      %v3336 = vadd.f32 %v2938, %v3335
      %v3337 = vpop.f32.mrb[0].mxu0
      %v3338 = vadd.f32 %v2940, %v3337
      %3339 = vdwg.mxu0
      %3340 = vmatprep.subr.mxu0 %v3188
      %3341 = vmatpush1.msra.mxu0 %v3186
      %3342 = vmatprep.subr.mxu0 0.0
      %3343 = vmatpush1.msra.mxu0 0.0
      %3344 = vmatprep.subr.mxu0 0.0
      %3345 = vmatpush1.msra.mxu0 0.0
      %3346 = vmatprep.subr.mxu0 0.0
      %3347 = vmatpush1.msra.mxu0 0.0
      %3348 = vmatprep.subr.mxu0 0.0
      %3349 = vmatpush1.msra.mxu0 0.0
      %3350 = vmatprep.subr.mxu0 0.0
      %3351 = vmatpush1.msra.mxu0 0.0
      %3352 = vmatprep.subr.mxu0 0.0
      %3353 = vmatpush1.msra.mxu0 0.0
      %3354 = vmatprep.subr.mxu0 0.0
      %3355 = vmatpush1.msra.mxu0 0.0
      %3356 = vmatprep.subr.mxu0 0.0
      %3357 = vmatpush1.msra.mxu0 0.0
      %3358 = vmatprep.subr.mxu0 0.0
      %3359 = vmatpush1.msra.mxu0 0.0
      %3360 = vmatprep.subr.mxu0 0.0
      %3361 = vmatpush1.msra.mxu0 0.0
      %3362 = vmatprep.subr.mxu0 0.0
      %3363 = vmatpush1.msra.mxu0 0.0
      %3364 = vmatprep.subr.mxu0 0.0
      %3365 = vmatpush1.msra.mxu0 0.0
      %3366 = vmatprep.subr.mxu0 0.0
      %3367 = vmatpush1.msra.mxu0 0.0
      %3368 = vmatprep.subr.mxu0 0.0
      %3369 = vmatpush1.msra.mxu0 0.0
      %3370 = vmatprep.subr.mxu0 0.0
      %3371 = vmatpush1.msra.mxu0 0.0
      %3372 = vmatprep.subr.mxu0 0.0
      %3373 = vmatpush1.msra.mxu0 0.0
      %3374 = vmatprep.subr.mxu0 0.0
      %3375 = vmatpush1.msra.mxu0 0.0
      %3376 = vmatprep.subr.mxu0 0.0
      %3377 = vmatpush1.msra.mxu0 0.0
      %3378 = vmatprep.subr.mxu0 0.0
      %3379 = vmatpush1.msra.mxu0 0.0
      %3380 = vmatprep.subr.mxu0 0.0
      %3381 = vmatpush1.msra.mxu0 0.0
      %3382 = vmatprep.subr.mxu0 0.0
      %3383 = vmatpush1.msra.mxu0 0.0
      %3384 = vmatprep.subr.mxu0 0.0
      %3385 = vmatpush1.msra.mxu0 0.0
      %3386 = vmatprep.subr.mxu0 0.0
      %3387 = vmatpush1.msra.mxu0 0.0
      %3388 = vmatprep.subr.mxu0 0.0
      %3389 = vmatpush1.msra.mxu0 0.0
      %3390 = vmatprep.subr.mxu0 0.0
      %3391 = vmatpush1.msra.mxu0 0.0
      %3392 = vmatprep.subr.mxu0 0.0
      %3393 = vmatpush1.msra.mxu0 0.0
      %3394 = vmatprep.subr.mxu0 0.0
      %3395 = vmatpush1.msra.mxu0 0.0
      %3396 = vmatprep.subr.mxu0 0.0
      %3397 = vmatpush1.msra.mxu0 0.0
      %3398 = vmatprep.subr.mxu0 0.0
      %3399 = vmatpush1.msra.mxu0 0.0
      %3400 = vmatprep.subr.mxu0 0.0
      %3401 = vmatpush1.msra.mxu0 0.0
      %3402 = vmatprep.subr.mxu0 0.0
      %3403 = vmatpush1.msra.mxu0 0.0
      %3404 = vmatprep.mubr.f32.mxu0 0.0
      %3405 = vmatmul.mubr.f32.gmra.mrb[0].mxu0 %v3176
      %v3406 = vpop.f32.mrb[0].mxu0
      %v3407 = vadd.f32 %v3009, %v3406
      %v3408 = vpop.f32.mrb[0].mxu0
      %v3409 = vadd.f32 %v3011, %v3408
      %3410 = vdwg.mxu0
      %3411 = vmatprep.subr.mxu0 %v3192
      %3412 = vmatpush1.msra.mxu0 %v3190
      %3413 = vmatprep.subr.mxu0 0.0
      %3414 = vmatpush1.msra.mxu0 0.0
      %3415 = vmatprep.subr.mxu0 0.0
      %3416 = vmatpush1.msra.mxu0 0.0
      %3417 = vmatprep.subr.mxu0 0.0
      %3418 = vmatpush1.msra.mxu0 0.0
      %3419 = vmatprep.subr.mxu0 0.0
      %3420 = vmatpush1.msra.mxu0 0.0
      %3421 = vmatprep.subr.mxu0 0.0
      %3422 = vmatpush1.msra.mxu0 0.0
      %3423 = vmatprep.subr.mxu0 0.0
      %3424 = vmatpush1.msra.mxu0 0.0
      %3425 = vmatprep.subr.mxu0 0.0
      %3426 = vmatpush1.msra.mxu0 0.0
      %3427 = vmatprep.subr.mxu0 0.0
      %3428 = vmatpush1.msra.mxu0 0.0
      %3429 = vmatprep.subr.mxu0 0.0
      %3430 = vmatpush1.msra.mxu0 0.0
      %3431 = vmatprep.subr.mxu0 0.0
      %3432 = vmatpush1.msra.mxu0 0.0
      %3433 = vmatprep.subr.mxu0 0.0
      %3434 = vmatpush1.msra.mxu0 0.0
      %3435 = vmatprep.subr.mxu0 0.0
      %3436 = vmatpush1.msra.mxu0 0.0
      %3437 = vmatprep.subr.mxu0 0.0
      %3438 = vmatpush1.msra.mxu0 0.0
      %3439 = vmatprep.subr.mxu0 0.0
      %3440 = vmatpush1.msra.mxu0 0.0
      %3441 = vmatprep.subr.mxu0 0.0
      %3442 = vmatpush1.msra.mxu0 0.0
      %3443 = vmatprep.subr.mxu0 0.0
      %3444 = vmatpush1.msra.mxu0 0.0
      %3445 = vmatprep.subr.mxu0 0.0
      %3446 = vmatpush1.msra.mxu0 0.0
      %3447 = vmatprep.subr.mxu0 0.0
      %3448 = vmatpush1.msra.mxu0 0.0
      %3449 = vmatprep.subr.mxu0 0.0
      %3450 = vmatpush1.msra.mxu0 0.0
      %3451 = vmatprep.subr.mxu0 0.0
      %3452 = vmatpush1.msra.mxu0 0.0
      %3453 = vmatprep.subr.mxu0 0.0
      %3454 = vmatpush1.msra.mxu0 0.0
      %3455 = vmatprep.subr.mxu0 0.0
      %3456 = vmatpush1.msra.mxu0 0.0
      %3457 = vmatprep.subr.mxu0 0.0
      %3458 = vmatpush1.msra.mxu0 0.0
      %3459 = vmatprep.subr.mxu0 0.0
      %3460 = vmatpush1.msra.mxu0 0.0
      %3461 = vmatprep.subr.mxu0 0.0
      %3462 = vmatpush1.msra.mxu0 0.0
      %3463 = vmatprep.subr.mxu0 0.0
      %3464 = vmatpush1.msra.mxu0 0.0
      %3465 = vmatprep.subr.mxu0 0.0
      %3466 = vmatpush1.msra.mxu0 0.0
      %3467 = vmatprep.subr.mxu0 0.0
      %3468 = vmatpush1.msra.mxu0 0.0
      %3469 = vmatprep.subr.mxu0 0.0
      %3470 = vmatpush1.msra.mxu0 0.0
      %3471 = vmatprep.subr.mxu0 0.0
      %3472 = vmatpush1.msra.mxu0 0.0
      %3473 = vmatprep.subr.mxu0 0.0
      %3474 = vmatpush1.msra.mxu0 0.0
      %3475 = vmatprep.mubr.f32.mxu0 0.0
      %3476 = vmatmul.mubr.f32.gmra.mrb[0].mxu0 %v3176
      %v3477 = vpop.f32.mrb[0].mxu0
      %v3478 = vadd.f32 %v3080, %v3477
      %v3479 = vpop.f32.mrb[0].mxu0
      %v3480 = vadd.f32 %v3082, %v3479
      %3481 = vdwg.mxu0
      %3482 = vmatprep.subr.mxu0 %v3196
      %3483 = vmatpush1.msra.mxu0 %v3194
      %3484 = vmatprep.subr.mxu0 0.0
      %3485 = vmatpush1.msra.mxu0 0.0
      %3486 = vmatprep.subr.mxu0 0.0
      %3487 = vmatpush1.msra.mxu0 0.0
      %3488 = vmatprep.subr.mxu0 0.0
      %3489 = vmatpush1.msra.mxu0 0.0
      %3490 = vmatprep.subr.mxu0 0.0
      %3491 = vmatpush1.msra.mxu0 0.0
      %3492 = vmatprep.subr.mxu0 0.0
      %3493 = vmatpush1.msra.mxu0 0.0
      %3494 = vmatprep.subr.mxu0 0.0
      %3495 = vmatpush1.msra.mxu0 0.0
      %3496 = vmatprep.subr.mxu0 0.0
      %3497 = vmatpush1.msra.mxu0 0.0
      %3498 = vmatprep.subr.mxu0 0.0
      %3499 = vmatpush1.msra.mxu0 0.0
      %3500 = vmatprep.subr.mxu0 0.0
      %3501 = vmatpush1.msra.mxu0 0.0
      %3502 = vmatprep.subr.mxu0 0.0
      %3503 = vmatpush1.msra.mxu0 0.0
      %3504 = vmatprep.subr.mxu0 0.0
      %3505 = vmatpush1.msra.mxu0 0.0
      %3506 = vmatprep.subr.mxu0 0.0
      %3507 = vmatpush1.msra.mxu0 0.0
      %3508 = vmatprep.subr.mxu0 0.0
      %3509 = vmatpush1.msra.mxu0 0.0
      %3510 = vmatprep.subr.mxu0 0.0
      %3511 = vmatpush1.msra.mxu0 0.0
      %3512 = vmatprep.subr.mxu0 0.0
      %3513 = vmatpush1.msra.mxu0 0.0
      %3514 = vmatprep.subr.mxu0 0.0
      %3515 = vmatpush1.msra.mxu0 0.0
      %3516 = vmatprep.subr.mxu0 0.0
      %3517 = vmatpush1.msra.mxu0 0.0
      %3518 = vmatprep.subr.mxu0 0.0
      %3519 = vmatpush1.msra.mxu0 0.0
      %3520 = vmatprep.subr.mxu0 0.0
      %3521 = vmatpush1.msra.mxu0 0.0
      %3522 = vmatprep.subr.mxu0 0.0
      %3523 = vmatpush1.msra.mxu0 0.0
      %3524 = vmatprep.subr.mxu0 0.0
      %3525 = vmatpush1.msra.mxu0 0.0
      %3526 = vmatprep.subr.mxu0 0.0
      %3527 = vmatpush1.msra.mxu0 0.0
      %3528 = vmatprep.subr.mxu0 0.0
      %3529 = vmatpush1.msra.mxu0 0.0
      %3530 = vmatprep.subr.mxu0 0.0
      %3531 = vmatpush1.msra.mxu0 0.0
      %3532 = vmatprep.subr.mxu0 0.0
      %3533 = vmatpush1.msra.mxu0 0.0
      %3534 = vmatprep.subr.mxu0 0.0
      %3535 = vmatpush1.msra.mxu0 0.0
      %3536 = vmatprep.subr.mxu0 0.0
      %3537 = vmatpush1.msra.mxu0 0.0
      %3538 = vmatprep.subr.mxu0 0.0
      %3539 = vmatpush1.msra.mxu0 0.0
      %3540 = vmatprep.subr.mxu0 0.0
      %3541 = vmatpush1.msra.mxu0 0.0
      %3542 = vmatprep.subr.mxu0 0.0
      %3543 = vmatpush1.msra.mxu0 0.0
      %3544 = vmatprep.subr.mxu0 0.0
      %3545 = vmatpush1.msra.mxu0 0.0
      %3546 = vmatprep.mubr.f32.mxu0 0.0
      %3547 = vmatmul.mubr.f32.gmra.mrb[0].mxu0 %v3176
      %v3548 = vpop.f32.mrb[0].mxu0
      %v3549 = vadd.f32 %v3151, %v3548
      %v3550 = vpop.f32.mrb[0].mxu0
      %v3551 = vadd.f32 %v3153, %v3550
      %3552 = vdwg.mxu0
      %v3553 = vld [vmem:[%s6] sm:$0x3]
      %3555 = vset.pattern.permute.xlu0 0
      %3556 = vperm.xlu0 %3555, %v3553
      %v3557 = vpop.permute.xlu0 %3556
      %v3559 = vadd.f32 %v3265, %v3557
      %v3560 = vadd.f32 %v3267, %v3557
      %v3561 = vadd.f32 %v3336, %v3557
      %v3562 = vadd.f32 %v3338, %v3557
      %v3563 = vadd.f32 %v3407, %v3557
      %v3564 = vadd.f32 %v3409, %v3557
      %v3565 = vadd.f32 %v3478, %v3557
      %v3566 = vadd.f32 %v3480, %v3557
      %v3567 = vadd.f32 %v3549, %v3557
      %v3568 = vadd.f32 %v3551, %v3557
      %v3579 = vrot.slane %v3559, 1
      %v3580 = vrot.slane %v3560, 1
      %v3581 = vrot.slane %v3561, 1
      %v3582 = vrot.slane %v3562, 1
      %v3583 = vrot.slane %v3563, 1
      %v3584 = vrot.slane %v3564, 1
      %v3585 = vrot.slane %v3565, 1
      %v3586 = vrot.slane %v3566, 1
      %v3587 = vrot.slane %v3567, 1
      %v3588 = vrot.slane %v3568, 1
      %v3599 = vsub.f32 %v3559, %v3579
      %v3600 = vsub.f32 %v3560, %v3580
      %v3601 = vsub.f32 %v3561, %v3581
      %v3602 = vsub.f32 %v3562, %v3582
      %v3603 = vsub.f32 %v3563, %v3583
      %v3604 = vsub.f32 %v3564, %v3584
      %v3605 = vsub.f32 %v3565, %v3585
      %v3606 = vsub.f32 %v3566, %v3586
      %v3607 = vsub.f32 %v3567, %v3587
      %v3608 = vsub.f32 %v3568, %v3588
      %v3609 = vsub.f32 0.0, %v3599
      %v3610 = vsub.f32 0.0, %v3600
      %v3611 = vsub.f32 0.0, %v3601
      %v3612 = vsub.f32 0.0, %v3602
      %v3613 = vsub.f32 0.0, %v3603
      %v3614 = vsub.f32 0.0, %v3604
      %v3615 = vsub.f32 0.0, %v3605
      %v3616 = vsub.f32 0.0, %v3606
      %v3617 = vsub.f32 0.0, %v3607
      %v3618 = vsub.f32 0.0, %v3608
      %v3619 = vmul.f32 %v3609, 1.442695
      %v3620 = vpow.pop %v3619
      %v3621 = vmul.f32 %v3610, 1.442695
      %v3622 = vpow.pop %v3621
      %v3623 = vmul.f32 %v3611, 1.442695
      %v3624 = vpow.pop %v3623
      %v3625 = vmul.f32 %v3612, 1.442695
      %v3626 = vpow.pop %v3625
      %v3627 = vmul.f32 %v3613, 1.442695
      %v3628 = vpow.pop %v3627
      %v3629 = vmul.f32 %v3614, 1.442695
      %v3630 = vpow.pop %v3629
      %v3631 = vmul.f32 %v3615, 1.442695
      %v3632 = vpow.pop %v3631
      %v3633 = vmul.f32 %v3616, 1.442695
      %v3634 = vpow.pop %v3633
      %v3635 = vmul.f32 %v3617, 1.442695
      %v3636 = vpow.pop %v3635
      %v3637 = vmul.f32 %v3618, 1.442695
      %v3638 = vpow.pop %v3637
      %v3639 = vadd.f32 %v3620, 1.0
      %v3640 = vadd.f32 %v3622, 1.0
      %v3641 = vadd.f32 %v3624, 1.0
      %v3642 = vadd.f32 %v3626, 1.0
      %v3643 = vadd.f32 %v3628, 1.0
      %v3644 = vadd.f32 %v3630, 1.0
      %v3645 = vadd.f32 %v3632, 1.0
      %v3646 = vadd.f32 %v3634, 1.0
      %v3647 = vadd.f32 %v3636, 1.0
      %v3648 = vadd.f32 %v3638, 1.0
      %v3649 = vrcp.pop %v3639
      %v3650 = vrcp.pop %v3640
      %v3651 = vrcp.pop %v3641
      %v3652 = vrcp.pop %v3642
      %v3653 = vrcp.pop %v3643
      %v3654 = vrcp.pop %v3644
      %v3655 = vrcp.pop %v3645
      %v3656 = vrcp.pop %v3646
      %v3657 = vrcp.pop %v3647
      %v3658 = vrcp.pop %v3648
      %v3669 = vcombine.low %v3649, %v3650
      %v3670 = vcombine.low %v3651, %v3652
      %v3671 = vcombine.low %v3653, %v3654
      %v3672 = vcombine.low %v3655, %v3656
      %v3674 = vunpack.c.l.s4 1966171168
      %v3675 = vunpack.c.0.s8 %v3674
      %v3676 = vlaneseq
      %v3677 = vshrl.u32 %v3676, 7
      %v3678 = vsub.s32 %v3675, %v3677
      %v3679 = vrot.slane %v3669, %v3678
      %v3681 = vunpack.c.l.s4 1966171168
      %v3682 = vunpack.c.0.s8 %v3681
      %v3683 = vlaneseq
      %v3684 = vshrl.u32 %v3683, 7
      %v3685 = vsub.s32 %v3682, %v3684
      %v3686 = vrot.slane %v3670, %v3685
      %v3688 = vunpack.c.l.s4 1966171168
      %v3689 = vunpack.c.0.s8 %v3688
      %v3690 = vlaneseq
      %v3691 = vshrl.u32 %v3690, 7
      %v3692 = vsub.s32 %v3689, %v3691
      %v3693 = vrot.slane %v3671, %v3692
      %v3695 = vunpack.c.l.s4 1966171168
      %v3696 = vunpack.c.0.s8 %v3695
      %v3697 = vlaneseq
      %v3698 = vshrl.u32 %v3697, 7
      %v3699 = vsub.s32 %v3696, %v3698
      %v3700 = vrot.slane %v3672, %v3699
      %v3701 = vcombine.low %v3679, %v3686
      %v3702 = vcombine.low %v3693, %v3700
      %v3704 = vunpack.c.l.s4 1966171168
      %v3705 = vunpack.c.0.s8 %v3704
      %v3706 = vlaneseq
      %v3707 = vshrl.u32 %v3706, 7
      %v3708 = vsub.s32 %v3705, %v3707
      %v3709 = vrot.slane %v3701, %v3708
      %v3711 = vunpack.c.l.s4 1966171168
      %v3712 = vunpack.c.0.s8 %v3711
      %v3713 = vlaneseq
      %v3714 = vshrl.u32 %v3713, 7
      %v3715 = vsub.s32 %v3712, %v3714
      %v3716 = vrot.slane %v3702, %v3715
      %v3717 = vcombine.low %v3709, %v3716
      %v3718 = vcombine.low %v3657, %v3658
      %v3720 = vunpack.c.l.s4 1966171168
      %v3721 = vunpack.c.0.s8 %v3720
      %v3722 = vlaneseq
      %v3723 = vshrl.u32 %v3722, 7
      %v3724 = vsub.s32 %v3721, %v3723
      %v3725 = vrot.slane %v3718, %v3724
      %v3727 = vunpack.c.l.s4 1966171168
      %v3728 = vunpack.c.0.s8 %v3727
      %v3729 = vlaneseq
      %v3730 = vshrl.u32 %v3729, 7
      %v3731 = vsub.s32 %v3728, %v3730
      %v3732 = vrot.slane %v3725, %v3731
      %3735 = vst [vmem:[%s280] ss:$2 sm:$0xff] %v3717
      %v3736 = vlaneseq
      %vm3737 = vcmp.ge.s32.totalorder %v3736, 0
      %vm3738 = vcmp.lt.s32.totalorder %v3736, 256
      %vm3739 = vmand %vm3737, %vm3738
      %s3740 = scalar_lea.vmem %s280, 16
      %3741 = vst.msk [vmem:[%s3740] ss:$2 sm:$0x3] %vm3739, %v3732
      %v3742 = vsub.f32 1.0, %v3649
      %v3743 = vsub.f32 1.0, %v3650
      %v3744 = vsub.f32 1.0, %v3651
      %v3745 = vsub.f32 1.0, %v3652
      %v3746 = vsub.f32 1.0, %v3653
      %v3747 = vsub.f32 1.0, %v3654
      %v3748 = vsub.f32 1.0, %v3655
      %v3749 = vsub.f32 1.0, %v3656
      %v3750 = vsub.f32 1.0, %v3657
      %v3751 = vsub.f32 1.0, %v3658
      %v3762 = vcombine.low %v3742, %v3743
      %v3763 = vcombine.low %v3744, %v3745
      %v3764 = vcombine.low %v3746, %v3747
      %v3765 = vcombine.low %v3748, %v3749
      %v3767 = vunpack.c.l.s4 1966171168
      %v3768 = vunpack.c.0.s8 %v3767
      %v3769 = vlaneseq
      %v3770 = vshrl.u32 %v3769, 7
      %v3771 = vsub.s32 %v3768, %v3770
      %v3772 = vrot.slane %v3762, %v3771
      %v3774 = vunpack.c.l.s4 1966171168
      %v3775 = vunpack.c.0.s8 %v3774
      %v3776 = vlaneseq
      %v3777 = vshrl.u32 %v3776, 7
      %v3778 = vsub.s32 %v3775, %v3777
      %v3779 = vrot.slane %v3763, %v3778
      %v3781 = vunpack.c.l.s4 1966171168
      %v3782 = vunpack.c.0.s8 %v3781
      %v3783 = vlaneseq
      %v3784 = vshrl.u32 %v3783, 7
      %v3785 = vsub.s32 %v3782, %v3784
      %v3786 = vrot.slane %v3764, %v3785
      %v3788 = vunpack.c.l.s4 1966171168
      %v3789 = vunpack.c.0.s8 %v3788
      %v3790 = vlaneseq
      %v3791 = vshrl.u32 %v3790, 7
      %v3792 = vsub.s32 %v3789, %v3791
      %v3793 = vrot.slane %v3765, %v3792
      %v3794 = vcombine.low %v3772, %v3779
      %v3795 = vcombine.low %v3786, %v3793
      %v3797 = vunpack.c.l.s4 1966171168
      %v3798 = vunpack.c.0.s8 %v3797
      %v3799 = vlaneseq
      %v3800 = vshrl.u32 %v3799, 7
      %v3801 = vsub.s32 %v3798, %v3800
      %v3802 = vrot.slane %v3794, %v3801
      %v3804 = vunpack.c.l.s4 1966171168
      %v3805 = vunpack.c.0.s8 %v3804
      %v3806 = vlaneseq
      %v3807 = vshrl.u32 %v3806, 7
      %v3808 = vsub.s32 %v3805, %v3807
      %v3809 = vrot.slane %v3795, %v3808
      %v3810 = vcombine.low %v3802, %v3809
      %v3811 = vcombine.low %v3750, %v3751
      %v3813 = vunpack.c.l.s4 1966171168
      %v3814 = vunpack.c.0.s8 %v3813
      %v3815 = vlaneseq
      %v3816 = vshrl.u32 %v3815, 7
      %v3817 = vsub.s32 %v3814, %v3816
      %v3818 = vrot.slane %v3811, %v3817
      %v3820 = vunpack.c.l.s4 1966171168
      %v3821 = vunpack.c.0.s8 %v3820
      %v3822 = vlaneseq
      %v3823 = vshrl.u32 %v3822, 7
      %v3824 = vsub.s32 %v3821, %v3823
      %v3825 = vrot.slane %v3818, %v3824
      %s3828 = scalar_lea.vmem %s280, 1
      %3829 = vst [vmem:[%s3828] ss:$2 sm:$0xff] %v3810
      %s3830 = scalar_lea.vmem %s280, 17
      %3831 = vst.msk [vmem:[%s3830] ss:$2 sm:$0x3] %vm3739, %v3825
      %s3832 = smul.u32 10, %s18
      %p3833 = scmp.lt.s32.totalorder %s3832, 19
      %s3834 = scalar_select %p3833, %s3832, 19
      %s3835 = smul.addr %s3834, 2
      %s3836 = scalar_lea.vmem %s7, %s3835
      // Predicated region
      $region49: #{transformer_forward.1} parent=47 // pred_check
        %p3837 = pneg %p188
      $region50: #{transformer_forward.1} parent=47 // pred_check_branch
        %3839 = sbr.rel (%p3837) target = $region52
      $region51: #{transformer_forward.1} parent=47 // pred_region
        %s3840 = smul.u32 10, %s18
      $region52: #{transformer_forward.1} parent=47 // pred_fallthru
        _
    $region48: #{transformer_forward.1} parent=5 // pred_fallthru
      _
    %p3841 = scmp.le.s32.totalorder 2, %s13
    // Predicated region
    $region53: #{transformer_forward.1} parent=5 // pred_check
      %p3842 = pneg %p3841
    $region54: #{transformer_forward.1} parent=5 // pred_check_branch
      %3844 = sbr.rel (%p3842) target = $region56
    $region55: #{transformer_forward.1} parent=5 // pred_region
      %s3845 = ssub.s32 %s13, 2
      // Predicated region
      $region57: #{transformer_forward.1} parent=55 // pred_check
        %p3846 = pneg %p194
      $region58: #{transformer_forward.1} parent=55 // pred_check_branch
        %3848 = sbr.rel (%p3846) target = $region60
      $region59: #{transformer_forward.1} parent=55 // pred_region
        %s3849 = smul.u32 10, %s19
        %p3850 = scmp.lt.s32.totalorder %s3849, 19
        %s3851 = scalar_select %p3850, %s3849, 19
        %s3852 = smul.addr %s3851, 2
        %s3853 = scalar_lea.vmem %s7, %s3852
      $region60: #{transformer_forward.1} parent=55 // pred_fallthru
        _
    $region56: #{transformer_forward.1} parent=5 // pred_fallthru
      _
  $region6: #{transformer_forward.1} parent=0 // loop_footer
    %s17 = sadd.s32 1, %s13
  $region7: #{transformer_forward.1} parent=0 // loop_footer_branch
    %12 = sbr.rel target = $region3
  $region8: #{transformer_forward.1} parent=0 // loop_exit
    _

</llo_original>
